<compile_context>
chip_gen: v6e
topology: v6e:2x2x1
jax: 0.10.0
libtpu: 0.0.40
codegen_flags: <defaults>
</compile_context>

<pallas_src>
import jax
import jax.numpy as jnp
from jax import lax
from jax.experimental import pallas as pl
from jax.experimental.pallas import tpu as pltpu


_TIME_CHUNK = 8  # tokens per grid step; multiple of 8 sublanes


def _gru_chunk_kernel(gi_ref,     # (T, 3H) f32  precomputed x@W_ih^T + folded biases
                      w_hh_ref,   # (H, 3H) bf16 W_hh^T (constant index -> VMEM resident)
                      b_hn_ref,   # (1, H)  f32  b_hn (only bias that must stay in-loop)
                      h0_ref,     # (1, H)  f32  initial hidden
                      out_ref,    # (T, H)  f32  per-step hidden states for this chunk
                      h_scr):     # VMEM (1, H) f32 hidden-state carry across chunks
    c = pl.program_id(0)
    T, H = out_ref.shape

    @pl.when(c == 0)
    def _():
        h_scr[...] = h0_ref[...]

    b_hn = b_hn_ref[...]                              # (1, H)

    def step(t, h):
        # Recurrent half only: (1,H) @ (H,3H), bf16 weights, f32 accumulation.
        gh = jnp.dot(h.astype(jnp.bfloat16), w_hh_ref[...],
                     preferred_element_type=jnp.float32)          # (1, 3H)
        gi = gi_ref[pl.ds(t, 1), :]                                # (1, 3H)
        # H = 256 -> every gate slice is 128-lane aligned.
        r = jax.nn.sigmoid(gi[:, 0:H] + gh[:, 0:H])
        z = jax.nn.sigmoid(gi[:, H:2 * H] + gh[:, H:2 * H])
        n = jnp.tanh(gi[:, 2 * H:3 * H] + r * (gh[:, 2 * H:3 * H] + b_hn))
        h_new = (1.0 - z) * n + z * h
        out_ref[pl.ds(t, 1), :] = h_new                            # stays in VMEM block
        return h_new

    # Unrolled in-kernel recurrence over the chunk (scheduler sees across steps).
    h_last = lax.fori_loop(0, T, step, h_scr[...], unroll=True)
    h_scr[...] = h_last                                            # carry to next chunk


@jax.jit
def encoder_rnn_forward(tokens, emb_table, w_ih_t, w_hh_t, b_ih, b_hh, hidden_0):
    """EncoderRNN forward over a token sequence.

    tokens:   (S,) int32
    hidden_0: (1, 1, H) f32
    Returns (outputs, hidden): outputs (S, 1, H), hidden (1, 1, H).
    For S == 1 this is exactly the PyTorch module's forward(input, hidden_0).
    """
    chunk = _TIME_CHUNK
    V, H = emb_table.shape
    S = tokens.shape[0]
    h0 = hidden_0.reshape(1, H).astype(jnp.float32)

    # ---- Phase 1 (hoisted, dense, MXU-shaped): input projection for the whole
    # sequence.  Fold b_ih fully and the r/z thirds of b_hh (valid because they
    # are added to gi before the sigmoids); only b_hn stays in the recurrence.
    x_all = emb_table[tokens]                                      # (S, H) gather (XLA)
    bias_fold = b_ih + jnp.concatenate(
        [b_hh[:, :2 * H], jnp.zeros_like(b_hh[:, 2 * H:])], axis=-1)   # (1, 3H)
    gi_all = x_all @ w_ih_t + bias_fold                            # (S, 3H) f32
    b_hn = b_hh[:, 2 * H:3 * H]                                    # (1, H)

    # Pad the time axis up to a multiple of the chunk (padded steps discarded).
    S_pad = ((S + chunk - 1) // chunk) * chunk
    gi_all = jnp.pad(gi_all, ((0, S_pad - S), (0, 0)))

    # bf16 weights, f32 accumulation inside the kernel.
    w_hh_b = w_hh_t.astype(jnp.bfloat16)                           # (H, 3H)

    # ---- Phase 2: sequential GRU recurrence, chunked over time.
    # TODO(synk): add pl.Buffered(1) on the constant-index specs + a batched
    # "parallel" axis (v7x 2nd TensorCore) if this is ever scaled up in H / batch.
    outs = pl.pallas_call(
        _gru_chunk_kernel,
        out_shape=jax.ShapeDtypeStruct((S_pad, H), jnp.float32),
        grid_spec=pltpu.PrefetchScalarGridSpec(
            num_scalar_prefetch=0,
            grid=(S_pad // chunk,),
            in_specs=[
                pl.BlockSpec((chunk, 3 * H), lambda c: (c, 0)),    # gi chunk
                pl.BlockSpec((H, 3 * H), lambda c: (0, 0)),        # W_hh^T (resident)
                pl.BlockSpec((1, H), lambda c: (0, 0)),            # b_hn
                pl.BlockSpec((1, H), lambda c: (0, 0)),            # h0
            ],
            out_specs=pl.BlockSpec((chunk, H), lambda c: (c, 0)),
            scratch_shapes=[pltpu.VMEM((1, H), jnp.float32)],
        ),
        compiler_params=pltpu.CompilerParams(
            dimension_semantics=("arbitrary",)),   # sequential carry over time
    )(gi_all, w_hh_b, b_hn, h0)

    outputs = outs[:S].reshape(S, 1, H)
    hidden = outs[S - 1:S].reshape(1, 1, H)        # final h == last real output row
    return outputs, hidden


def _reference_forward(tokens, emb_table, w_ih_t, w_hh_t, b_ih, b_hh, hidden_0):
    """Pure-JAX per-token GRU matching torch.nn.GRU.  Uses the same bf16 cast
    for W_hh (bf16 products, f32 accumulation) as the kernel so the comparison
    is tight."""
    H = emb_table.shape[1]
    h = hidden_0.reshape(1, H)
    w_hh_b = w_hh_t.astype(jnp.bfloat16)
    outs = []
    for t in range(int(tokens.shape[0])):
        x = emb_table[tokens[t]].reshape(1, H)
        gi = x @ w_ih_t + b_ih
        gh = jnp.dot(h.astype(jnp.bfloat16), w_hh_b,
                     preferred_element_type=jnp.float32) + b_hh
        i_r, i_z, i_n = gi[:, :H], gi[:, H:2 * H], gi[:, 2 * H:]
        h_r, h_z, h_n = gh[:, :H], gh[:, H:2 * H], gh[:, 2 * H:]
        r = jax.nn.sigmoid(i_r + h_r)
        z = jax.nn.sigmoid(i_z + h_z)
        n = jnp.tanh(i_n + r * h_n)
        h = (1.0 - z) * n + z * h
        outs.append(h)
    return jnp.stack(outs, axis=0).reshape(len(outs), 1, H), h.reshape(1, 1, H)


if __name__ == "__main__":
    # Module-consistent shapes: hidden_dim = 256 (as in the spec), small vocab,
    # short sequence.  S = 32 -> grid of 4 time chunks of 8 tokens.
    V, H, S = 32, 256, 32
    key = jax.random.PRNGKey(0)
    k_emb, k_wih, k_whh, k_bih, k_bhh, k_tok = jax.random.split(key, 6)

    # nn.Embedding init ~ N(0, 1); nn.GRU init ~ U(-1/sqrt(H), 1/sqrt(H)).
    bound = 1.0 / jnp.sqrt(jnp.float32(H))
    emb_table = jax.random.normal(k_emb, (V, H), dtype=jnp.float32)
    # PyTorch weight_ih_l0 / weight_hh_l0 are (3H, H), gate order [r|z|n];
    # we store their transposes.
    w_ih_t = jax.random.uniform(k_wih, (H, 3 * H), jnp.float32, -bound, bound)
    w_hh_t = jax.random.uniform(k_whh, (H, 3 * H), jnp.float32, -bound, bound)
    b_ih = jax.random.uniform(k_bih, (1, 3 * H), jnp.float32, -bound, bound)
    b_hh = jax.random.uniform(k_bhh, (1, 3 * H), jnp.float32, -bound, bound)

    tokens = jax.random.randint(k_tok, (S,), 0, V, dtype=jnp.int32)
    hidden_0 = jnp.zeros((1, 1, H), dtype=jnp.float32)   # EncoderRNN.initHidden()

    # Full-sequence run (hoisted input projection + chunked in-kernel recurrence).
    outputs, hidden = encoder_rnn_forward(tokens, emb_table, w_ih_t, w_hh_t,
                                          b_ih, b_hh, hidden_0)
    jax.block_until_ready((outputs, hidden))

    ref_out, ref_hid = _reference_forward(tokens, emb_table, w_ih_t, w_hh_t,
                                          b_ih, b_hh, hidden_0)
    assert outputs.shape == (S, 1, H) and hidden.shape == (1, 1, H)
    assert jnp.allclose(outputs, ref_out, atol=1e-3, rtol=1e-3)
    assert jnp.allclose(hidden, ref_hid, atol=1e-3, rtol=1e-3)

    # Single-step run: exactly the PyTorch module's forward(input, hidden_0)
    # (also exercises the time-axis padding path: S=1 padded to one 8-row chunk).
    out1, hid1 = encoder_rnn_forward(tokens[:1], emb_table, w_ih_t, w_hh_t,
                                     b_ih, b_hh, hidden_0)
    jax.block_until_ready((out1, hid1))
    ref_out1, ref_hid1 = _reference_forward(tokens[:1], emb_table, w_ih_t, w_hh_t,
                                            b_ih, b_hh, hidden_0)
    assert out1.shape == (1, 1, H) and hid1.shape == (1, 1, H)
    assert jnp.allclose(out1, ref_out1, atol=1e-3, rtol=1e-3)
    assert jnp.allclose(hid1, ref_hid1, atol=1e-3, rtol=1e-3)
    assert jnp.allclose(out1, hid1)   # single-step GRU: output == hidden

    print("KERNEL_OK")
</pallas_src>

<mosaic_0001>
module attributes {stable_mosaic.version = 11 : i64} {
  func.func @_gru_chunk_kernel(%arg0: i32, %arg1: memref<8x768xf32, #tpu.memory_space<vmem>>, %arg2: memref<256x768xbf16, #tpu.memory_space<vmem>>, %arg3: memref<1x256xf32, #tpu.memory_space<vmem>>, %arg4: memref<1x256xf32, #tpu.memory_space<vmem>>, %arg5: memref<8x256xf32, #tpu.memory_space<vmem>>, %arg6: memref<1x256xf32, #tpu.memory_space<vmem>>) attributes {dimension_semantics = [#tpu.dimension_semantics<arbitrary>], iteration_bounds = array<i64: 4>, scalar_prefetch = 0 : i64, scratch_operands = 1 : i64, tpu.core_type = #tpu.core_type<tc>, window_params = [{transform_indices = @transform_0, window_bounds = array<i64: 8, 768>}, {pipeline_mode = #tpu.pipeline_mode<synchronous>, transform_indices = @transform_1, window_bounds = array<i64: 256, 768>}, {pipeline_mode = #tpu.pipeline_mode<synchronous>, transform_indices = @transform_2, window_bounds = array<i64: 1, 256>}, {pipeline_mode = #tpu.pipeline_mode<synchronous>, transform_indices = @transform_3, window_bounds = array<i64: 1, 256>}, {transform_indices = @transform_4, window_bounds = array<i64: 8, 256>}]} {
    %c0_i32 = arith.constant 0 : i32
    %0 = arith.cmpi eq, %arg0, %c0_i32 : i32
    %1 = arith.extui %0 : i1 to i32
    %c0_i32_0 = arith.constant 0 : i32
    %2 = arith.cmpi ne, %1, %c0_i32_0 : i32
    scf.if %2 {
      %c0_70 = arith.constant 0 : index
      %c0_71 = arith.constant 0 : index
      %278 = vector.load %arg4[%c0_70, %c0_71] : memref<1x256xf32, #tpu.memory_space<vmem>>, vector<1x256xf32>
      %c0_72 = arith.constant 0 : index
      %c0_73 = arith.constant 0 : index
      %279 = vector.load %arg6[%c0_72, %c0_73] : memref<1x256xf32, #tpu.memory_space<vmem>>, vector<1x256xf32>
      tpu.vector_store %arg6[%c0_72, %c0_73], %278 {strides = array<i32>} : memref<1x256xf32, #tpu.memory_space<vmem>>, vector<1x256xf32>,
    } else {
    }
    %c0 = arith.constant 0 : index
    %c0_1 = arith.constant 0 : index
    %3 = vector.load %arg3[%c0, %c0_1] : memref<1x256xf32, #tpu.memory_space<vmem>>, vector<1x256xf32>
    %c0_2 = arith.constant 0 : index
    %c0_3 = arith.constant 0 : index
    %4 = vector.load %arg6[%c0_2, %c0_3] : memref<1x256xf32, #tpu.memory_space<vmem>>, vector<1x256xf32>
    %c0_i32_4 = arith.constant 0 : i32
    %5 = arith.truncf %4 : vector<1x256xf32> to vector<1x256xbf16>
    %c0_5 = arith.constant 0 : index
    %c0_6 = arith.constant 0 : index
    %6 = vector.load %arg2[%c0_5, %c0_6] : memref<256x768xbf16, #tpu.memory_space<vmem>>, vector<256x768xbf16>
    %cst = arith.constant dense<0.000000e+00> : vector<1x768xf32>
    %7 = tpu.matmul %5, %6, %cst {dimension_numbers = #tpu.dot_dimension_numbers<[1], [0], [0], [1], [0, 0, 1, 1], [], []>} : vector<1x256xbf16>, vector<256x768xbf16>, vector<1x768xf32> -> vector<1x768xf32>
    %8 = arith.index_cast %c0_i32_4 : i32 to index
    %c0_7 = arith.constant 0 : index
    %9 = vector.load %arg1[%8, %c0_7] : memref<8x768xf32, #tpu.memory_space<vmem>>, vector<1x768xf32>
    %10 = vector.extract_strided_slice %9 {offsets = [0, 0], sizes = [1, 256], strides = [1, 1]} : vector<1x768xf32> to vector<1x256xf32>
    %11 = vector.extract_strided_slice %7 {offsets = [0, 0], sizes = [1, 256], strides = [1, 1]} : vector<1x768xf32> to vector<1x256xf32>
    %12 = arith.addf %10, %11 : vector<1x256xf32>
    %13 = arith.negf %12 : vector<1x256xf32>
    %14 = math.exp %13 : vector<1x256xf32>
    %cst_8 = arith.constant 1.000000e+00 : f32
    %15 = vector.broadcast %cst_8 : f32 to vector<1x256xf32>
    %16 = arith.addf %15, %14 : vector<1x256xf32>
    %17 = arith.divf %15, %16 : vector<1x256xf32>
    %18 = vector.extract_strided_slice %9 {offsets = [0, 256], sizes = [1, 256], strides = [1, 1]} : vector<1x768xf32> to vector<1x256xf32>
    %19 = vector.extract_strided_slice %7 {offsets = [0, 256], sizes = [1, 256], strides = [1, 1]} : vector<1x768xf32> to vector<1x256xf32>
    %20 = arith.addf %18, %19 : vector<1x256xf32>
    %21 = arith.negf %20 : vector<1x256xf32>
    %22 = math.exp %21 : vector<1x256xf32>
    %cst_9 = arith.constant 1.000000e+00 : f32
    %23 = vector.broadcast %cst_9 : f32 to vector<1x256xf32>
    %24 = arith.addf %23, %22 : vector<1x256xf32>
    %25 = arith.divf %23, %24 : vector<1x256xf32>
    %26 = vector.extract_strided_slice %9 {offsets = [0, 512], sizes = [1, 256], strides = [1, 1]} : vector<1x768xf32> to vector<1x256xf32>
    %27 = vector.extract_strided_slice %7 {offsets = [0, 512], sizes = [1, 256], strides = [1, 1]} : vector<1x768xf32> to vector<1x256xf32>
    %28 = arith.addf %27, %3 : vector<1x256xf32>
    %29 = arith.mulf %17, %28 : vector<1x256xf32>
    %30 = arith.addf %26, %29 : vector<1x256xf32>
    %31 = math.tanh %30 : vector<1x256xf32>
    %cst_10 = arith.constant 1.000000e+00 : f32
    %32 = vector.broadcast %cst_10 : f32 to vector<1x256xf32>
    %33 = arith.subf %32, %25 : vector<1x256xf32>
    %34 = arith.mulf %33, %31 : vector<1x256xf32>
    %35 = arith.mulf %25, %4 : vector<1x256xf32>
    %36 = arith.addf %34, %35 : vector<1x256xf32>
    %37 = arith.index_cast %c0_i32_4 : i32 to index
    %c0_11 = arith.constant 0 : index
    %38 = vector.load %arg5[%37, %c0_11] : memref<8x256xf32, #tpu.memory_space<vmem>>, vector<1x256xf32>
    tpu.vector_store %arg5[%37, %c0_11], %36 {strides = array<i32>} : memref<8x256xf32, #tpu.memory_space<vmem>>, vector<1x256xf32>,
    %c1_i32 = arith.constant 1 : i32
    %39 = arith.truncf %36 : vector<1x256xf32> to vector<1x256xbf16>
    %c0_12 = arith.constant 0 : index
    %c0_13 = arith.constant 0 : index
    %40 = vector.load %arg2[%c0_12, %c0_13] : memref<256x768xbf16, #tpu.memory_space<vmem>>, vector<256x768xbf16>
    %cst_14 = arith.constant dense<0.000000e+00> : vector<1x768xf32>
    %41 = tpu.matmul %39, %40, %cst_14 {dimension_numbers = #tpu.dot_dimension_numbers<[1], [0], [0], [1], [0, 0, 1, 1], [], []>} : vector<1x256xbf16>, vector<256x768xbf16>, vector<1x768xf32> -> vector<1x768xf32>
    %42 = arith.index_cast %c1_i32 : i32 to index
    %c0_15 = arith.constant 0 : index
    %43 = vector.load %arg1[%42, %c0_15] : memref<8x768xf32, #tpu.memory_space<vmem>>, vector<1x768xf32>
    %44 = vector.extract_strided_slice %43 {offsets = [0, 0], sizes = [1, 256], strides = [1, 1]} : vector<1x768xf32> to vector<1x256xf32>
    %45 = vector.extract_strided_slice %41 {offsets = [0, 0], sizes = [1, 256], strides = [1, 1]} : vector<1x768xf32> to vector<1x256xf32>
    %46 = arith.addf %44, %45 : vector<1x256xf32>
    %47 = arith.negf %46 : vector<1x256xf32>
    %48 = math.exp %47 : vector<1x256xf32>
    %cst_16 = arith.constant 1.000000e+00 : f32
    %49 = vector.broadcast %cst_16 : f32 to vector<1x256xf32>
    %50 = arith.addf %49, %48 : vector<1x256xf32>
    %51 = arith.divf %49, %50 : vector<1x256xf32>
    %52 = vector.extract_strided_slice %43 {offsets = [0, 256], sizes = [1, 256], strides = [1, 1]} : vector<1x768xf32> to vector<1x256xf32>
    %53 = vector.extract_strided_slice %41 {offsets = [0, 256], sizes = [1, 256], strides = [1, 1]} : vector<1x768xf32> to vector<1x256xf32>
    %54 = arith.addf %52, %53 : vector<1x256xf32>
    %55 = arith.negf %54 : vector<1x256xf32>
    %56 = math.exp %55 : vector<1x256xf32>
    %cst_17 = arith.constant 1.000000e+00 : f32
    %57 = vector.broadcast %cst_17 : f32 to vector<1x256xf32>
    %58 = arith.addf %57, %56 : vector<1x256xf32>
    %59 = arith.divf %57, %58 : vector<1x256xf32>
    %60 = vector.extract_strided_slice %43 {offsets = [0, 512], sizes = [1, 256], strides = [1, 1]} : vector<1x768xf32> to vector<1x256xf32>
    %61 = vector.extract_strided_slice %41 {offsets = [0, 512], sizes = [1, 256], strides = [1, 1]} : vector<1x768xf32> to vector<1x256xf32>
    %62 = arith.addf %61, %3 : vector<1x256xf32>
    %63 = arith.mulf %51, %62 : vector<1x256xf32>
    %64 = arith.addf %60, %63 : vector<1x256xf32>
    %65 = math.tanh %64 : vector<1x256xf32>
    %cst_18 = arith.constant 1.000000e+00 : f32
    %66 = vector.broadcast %cst_18 : f32 to vector<1x256xf32>
    %67 = arith.subf %66, %59 : vector<1x256xf32>
    %68 = arith.mulf %67, %65 : vector<1x256xf32>
    %69 = arith.mulf %59, %36 : vector<1x256xf32>
    %70 = arith.addf %68, %69 : vector<1x256xf32>
    %71 = arith.index_cast %c1_i32 : i32 to index
    %c0_19 = arith.constant 0 : index
    %72 = vector.load %arg5[%71, %c0_19] : memref<8x256xf32, #tpu.memory_space<vmem>>, vector<1x256xf32>
    tpu.vector_store %arg5[%71, %c0_19], %70 {strides = array<i32>} : memref<8x256xf32, #tpu.memory_space<vmem>>, vector<1x256xf32>,
    %c2_i32 = arith.constant 2 : i32
    %73 = arith.truncf %70 : vector<1x256xf32> to vector<1x256xbf16>
    %c0_20 = arith.constant 0 : index
    %c0_21 = arith.constant 0 : index
    %74 = vector.load %arg2[%c0_20, %c0_21] : memref<256x768xbf16, #tpu.memory_space<vmem>>, vector<256x768xbf16>
    %cst_22 = arith.constant dense<0.000000e+00> : vector<1x768xf32>
    %75 = tpu.matmul %73, %74, %cst_22 {dimension_numbers = #tpu.dot_dimension_numbers<[1], [0], [0], [1], [0, 0, 1, 1], [], []>} : vector<1x256xbf16>, vector<256x768xbf16>, vector<1x768xf32> -> vector<1x768xf32>
    %76 = arith.index_cast %c2_i32 : i32 to index
    %c0_23 = arith.constant 0 : index
    %77 = vector.load %arg1[%76, %c0_23] : memref<8x768xf32, #tpu.memory_space<vmem>>, vector<1x768xf32>
    %78 = vector.extract_strided_slice %77 {offsets = [0, 0], sizes = [1, 256], strides = [1, 1]} : vector<1x768xf32> to vector<1x256xf32>
    %79 = vector.extract_strided_slice %75 {offsets = [0, 0], sizes = [1, 256], strides = [1, 1]} : vector<1x768xf32> to vector<1x256xf32>
    %80 = arith.addf %78, %79 : vector<1x256xf32>
    %81 = arith.negf %80 : vector<1x256xf32>
    %82 = math.exp %81 : vector<1x256xf32>
    %cst_24 = arith.constant 1.000000e+00 : f32
    %83 = vector.broadcast %cst_24 : f32 to vector<1x256xf32>
    %84 = arith.addf %83, %82 : vector<1x256xf32>
    %85 = arith.divf %83, %84 : vector<1x256xf32>
    %86 = vector.extract_strided_slice %77 {offsets = [0, 256], sizes = [1, 256], strides = [1, 1]} : vector<1x768xf32> to vector<1x256xf32>
    %87 = vector.extract_strided_slice %75 {offsets = [0, 256], sizes = [1, 256], strides = [1, 1]} : vector<1x768xf32> to vector<1x256xf32>
    %88 = arith.addf %86, %87 : vector<1x256xf32>
    %89 = arith.negf %88 : vector<1x256xf32>
    %90 = math.exp %89 : vector<1x256xf32>
    %cst_25 = arith.constant 1.000000e+00 : f32
    %91 = vector.broadcast %cst_25 : f32 to vector<1x256xf32>
    %92 = arith.addf %91, %90 : vector<1x256xf32>
    %93 = arith.divf %91, %92 : vector<1x256xf32>
    %94 = vector.extract_strided_slice %77 {offsets = [0, 512], sizes = [1, 256], strides = [1, 1]} : vector<1x768xf32> to vector<1x256xf32>
    %95 = vector.extract_strided_slice %75 {offsets = [0, 512], sizes = [1, 256], strides = [1, 1]} : vector<1x768xf32> to vector<1x256xf32>
    %96 = arith.addf %95, %3 : vector<1x256xf32>
    %97 = arith.mulf %85, %96 : vector<1x256xf32>
    %98 = arith.addf %94, %97 : vector<1x256xf32>
    %99 = math.tanh %98 : vector<1x256xf32>
    %cst_26 = arith.constant 1.000000e+00 : f32
    %100 = vector.broadcast %cst_26 : f32 to vector<1x256xf32>
    %101 = arith.subf %100, %93 : vector<1x256xf32>
    %102 = arith.mulf %101, %99 : vector<1x256xf32>
    %103 = arith.mulf %93, %70 : vector<1x256xf32>
    %104 = arith.addf %102, %103 : vector<1x256xf32>
    %105 = arith.index_cast %c2_i32 : i32 to index
    %c0_27 = arith.constant 0 : index
    %106 = vector.load %arg5[%105, %c0_27] : memref<8x256xf32, #tpu.memory_space<vmem>>, vector<1x256xf32>
    tpu.vector_store %arg5[%105, %c0_27], %104 {strides = array<i32>} : memref<8x256xf32, #tpu.memory_space<vmem>>, vector<1x256xf32>,
    %c3_i32 = arith.constant 3 : i32
    %107 = arith.truncf %104 : vector<1x256xf32> to vector<1x256xbf16>
    %c0_28 = arith.constant 0 : index
    %c0_29 = arith.constant 0 : index
    %108 = vector.load %arg2[%c0_28, %c0_29] : memref<256x768xbf16, #tpu.memory_space<vmem>>, vector<256x768xbf16>
    %cst_30 = arith.constant dense<0.000000e+00> : vector<1x768xf32>
    %109 = tpu.matmul %107, %108, %cst_30 {dimension_numbers = #tpu.dot_dimension_numbers<[1], [0], [0], [1], [0, 0, 1, 1], [], []>} : vector<1x256xbf16>, vector<256x768xbf16>, vector<1x768xf32> -> vector<1x768xf32>
    %110 = arith.index_cast %c3_i32 : i32 to index
    %c0_31 = arith.constant 0 : index
    %111 = vector.load %arg1[%110, %c0_31] : memref<8x768xf32, #tpu.memory_space<vmem>>, vector<1x768xf32>
    %112 = vector.extract_strided_slice %111 {offsets = [0, 0], sizes = [1, 256], strides = [1, 1]} : vector<1x768xf32> to vector<1x256xf32>
    %113 = vector.extract_strided_slice %109 {offsets = [0, 0], sizes = [1, 256], strides = [1, 1]} : vector<1x768xf32> to vector<1x256xf32>
    %114 = arith.addf %112, %113 : vector<1x256xf32>
    %115 = arith.negf %114 : vector<1x256xf32>
    %116 = math.exp %115 : vector<1x256xf32>
    %cst_32 = arith.constant 1.000000e+00 : f32
    %117 = vector.broadcast %cst_32 : f32 to vector<1x256xf32>
    %118 = arith.addf %117, %116 : vector<1x256xf32>
    %119 = arith.divf %117, %118 : vector<1x256xf32>
    %120 = vector.extract_strided_slice %111 {offsets = [0, 256], sizes = [1, 256], strides = [1, 1]} : vector<1x768xf32> to vector<1x256xf32>
    %121 = vector.extract_strided_slice %109 {offsets = [0, 256], sizes = [1, 256], strides = [1, 1]} : vector<1x768xf32> to vector<1x256xf32>
    %122 = arith.addf %120, %121 : vector<1x256xf32>
    %123 = arith.negf %122 : vector<1x256xf32>
    %124 = math.exp %123 : vector<1x256xf32>
    %cst_33 = arith.constant 1.000000e+00 : f32
    %125 = vector.broadcast %cst_33 : f32 to vector<1x256xf32>
    %126 = arith.addf %125, %124 : vector<1x256xf32>
    %127 = arith.divf %125, %126 : vector<1x256xf32>
    %128 = vector.extract_strided_slice %111 {offsets = [0, 512], sizes = [1, 256], strides = [1, 1]} : vector<1x768xf32> to vector<1x256xf32>
    %129 = vector.extract_strided_slice %109 {offsets = [0, 512], sizes = [1, 256], strides = [1, 1]} : vector<1x768xf32> to vector<1x256xf32>
    %130 = arith.addf %129, %3 : vector<1x256xf32>
    %131 = arith.mulf %119, %130 : vector<1x256xf32>
    %132 = arith.addf %128, %131 : vector<1x256xf32>
    %133 = math.tanh %132 : vector<1x256xf32>
    %cst_34 = arith.constant 1.000000e+00 : f32
    %134 = vector.broadcast %cst_34 : f32 to vector<1x256xf32>
    %135 = arith.subf %134, %127 : vector<1x256xf32>
    %136 = arith.mulf %135, %133 : vector<1x256xf32>
    %137 = arith.mulf %127, %104 : vector<1x256xf32>
    %138 = arith.addf %136, %137 : vector<1x256xf32>
    %139 = arith.index_cast %c3_i32 : i32 to index
    %c0_35 = arith.constant 0 : index
    %140 = vector.load %arg5[%139, %c0_35] : memref<8x256xf32, #tpu.memory_space<vmem>>, vector<1x256xf32>
    tpu.vector_store %arg5[%139, %c0_35], %138 {strides = array<i32>} : memref<8x256xf32, #tpu.memory_space<vmem>>, vector<1x256xf32>,
    %c4_i32 = arith.constant 4 : i32
    %141 = arith.truncf %138 : vector<1x256xf32> to vector<1x256xbf16>
    %c0_36 = arith.constant 0 : index
    %c0_37 = arith.constant 0 : index
    %142 = vector.load %arg2[%c0_36, %c0_37] : memref<256x768xbf16, #tpu.memory_space<vmem>>, vector<256x768xbf16>
    %cst_38 = arith.constant dense<0.000000e+00> : vector<1x768xf32>
    %143 = tpu.matmul %141, %142, %cst_38 {dimension_numbers = #tpu.dot_dimension_numbers<[1], [0], [0], [1], [0, 0, 1, 1], [], []>} : vector<1x256xbf16>, vector<256x768xbf16>, vector<1x768xf32> -> vector<1x768xf32>
    %144 = arith.index_cast %c4_i32 : i32 to index
    %c0_39 = arith.constant 0 : index
    %145 = vector.load %arg1[%144, %c0_39] : memref<8x768xf32, #tpu.memory_space<vmem>>, vector<1x768xf32>
    %146 = vector.extract_strided_slice %145 {offsets = [0, 0], sizes = [1, 256], strides = [1, 1]} : vector<1x768xf32> to vector<1x256xf32>
    %147 = vector.extract_strided_slice %143 {offsets = [0, 0], sizes = [1, 256], strides = [1, 1]} : vector<1x768xf32> to vector<1x256xf32>
    %148 = arith.addf %146, %147 : vector<1x256xf32>
    %149 = arith.negf %148 : vector<1x256xf32>
    %150 = math.exp %149 : vector<1x256xf32>
    %cst_40 = arith.constant 1.000000e+00 : f32
    %151 = vector.broadcast %cst_40 : f32 to vector<1x256xf32>
    %152 = arith.addf %151, %150 : vector<1x256xf32>
    %153 = arith.divf %151, %152 : vector<1x256xf32>
    %154 = vector.extract_strided_slice %145 {offsets = [0, 256], sizes = [1, 256], strides = [1, 1]} : vector<1x768xf32> to vector<1x256xf32>
    %155 = vector.extract_strided_slice %143 {offsets = [0, 256], sizes = [1, 256], strides = [1, 1]} : vector<1x768xf32> to vector<1x256xf32>
    %156 = arith.addf %154, %155 : vector<1x256xf32>
    %157 = arith.negf %156 : vector<1x256xf32>
    %158 = math.exp %157 : vector<1x256xf32>
    %cst_41 = arith.constant 1.000000e+00 : f32
    %159 = vector.broadcast %cst_41 : f32 to vector<1x256xf32>
    %160 = arith.addf %159, %158 : vector<1x256xf32>
    %161 = arith.divf %159, %160 : vector<1x256xf32>
    %162 = vector.extract_strided_slice %145 {offsets = [0, 512], sizes = [1, 256], strides = [1, 1]} : vector<1x768xf32> to vector<1x256xf32>
    %163 = vector.extract_strided_slice %143 {offsets = [0, 512], sizes = [1, 256], strides = [1, 1]} : vector<1x768xf32> to vector<1x256xf32>
    %164 = arith.addf %163, %3 : vector<1x256xf32>
    %165 = arith.mulf %153, %164 : vector<1x256xf32>
    %166 = arith.addf %162, %165 : vector<1x256xf32>
    %167 = math.tanh %166 : vector<1x256xf32>
    %cst_42 = arith.constant 1.000000e+00 : f32
    %168 = vector.broadcast %cst_42 : f32 to vector<1x256xf32>
    %169 = arith.subf %168, %161 : vector<1x256xf32>
    %170 = arith.mulf %169, %167 : vector<1x256xf32>
    %171 = arith.mulf %161, %138 : vector<1x256xf32>
    %172 = arith.addf %170, %171 : vector<1x256xf32>
    %173 = arith.index_cast %c4_i32 : i32 to index
    %c0_43 = arith.constant 0 : index
    %174 = vector.load %arg5[%173, %c0_43] : memref<8x256xf32, #tpu.memory_space<vmem>>, vector<1x256xf32>
    tpu.vector_store %arg5[%173, %c0_43], %172 {strides = array<i32>} : memref<8x256xf32, #tpu.memory_space<vmem>>, vector<1x256xf32>,
    %c5_i32 = arith.constant 5 : i32
    %175 = arith.truncf %172 : vector<1x256xf32> to vector<1x256xbf16>
    %c0_44 = arith.constant 0 : index
    %c0_45 = arith.constant 0 : index
    %176 = vector.load %arg2[%c0_44, %c0_45] : memref<256x768xbf16, #tpu.memory_space<vmem>>, vector<256x768xbf16>
    %cst_46 = arith.constant dense<0.000000e+00> : vector<1x768xf32>
    %177 = tpu.matmul %175, %176, %cst_46 {dimension_numbers = #tpu.dot_dimension_numbers<[1], [0], [0], [1], [0, 0, 1, 1], [], []>} : vector<1x256xbf16>, vector<256x768xbf16>, vector<1x768xf32> -> vector<1x768xf32>
    %178 = arith.index_cast %c5_i32 : i32 to index
    %c0_47 = arith.constant 0 : index
    %179 = vector.load %arg1[%178, %c0_47] : memref<8x768xf32, #tpu.memory_space<vmem>>, vector<1x768xf32>
    %180 = vector.extract_strided_slice %179 {offsets = [0, 0], sizes = [1, 256], strides = [1, 1]} : vector<1x768xf32> to vector<1x256xf32>
    %181 = vector.extract_strided_slice %177 {offsets = [0, 0], sizes = [1, 256], strides = [1, 1]} : vector<1x768xf32> to vector<1x256xf32>
    %182 = arith.addf %180, %181 : vector<1x256xf32>
    %183 = arith.negf %182 : vector<1x256xf32>
    %184 = math.exp %183 : vector<1x256xf32>
    %cst_48 = arith.constant 1.000000e+00 : f32
    %185 = vector.broadcast %cst_48 : f32 to vector<1x256xf32>
    %186 = arith.addf %185, %184 : vector<1x256xf32>
    %187 = arith.divf %185, %186 : vector<1x256xf32>
    %188 = vector.extract_strided_slice %179 {offsets = [0, 256], sizes = [1, 256], strides = [1, 1]} : vector<1x768xf32> to vector<1x256xf32>
    %189 = vector.extract_strided_slice %177 {offsets = [0, 256], sizes = [1, 256], strides = [1, 1]} : vector<1x768xf32> to vector<1x256xf32>
    %190 = arith.addf %188, %189 : vector<1x256xf32>
    %191 = arith.negf %190 : vector<1x256xf32>
    %192 = math.exp %191 : vector<1x256xf32>
    %cst_49 = arith.constant 1.000000e+00 : f32
    %193 = vector.broadcast %cst_49 : f32 to vector<1x256xf32>
    %194 = arith.addf %193, %192 : vector<1x256xf32>
    %195 = arith.divf %193, %194 : vector<1x256xf32>
    %196 = vector.extract_strided_slice %179 {offsets = [0, 512], sizes = [1, 256], strides = [1, 1]} : vector<1x768xf32> to vector<1x256xf32>
    %197 = vector.extract_strided_slice %177 {offsets = [0, 512], sizes = [1, 256], strides = [1, 1]} : vector<1x768xf32> to vector<1x256xf32>
    %198 = arith.addf %197, %3 : vector<1x256xf32>
    %199 = arith.mulf %187, %198 : vector<1x256xf32>
    %200 = arith.addf %196, %199 : vector<1x256xf32>
    %201 = math.tanh %200 : vector<1x256xf32>
    %cst_50 = arith.constant 1.000000e+00 : f32
    %202 = vector.broadcast %cst_50 : f32 to vector<1x256xf32>
    %203 = arith.subf %202, %195 : vector<1x256xf32>
    %204 = arith.mulf %203, %201 : vector<1x256xf32>
    %205 = arith.mulf %195, %172 : vector<1x256xf32>
    %206 = arith.addf %204, %205 : vector<1x256xf32>
    %207 = arith.index_cast %c5_i32 : i32 to index
    %c0_51 = arith.constant 0 : index
    %208 = vector.load %arg5[%207, %c0_51] : memref<8x256xf32, #tpu.memory_space<vmem>>, vector<1x256xf32>
    tpu.vector_store %arg5[%207, %c0_51], %206 {strides = array<i32>} : memref<8x256xf32, #tpu.memory_space<vmem>>, vector<1x256xf32>,
    %c6_i32 = arith.constant 6 : i32
    %209 = arith.truncf %206 : vector<1x256xf32> to vector<1x256xbf16>
    %c0_52 = arith.constant 0 : index
    %c0_53 = arith.constant 0 : index
    %210 = vector.load %arg2[%c0_52, %c0_53] : memref<256x768xbf16, #tpu.memory_space<vmem>>, vector<256x768xbf16>
    %cst_54 = arith.constant dense<0.000000e+00> : vector<1x768xf32>
    %211 = tpu.matmul %209, %210, %cst_54 {dimension_numbers = #tpu.dot_dimension_numbers<[1], [0], [0], [1], [0, 0, 1, 1], [], []>} : vector<1x256xbf16>, vector<256x768xbf16>, vector<1x768xf32> -> vector<1x768xf32>
    %212 = arith.index_cast %c6_i32 : i32 to index
    %c0_55 = arith.constant 0 : index
    %213 = vector.load %arg1[%212, %c0_55] : memref<8x768xf32, #tpu.memory_space<vmem>>, vector<1x768xf32>
    %214 = vector.extract_strided_slice %213 {offsets = [0, 0], sizes = [1, 256], strides = [1, 1]} : vector<1x768xf32> to vector<1x256xf32>
    %215 = vector.extract_strided_slice %211 {offsets = [0, 0], sizes = [1, 256], strides = [1, 1]} : vector<1x768xf32> to vector<1x256xf32>
    %216 = arith.addf %214, %215 : vector<1x256xf32>
    %217 = arith.negf %216 : vector<1x256xf32>
    %218 = math.exp %217 : vector<1x256xf32>
    %cst_56 = arith.constant 1.000000e+00 : f32
    %219 = vector.broadcast %cst_56 : f32 to vector<1x256xf32>
    %220 = arith.addf %219, %218 : vector<1x256xf32>
    %221 = arith.divf %219, %220 : vector<1x256xf32>
    %222 = vector.extract_strided_slice %213 {offsets = [0, 256], sizes = [1, 256], strides = [1, 1]} : vector<1x768xf32> to vector<1x256xf32>
    %223 = vector.extract_strided_slice %211 {offsets = [0, 256], sizes = [1, 256], strides = [1, 1]} : vector<1x768xf32> to vector<1x256xf32>
    %224 = arith.addf %222, %223 : vector<1x256xf32>
    %225 = arith.negf %224 : vector<1x256xf32>
    %226 = math.exp %225 : vector<1x256xf32>
    %cst_57 = arith.constant 1.000000e+00 : f32
    %227 = vector.broadcast %cst_57 : f32 to vector<1x256xf32>
    %228 = arith.addf %227, %226 : vector<1x256xf32>
    %229 = arith.divf %227, %228 : vector<1x256xf32>
    %230 = vector.extract_strided_slice %213 {offsets = [0, 512], sizes = [1, 256], strides = [1, 1]} : vector<1x768xf32> to vector<1x256xf32>
    %231 = vector.extract_strided_slice %211 {offsets = [0, 512], sizes = [1, 256], strides = [1, 1]} : vector<1x768xf32> to vector<1x256xf32>
    %232 = arith.addf %231, %3 : vector<1x256xf32>
    %233 = arith.mulf %221, %232 : vector<1x256xf32>
    %234 = arith.addf %230, %233 : vector<1x256xf32>
    %235 = math.tanh %234 : vector<1x256xf32>
    %cst_58 = arith.constant 1.000000e+00 : f32
    %236 = vector.broadcast %cst_58 : f32 to vector<1x256xf32>
    %237 = arith.subf %236, %229 : vector<1x256xf32>
    %238 = arith.mulf %237, %235 : vector<1x256xf32>
    %239 = arith.mulf %229, %206 : vector<1x256xf32>
    %240 = arith.addf %238, %239 : vector<1x256xf32>
    %241 = arith.index_cast %c6_i32 : i32 to index
    %c0_59 = arith.constant 0 : index
    %242 = vector.load %arg5[%241, %c0_59] : memref<8x256xf32, #tpu.memory_space<vmem>>, vector<1x256xf32>
    tpu.vector_store %arg5[%241, %c0_59], %240 {strides = array<i32>} : memref<8x256xf32, #tpu.memory_space<vmem>>, vector<1x256xf32>,
    %c7_i32 = arith.constant 7 : i32
    %243 = arith.truncf %240 : vector<1x256xf32> to vector<1x256xbf16>
    %c0_60 = arith.constant 0 : index
    %c0_61 = arith.constant 0 : index
    %244 = vector.load %arg2[%c0_60, %c0_61] : memref<256x768xbf16, #tpu.memory_space<vmem>>, vector<256x768xbf16>
    %cst_62 = arith.constant dense<0.000000e+00> : vector<1x768xf32>
    %245 = tpu.matmul %243, %244, %cst_62 {dimension_numbers = #tpu.dot_dimension_numbers<[1], [0], [0], [1], [0, 0, 1, 1], [], []>} : vector<1x256xbf16>, vector<256x768xbf16>, vector<1x768xf32> -> vector<1x768xf32>
    %246 = arith.index_cast %c7_i32 : i32 to index
    %c0_63 = arith.constant 0 : index
    %247 = vector.load %arg1[%246, %c0_63] : memref<8x768xf32, #tpu.memory_space<vmem>>, vector<1x768xf32>
    %248 = vector.extract_strided_slice %247 {offsets = [0, 0], sizes = [1, 256], strides = [1, 1]} : vector<1x768xf32> to vector<1x256xf32>
    %249 = vector.extract_strided_slice %245 {offsets = [0, 0], sizes = [1, 256], strides = [1, 1]} : vector<1x768xf32> to vector<1x256xf32>
    %250 = arith.addf %248, %249 : vector<1x256xf32>
    %251 = arith.negf %250 : vector<1x256xf32>
    %252 = math.exp %251 : vector<1x256xf32>
    %cst_64 = arith.constant 1.000000e+00 : f32
    %253 = vector.broadcast %cst_64 : f32 to vector<1x256xf32>
    %254 = arith.addf %253, %252 : vector<1x256xf32>
    %255 = arith.divf %253, %254 : vector<1x256xf32>
    %256 = vector.extract_strided_slice %247 {offsets = [0, 256], sizes = [1, 256], strides = [1, 1]} : vector<1x768xf32> to vector<1x256xf32>
    %257 = vector.extract_strided_slice %245 {offsets = [0, 256], sizes = [1, 256], strides = [1, 1]} : vector<1x768xf32> to vector<1x256xf32>
    %258 = arith.addf %256, %257 : vector<1x256xf32>
    %259 = arith.negf %258 : vector<1x256xf32>
    %260 = math.exp %259 : vector<1x256xf32>
    %cst_65 = arith.constant 1.000000e+00 : f32
    %261 = vector.broadcast %cst_65 : f32 to vector<1x256xf32>
    %262 = arith.addf %261, %260 : vector<1x256xf32>
    %263 = arith.divf %261, %262 : vector<1x256xf32>
    %264 = vector.extract_strided_slice %247 {offsets = [0, 512], sizes = [1, 256], strides = [1, 1]} : vector<1x768xf32> to vector<1x256xf32>
    %265 = vector.extract_strided_slice %245 {offsets = [0, 512], sizes = [1, 256], strides = [1, 1]} : vector<1x768xf32> to vector<1x256xf32>
    %266 = arith.addf %265, %3 : vector<1x256xf32>
    %267 = arith.mulf %255, %266 : vector<1x256xf32>
    %268 = arith.addf %264, %267 : vector<1x256xf32>
    %269 = math.tanh %268 : vector<1x256xf32>
    %cst_66 = arith.constant 1.000000e+00 : f32
    %270 = vector.broadcast %cst_66 : f32 to vector<1x256xf32>
    %271 = arith.subf %270, %263 : vector<1x256xf32>
    %272 = arith.mulf %271, %269 : vector<1x256xf32>
    %273 = arith.mulf %263, %240 : vector<1x256xf32>
    %274 = arith.addf %272, %273 : vector<1x256xf32>
    %275 = arith.index_cast %c7_i32 : i32 to index
    %c0_67 = arith.constant 0 : index
    %276 = vector.load %arg5[%275, %c0_67] : memref<8x256xf32, #tpu.memory_space<vmem>>, vector<1x256xf32>
    tpu.vector_store %arg5[%275, %c0_67], %274 {strides = array<i32>} : memref<8x256xf32, #tpu.memory_space<vmem>>, vector<1x256xf32>,
    %c8_i32 = arith.constant 8 : i32
    %c0_68 = arith.constant 0 : index
    %c0_69 = arith.constant 0 : index
    %277 = vector.load %arg6[%c0_68, %c0_69] : memref<1x256xf32, #tpu.memory_space<vmem>>, vector<1x256xf32>
    tpu.vector_store %arg6[%c0_68, %c0_69], %274 {strides = array<i32>} : memref<1x256xf32, #tpu.memory_space<vmem>>, vector<1x256xf32>,
    return
  }
  func.func @transform_0(%arg0: i32) -> (i32, i32) {
    %c0_i32 = arith.constant 0 : i32
    %c0_i32_0 = arith.constant 0 : i32
    return %arg0, %c0_i32 : i32, i32
  }
  func.func @transform_1(%arg0: i32) -> (i32, i32) {
    %c0_i32 = arith.constant 0 : i32
    %c0_i32_0 = arith.constant 0 : i32
    %c0_i32_1 = arith.constant 0 : i32
    return %c0_i32, %c0_i32_0 : i32, i32
  }
  func.func @transform_2(%arg0: i32) -> (i32, i32) {
    %c0_i32 = arith.constant 0 : i32
    %c0_i32_0 = arith.constant 0 : i32
    %c0_i32_1 = arith.constant 0 : i32
    return %c0_i32, %c0_i32_0 : i32, i32
  }
  func.func @transform_3(%arg0: i32) -> (i32, i32) {
    %c0_i32 = arith.constant 0 : i32
    %c0_i32_0 = arith.constant 0 : i32
    %c0_i32_1 = arith.constant 0 : i32
    return %c0_i32, %c0_i32_0 : i32, i32
  }
  func.func @transform_4(%arg0: i32) -> (i32, i32) {
    %c0_i32 = arith.constant 0 : i32
    %c0_i32_0 = arith.constant 0 : i32
    return %arg0, %c0_i32 : i32, i32
  }
}

</mosaic_0001>

<llo_original>
// kernel: encoder_rnn_forward.1
$region0: #{encoder_rnn_forward.1}
  #allocation0 [shape = 'u32[]', space=smem, size = 0x4, offset = 0x4, fixed_abs, tag = 'smem constant byte address 0x4 - core index']
  #allocation1 [shape = 'u32[144,128]{1,0:T(1,128)}', space=vmem, size = 0x12000, scoped, tag = 'internal scratch']
  #allocation2 [shape = 'f32[1,256]{1,0:T(1,128)}', space=vmem, size = 0x400, scoped, tag = 'scratch operand']
  %s0 = inlined_call_operand.vmem [shape: f32[32,768], index: 0, kind: input, shape index: {}]
  %s1 = inlined_call_operand.vmem [shape: bf16[256,768], index: 1, kind: input, shape index: {}]
  %s2 = inlined_call_operand.vmem [shape: f32[1,256], index: 2, kind: input, shape index: {}]
  %s3 = inlined_call_operand.vmem [shape: f32[1,256], index: 3, kind: input, shape index: {}]
  %s4 = inlined_call_operand.vmem [shape: f32[32,256], index: 4, kind: output, shape index: {}]
  %s5 = sld [smem:[#allocation0]]
  $region53: #{encoder_rnn_forward.1} parent=0
    _
  %s7 = ssub.s32 1, %s5
  %s8 = scalar_select 0, %s7, %s5
  loop: start=0, step=1, limit=6
  $region2: #{encoder_rnn_forward.1} parent=0 // loop_pre_header
    _
  $region3: #{encoder_rnn_forward.1} parent=0 // loop_header
    %s10 = sphi 0, %s14
    %p11 = scmp.ge.s32.totalorder %s10, 6
    %s20 = sphi 0, %s22
    %s23 = sphi 0, %s20
    %s24 = sphi 0, %s23
    %s40 = sphi 0, %s24
    %s44 = sphi 0, %s44
    %s46 = sphi 0, %s44
    %s47 = sphi 0, %s46
    %s61 = sphi 0, %s47
    %s65 = sphi 0, %s65
    %s67 = sphi 0, %s65
    %s68 = sphi 0, %s67
    %s82 = sphi 0, %s68
    %s86 = sphi 0, %s86
    %s88 = sphi 0, %s86
    %s89 = sphi 0, %s88
    %s103 = sphi 0, %s89
    %s109 = sphi 0, %s111
    %s112 = sphi 0, %s109
    %s113 = sphi 0, %s112
    %s129 = sphi 0, %s113
  $region4: #{encoder_rnn_forward.1} parent=0 // loop_header_branch
    %13 = sbr.rel (%p11) target = $region8
  $region5: #{encoder_rnn_forward.1} parent=0 // loop_body
    %s15 = ssub.s32 %s10, 1
    %s16 = ssub.s32 %s10, 2
    %s17 = sadd.s32 %s10, 1
    %s18 = ssub.s32 %s10, %s17
    %p19 = scmp.eq.s32.totalorder %s18, 0
    %s21 = sadd.s32 %s20, 1
    %s22 = scalar_select %p19, %s20, %s21
    %p25 = pneg %p19
    %p26 = scmp.eq.s32.totalorder %s10, 3
    %p27 = por %p25, %p26
    %p28 = scmp.ne.s32.totalorder %s20, %s23
    %p29 = scmp.eq.s32.totalorder %s10, 0
    %p30 = por %p28, %p29
    %p31 = scmp.ne.s32.totalorder %s20, %s23
    %p32 = scmp.eq.s32.totalorder %s15, 3
    %p33 = por %p31, %p32
    %p34 = scmp.ne.s32.totalorder %s23, %s24
    %p35 = scmp.eq.s32.totalorder %s15, 0
    %p36 = por %p34, %p35
    %p37 = scmp.ne.s32.totalorder %s23, %s24
    %p38 = scmp.eq.s32.totalorder %s16, 3
    %p39 = por %p37, %p38
    %p41 = scmp.ne.s32.totalorder %s24, %s40
    %p42 = scmp.eq.s32.totalorder %s16, 0
    %p43 = por %p41, %p42
    %s45 = sadd.s32 %s44, 1
    %p48 = scmp.eq.s32.totalorder %s10, 3
    %p49 = scmp.ne.s32.totalorder %s44, %s46
    %p50 = scmp.eq.s32.totalorder %s10, 0
    %p51 = por %p49, %p50
    %p52 = scmp.ne.s32.totalorder %s44, %s46
    %p53 = scmp.eq.s32.totalorder %s15, 3
    %p54 = por %p52, %p53
    %p55 = scmp.ne.s32.totalorder %s46, %s47
    %p56 = scmp.eq.s32.totalorder %s15, 0
    %p57 = por %p55, %p56
    %p58 = scmp.ne.s32.totalorder %s46, %s47
    %p59 = scmp.eq.s32.totalorder %s16, 3
    %p60 = por %p58, %p59
    %p62 = scmp.ne.s32.totalorder %s47, %s61
    %p63 = scmp.eq.s32.totalorder %s16, 0
    %p64 = por %p62, %p63
    %s66 = sadd.s32 %s65, 1
    %p69 = scmp.eq.s32.totalorder %s10, 3
    %p70 = scmp.ne.s32.totalorder %s65, %s67
    %p71 = scmp.eq.s32.totalorder %s10, 0
    %p72 = por %p70, %p71
    %p73 = scmp.ne.s32.totalorder %s65, %s67
    %p74 = scmp.eq.s32.totalorder %s15, 3
    %p75 = por %p73, %p74
    %p76 = scmp.ne.s32.totalorder %s67, %s68
    %p77 = scmp.eq.s32.totalorder %s15, 0
    %p78 = por %p76, %p77
    %p79 = scmp.ne.s32.totalorder %s67, %s68
    %p80 = scmp.eq.s32.totalorder %s16, 3
    %p81 = por %p79, %p80
    %p83 = scmp.ne.s32.totalorder %s68, %s82
    %p84 = scmp.eq.s32.totalorder %s16, 0
    %p85 = por %p83, %p84
    %s87 = sadd.s32 %s86, 1
    %p90 = scmp.eq.s32.totalorder %s10, 3
    %p91 = scmp.ne.s32.totalorder %s86, %s88
    %p92 = scmp.eq.s32.totalorder %s10, 0
    %p93 = por %p91, %p92
    %p94 = scmp.ne.s32.totalorder %s86, %s88
    %p95 = scmp.eq.s32.totalorder %s15, 3
    %p96 = por %p94, %p95
    %p97 = scmp.ne.s32.totalorder %s88, %s89
    %p98 = scmp.eq.s32.totalorder %s15, 0
    %p99 = por %p97, %p98
    %p100 = scmp.ne.s32.totalorder %s88, %s89
    %p101 = scmp.eq.s32.totalorder %s16, 3
    %p102 = por %p100, %p101
    %p104 = scmp.ne.s32.totalorder %s89, %s103
    %p105 = scmp.eq.s32.totalorder %s16, 0
    %p106 = por %p104, %p105
    %s107 = ssub.s32 %s10, %s17
    %p108 = scmp.eq.s32.totalorder %s107, 0
    %s110 = sadd.s32 %s109, 1
    %s111 = scalar_select %p108, %s109, %s110
    %p114 = pneg %p108
    %p115 = scmp.eq.s32.totalorder %s10, 3
    %p116 = por %p114, %p115
    %p117 = scmp.ne.s32.totalorder %s109, %s112
    %p118 = scmp.eq.s32.totalorder %s10, 0
    %p119 = por %p117, %p118
    %p120 = scmp.ne.s32.totalorder %s109, %s112
    %p121 = scmp.eq.s32.totalorder %s15, 3
    %p122 = por %p120, %p121
    %p123 = scmp.ne.s32.totalorder %s112, %s113
    %p124 = scmp.eq.s32.totalorder %s15, 0
    %p125 = por %p123, %p124
    %p126 = scmp.ne.s32.totalorder %s112, %s113
    %p127 = scmp.eq.s32.totalorder %s16, 3
    %p128 = por %p126, %p127
    %p130 = scmp.ne.s32.totalorder %s113, %s129
    %p131 = scmp.eq.s32.totalorder %s16, 0
    %p132 = por %p130, %p131
    %p133 = scmp.le.s32.totalorder 1, %s10
    %p134 = scmp.lt.s32.totalorder %s10, 5
    %p135 = pnand %p133, %p134
    %p136 = pneg %p135
    // Predicated region
    $region9: #{encoder_rnn_forward.1} parent=5 // pred_check
      _
    $region10: #{encoder_rnn_forward.1} parent=5 // pred_check_branch
      %138 = sbr.rel (%p135) target = $region12
    $region11: #{encoder_rnn_forward.1} parent=5 // pred_region
      %s139 = ssub.s32 %s10, 1
      // Predicated region
      $region13: #{encoder_rnn_forward.1} parent=11 // pred_check
        %p140 = pneg %p57
      $region14: #{encoder_rnn_forward.1} parent=11 // pred_check_branch
        %142 = sbr.rel (%p140) target = $region16
      $region15: #{encoder_rnn_forward.1} parent=11 // pred_region
        _
      $region16: #{encoder_rnn_forward.1} parent=11 // pred_fallthru
        _
      // Predicated region
      $region17: #{encoder_rnn_forward.1} parent=11 // pred_check
        %p143 = pneg %p78
      $region18: #{encoder_rnn_forward.1} parent=11 // pred_check_branch
        %145 = sbr.rel (%p143) target = $region20
      $region19: #{encoder_rnn_forward.1} parent=11 // pred_region
        _
      $region20: #{encoder_rnn_forward.1} parent=11 // pred_fallthru
        _
      // Predicated region
      $region21: #{encoder_rnn_forward.1} parent=11 // pred_check
        %p146 = pneg %p99
      $region22: #{encoder_rnn_forward.1} parent=11 // pred_check_branch
        %148 = sbr.rel (%p146) target = $region24
      $region23: #{encoder_rnn_forward.1} parent=11 // pred_region
        _
      $region24: #{encoder_rnn_forward.1} parent=11 // pred_fallthru
        _
    $region12: #{encoder_rnn_forward.1} parent=5 // pred_fallthru
      _
    %p149 = scmp.lt.s32.totalorder %s10, 4
    // Predicated region
    $region25: #{encoder_rnn_forward.1} parent=5 // pred_check
      %p150 = pneg %p149
    $region26: #{encoder_rnn_forward.1} parent=5 // pred_check_branch
      %152 = sbr.rel (%p150) target = $region28
    $region27: #{encoder_rnn_forward.1} parent=5 // pred_region
      // Predicated region
      $region29: #{encoder_rnn_forward.1} parent=27 // pred_check
        %p153 = pneg %p30
      $region30: #{encoder_rnn_forward.1} parent=27 // pred_check_branch
        %155 = sbr.rel (%p153) target = $region32
      $region31: #{encoder_rnn_forward.1} parent=27 // pred_region
        %p156 = scmp.lt.s32.totalorder %s10, 3
        %s157 = scalar_select %p156, %s10, 3
        %s158 = smul.addr %s157, 6
        %s159 = smul.addr %s158, 8
        %s160 = scalar_lea.vmem %s0, %s159
      $region32: #{encoder_rnn_forward.1} parent=27 // pred_fallthru
        _
    $region28: #{encoder_rnn_forward.1} parent=5 // pred_fallthru
      _
    %p161 = scmp.le.s32.totalorder 1, %s10
    %p162 = scmp.lt.s32.totalorder %s10, 5
    %p163 = pnand %p161, %p162
    %p164 = pneg %p163
    // Predicated region
    $region33: #{encoder_rnn_forward.1} parent=5 // pred_check
      _
    $region34: #{encoder_rnn_forward.1} parent=5 // pred_check_branch
      %166 = sbr.rel (%p163) target = $region36
    $region35: #{encoder_rnn_forward.1} parent=5 // pred_region
      %s167 = ssub.s32 %s10, 1
      %p168 = scmp.lt.s32.totalorder %s15, 3
      %s169 = scalar_select %p168, %s15, 3
      %s170 = smul.addr %s169, 6
      %s171 = smul.addr %s170, 8
      %s172 = scalar_lea.vmem %s0, %s171
      %p173 = pneg %p36
      %p174 = pneg %p33
      %p175 = pneg %p57
      %p176 = pneg %p54
      %p177 = pneg %p78
      %p178 = pneg %p75
      %p179 = pneg %p99
      %p180 = pneg %p96
      %p181 = pneg %p125
      %p182 = pneg %p122
      %p183 = scmp.lt.s32.totalorder %s15, 3
      %s184 = scalar_select %p183, %s15, 3
      %s185 = smul.addr %s184, 2
      %s186 = smul.addr %s185, 8
      %s187 = scalar_lea.vmem %s4, %s186
      %p188 = scmp.lt.s32.totalorder %s15, 3
      %s189 = scalar_select %p188, %s15, 3
      %s190 = smul.addr %s189, 6
      %s191 = smul.addr %s190, 8
      %s192 = scalar_lea.vmem %s0, %s191
      %p193 = scmp.lt.s32.totalorder %s15, 3
      %s194 = scalar_select %p193, %s15, 3
      %s195 = smul.addr %s194, 2
      %s196 = smul.addr %s195, 8
      %s197 = scalar_lea.vmem %s4, %s196
      %p198 = scmp.eq.s32.totalorder %s15, 0
      // Predicated region
      $region37: #{encoder_rnn_forward.1} parent=35 // pred_check
        %p199 = pneg %p198
      $region38: #{encoder_rnn_forward.1} parent=35 // pred_check_branch
        %201 = sbr.rel (%p199) target = $region40
      $region39: #{encoder_rnn_forward.1} parent=35 // pred_region
        %v202 = vld [vmem:[%s3] sm:$0x3]
        %v203 = vlaneseq
        %vm204 = vcmp.ge.s32.totalorder %v203, 0
        %vm205 = vcmp.lt.s32.totalorder %v203, 256
        %vm206 = vmand %vm204, %vm205
        %207 = vst.msk [vmem:[#allocation2] sm:$0x3] %vm206, %v202
      $region40: #{encoder_rnn_forward.1} parent=35 // pred_fallthru
        _
      %v208 = vld [vmem:[%s2] sm:$0x3]
      %v209 = vld [vmem:[#allocation2] sm:$0x3]
      %v211 = vlaneseq
      %v212 = vshrl.u32 %v211, 7
      %v213 = vsub.s32 0, %v212
      %v214 = vrot.slane %v209, %v213
      %v215 = vlaneseq
      %v216 = vshrl.u32 %v215, 7
      %v217 = vsub.s32 1, %v216
      %v218 = vrot.slane %v209, %v217
      %v221 = vpack.c.bf16 %v214, %v214
      %v222 = vpack.c.bf16 %v218, %v218
      %v223 = vld [vmem:[%s1] sm:$0xff]
      %v224 = vld [vmem:[%s1 + $0x8] sm:$0xff]
      %v225 = vld [vmem:[%s1 + $0x10] sm:$0xff]
      %v226 = vld [vmem:[%s1 + $0x18] sm:$0xff]
      %v227 = vld [vmem:[%s1 + $0x20] sm:$0xff]
      %v228 = vld [vmem:[%s1 + $0x28] sm:$0xff]
      %v229 = vld [vmem:[%s1 + $0x30] sm:$0xff]
      %v230 = vld [vmem:[%s1 + $0x38] sm:$0xff]
      %v231 = vld [vmem:[%s1 + $0x40] sm:$0xff]
      %v232 = vld [vmem:[%s1 + $0x48] sm:$0xff]
      %v233 = vld [vmem:[%s1 + $0x50] sm:$0xff]
      %v234 = vld [vmem:[%s1 + $0x58] sm:$0xff]
      %v235 = vld [vmem:[%s1 + $0x60] sm:$0xff]
      %v236 = vld [vmem:[%s1 + $0x68] sm:$0xff]
      %v237 = vld [vmem:[%s1 + $0x70] sm:$0xff]
      %v238 = vld [vmem:[%s1 + $0x78] sm:$0xff]
      %v239 = vld [vmem:[%s1 + $0x80] sm:$0xff]
      %v240 = vld [vmem:[%s1 + $0x88] sm:$0xff]
      %v241 = vld [vmem:[%s1 + $0x90] sm:$0xff]
      %v242 = vld [vmem:[%s1 + $0x98] sm:$0xff]
      %v243 = vld [vmem:[%s1 + $0xa0] sm:$0xff]
      %v244 = vld [vmem:[%s1 + $0xa8] sm:$0xff]
      %v245 = vld [vmem:[%s1 + $0xb0] sm:$0xff]
      %v246 = vld [vmem:[%s1 + $0xb8] sm:$0xff]
      %v247 = vld [vmem:[%s1 + $0xc0] sm:$0xff]
      %v248 = vld [vmem:[%s1 + $0xc8] sm:$0xff]
      %v249 = vld [vmem:[%s1 + $0xd0] sm:$0xff]
      %v250 = vld [vmem:[%s1 + $0xd8] sm:$0xff]
      %v251 = vld [vmem:[%s1 + $0xe0] sm:$0xff]
      %v252 = vld [vmem:[%s1 + $0xe8] sm:$0xff]
      %v253 = vld [vmem:[%s1 + $0xf0] sm:$0xff]
      %v254 = vld [vmem:[%s1 + $0xf8] sm:$0xff]
      %v255 = vld [vmem:[%s1 + $0x100] sm:$0xff]
      %v256 = vld [vmem:[%s1 + $0x108] sm:$0xff]
      %v257 = vld [vmem:[%s1 + $0x110] sm:$0xff]
      %v258 = vld [vmem:[%s1 + $0x118] sm:$0xff]
      %v259 = vld [vmem:[%s1 + $0x120] sm:$0xff]
      %v260 = vld [vmem:[%s1 + $0x128] sm:$0xff]
      %v261 = vld [vmem:[%s1 + $0x130] sm:$0xff]
      %v262 = vld [vmem:[%s1 + $0x138] sm:$0xff]
      %v263 = vld [vmem:[%s1 + $0x140] sm:$0xff]
      %v264 = vld [vmem:[%s1 + $0x148] sm:$0xff]
      %v265 = vld [vmem:[%s1 + $0x150] sm:$0xff]
      %v266 = vld [vmem:[%s1 + $0x158] sm:$0xff]
      %v267 = vld [vmem:[%s1 + $0x160] sm:$0xff]
      %v268 = vld [vmem:[%s1 + $0x168] sm:$0xff]
      %v269 = vld [vmem:[%s1 + $0x170] sm:$0xff]
      %v270 = vld [vmem:[%s1 + $0x178] sm:$0xff]
      %v271 = vld [vmem:[%s1 + $0x180] sm:$0xff]
      %v272 = vld [vmem:[%s1 + $0x188] sm:$0xff]
      %v273 = vld [vmem:[%s1 + $0x190] sm:$0xff]
      %v274 = vld [vmem:[%s1 + $0x198] sm:$0xff]
      %v275 = vld [vmem:[%s1 + $0x1a0] sm:$0xff]
      %v276 = vld [vmem:[%s1 + $0x1a8] sm:$0xff]
      %v277 = vld [vmem:[%s1 + $0x1b0] sm:$0xff]
      %v278 = vld [vmem:[%s1 + $0x1b8] sm:$0xff]
      %v279 = vld [vmem:[%s1 + $0x1c0] sm:$0xff]
      %v280 = vld [vmem:[%s1 + $0x1c8] sm:$0xff]
      %v281 = vld [vmem:[%s1 + $0x1d0] sm:$0xff]
      %v282 = vld [vmem:[%s1 + $0x1d8] sm:$0xff]
      %v283 = vld [vmem:[%s1 + $0x1e0] sm:$0xff]
      %v284 = vld [vmem:[%s1 + $0x1e8] sm:$0xff]
      %v285 = vld [vmem:[%s1 + $0x1f0] sm:$0xff]
      %v286 = vld [vmem:[%s1 + $0x1f8] sm:$0xff]
      %v287 = vld [vmem:[%s1 + $0x200] sm:$0xff]
      %v288 = vld [vmem:[%s1 + $0x208] sm:$0xff]
      %v289 = vld [vmem:[%s1 + $0x210] sm:$0xff]
      %v290 = vld [vmem:[%s1 + $0x218] sm:$0xff]
      %v291 = vld [vmem:[%s1 + $0x220] sm:$0xff]
      %v292 = vld [vmem:[%s1 + $0x228] sm:$0xff]
      %v293 = vld [vmem:[%s1 + $0x230] sm:$0xff]
      %v294 = vld [vmem:[%s1 + $0x238] sm:$0xff]
      %v295 = vld [vmem:[%s1 + $0x240] sm:$0xff]
      %v296 = vld [vmem:[%s1 + $0x248] sm:$0xff]
      %v297 = vld [vmem:[%s1 + $0x250] sm:$0xff]
      %v298 = vld [vmem:[%s1 + $0x258] sm:$0xff]
      %v299 = vld [vmem:[%s1 + $0x260] sm:$0xff]
      %v300 = vld [vmem:[%s1 + $0x268] sm:$0xff]
      %v301 = vld [vmem:[%s1 + $0x270] sm:$0xff]
      %v302 = vld [vmem:[%s1 + $0x278] sm:$0xff]
      %v303 = vld [vmem:[%s1 + $0x280] sm:$0xff]
      %v304 = vld [vmem:[%s1 + $0x288] sm:$0xff]
      %v305 = vld [vmem:[%s1 + $0x290] sm:$0xff]
      %v306 = vld [vmem:[%s1 + $0x298] sm:$0xff]
      %v307 = vld [vmem:[%s1 + $0x2a0] sm:$0xff]
      %v308 = vld [vmem:[%s1 + $0x2a8] sm:$0xff]
      %v309 = vld [vmem:[%s1 + $0x2b0] sm:$0xff]
      %v310 = vld [vmem:[%s1 + $0x2b8] sm:$0xff]
      %v311 = vld [vmem:[%s1 + $0x2c0] sm:$0xff]
      %v312 = vld [vmem:[%s1 + $0x2c8] sm:$0xff]
      %v313 = vld [vmem:[%s1 + $0x2d0] sm:$0xff]
      %v314 = vld [vmem:[%s1 + $0x2d8] sm:$0xff]
      %v315 = vld [vmem:[%s1 + $0x2e0] sm:$0xff]
      %v316 = vld [vmem:[%s1 + $0x2e8] sm:$0xff]
      %v317 = vld [vmem:[%s1 + $0x2f0] sm:$0xff]
      %v318 = vld [vmem:[%s1 + $0x2f8] sm:$0xff]
      %v415 = vunpack.c.l.b16 %v223
      %v416 = vunpack.c.h.b16 %v223
      %v417 = vunpack.c.l.b16 %v224
      %v418 = vunpack.c.h.b16 %v224
      %v419 = vunpack.c.l.b16 %v225
      %v420 = vunpack.c.h.b16 %v225
      %v421 = vunpack.c.l.b16 %v226
      %v422 = vunpack.c.h.b16 %v226
      %v423 = vunpack.c.l.b16 %v227
      %v424 = vunpack.c.h.b16 %v227
      %v425 = vunpack.c.l.b16 %v228
      %v426 = vunpack.c.h.b16 %v228
      %v427 = vunpack.c.l.b16 %v229
      %v428 = vunpack.c.h.b16 %v229
      %v429 = vunpack.c.l.b16 %v230
      %v430 = vunpack.c.h.b16 %v230
      %v431 = vunpack.c.l.b16 %v231
      %v432 = vunpack.c.h.b16 %v231
      %v433 = vunpack.c.l.b16 %v232
      %v434 = vunpack.c.h.b16 %v232
      %v435 = vunpack.c.l.b16 %v233
      %v436 = vunpack.c.h.b16 %v233
      %v437 = vunpack.c.l.b16 %v234
      %v438 = vunpack.c.h.b16 %v234
      %v439 = vunpack.c.l.b16 %v235
      %v440 = vunpack.c.h.b16 %v235
      %v441 = vunpack.c.l.b16 %v236
      %v442 = vunpack.c.h.b16 %v236
      %v443 = vunpack.c.l.b16 %v237
      %v444 = vunpack.c.h.b16 %v237
      %v445 = vunpack.c.l.b16 %v238
      %v446 = vunpack.c.h.b16 %v238
      %v447 = vunpack.c.l.b16 %v239
      %v448 = vunpack.c.h.b16 %v239
      %v449 = vunpack.c.l.b16 %v240
      %v450 = vunpack.c.h.b16 %v240
      %v451 = vunpack.c.l.b16 %v241
      %v452 = vunpack.c.h.b16 %v241
      %v453 = vunpack.c.l.b16 %v242
      %v454 = vunpack.c.h.b16 %v242
      %v455 = vunpack.c.l.b16 %v243
      %v456 = vunpack.c.h.b16 %v243
      %v457 = vunpack.c.l.b16 %v244
      %v458 = vunpack.c.h.b16 %v244
      %v459 = vunpack.c.l.b16 %v245
      %v460 = vunpack.c.h.b16 %v245
      %v461 = vunpack.c.l.b16 %v246
      %v462 = vunpack.c.h.b16 %v246
      %v463 = vunpack.c.l.b16 %v247
      %v464 = vunpack.c.h.b16 %v247
      %v465 = vunpack.c.l.b16 %v248
      %v466 = vunpack.c.h.b16 %v248
      %v467 = vunpack.c.l.b16 %v249
      %v468 = vunpack.c.h.b16 %v249
      %v469 = vunpack.c.l.b16 %v250
      %v470 = vunpack.c.h.b16 %v250
      %v471 = vunpack.c.l.b16 %v251
      %v472 = vunpack.c.h.b16 %v251
      %v473 = vunpack.c.l.b16 %v252
      %v474 = vunpack.c.h.b16 %v252
      %v475 = vunpack.c.l.b16 %v253
      %v476 = vunpack.c.h.b16 %v253
      %v477 = vunpack.c.l.b16 %v254
      %v478 = vunpack.c.h.b16 %v254
      %v479 = vunpack.c.l.b16 %v255
      %v480 = vunpack.c.h.b16 %v255
      %v481 = vunpack.c.l.b16 %v256
      %v482 = vunpack.c.h.b16 %v256
      %v483 = vunpack.c.l.b16 %v257
      %v484 = vunpack.c.h.b16 %v257
      %v485 = vunpack.c.l.b16 %v258
      %v486 = vunpack.c.h.b16 %v258
      %v487 = vunpack.c.l.b16 %v259
      %v488 = vunpack.c.h.b16 %v259
      %v489 = vunpack.c.l.b16 %v260
      %v490 = vunpack.c.h.b16 %v260
      %v491 = vunpack.c.l.b16 %v261
      %v492 = vunpack.c.h.b16 %v261
      %v493 = vunpack.c.l.b16 %v262
      %v494 = vunpack.c.h.b16 %v262
      %v495 = vunpack.c.l.b16 %v263
      %v496 = vunpack.c.h.b16 %v263
      %v497 = vunpack.c.l.b16 %v264
      %v498 = vunpack.c.h.b16 %v264
      %v499 = vunpack.c.l.b16 %v265
      %v500 = vunpack.c.h.b16 %v265
      %v501 = vunpack.c.l.b16 %v266
      %v502 = vunpack.c.h.b16 %v266
      %v503 = vunpack.c.l.b16 %v267
      %v504 = vunpack.c.h.b16 %v267
      %v505 = vunpack.c.l.b16 %v268
      %v506 = vunpack.c.h.b16 %v268
      %v507 = vunpack.c.l.b16 %v269
      %v508 = vunpack.c.h.b16 %v269
      %v509 = vunpack.c.l.b16 %v270
      %v510 = vunpack.c.h.b16 %v270
      %v511 = vunpack.c.l.b16 %v271
      %v512 = vunpack.c.h.b16 %v271
      %v513 = vunpack.c.l.b16 %v272
      %v514 = vunpack.c.h.b16 %v272
      %v515 = vunpack.c.l.b16 %v273
      %v516 = vunpack.c.h.b16 %v273
      %v517 = vunpack.c.l.b16 %v274
      %v518 = vunpack.c.h.b16 %v274
      %v519 = vunpack.c.l.b16 %v275
      %v520 = vunpack.c.h.b16 %v275
      %v521 = vunpack.c.l.b16 %v276
      %v522 = vunpack.c.h.b16 %v276
      %v523 = vunpack.c.l.b16 %v277
      %v524 = vunpack.c.h.b16 %v277
      %v525 = vunpack.c.l.b16 %v278
      %v526 = vunpack.c.h.b16 %v278
      %v527 = vunpack.c.l.b16 %v279
      %v528 = vunpack.c.h.b16 %v279
      %v529 = vunpack.c.l.b16 %v280
      %v530 = vunpack.c.h.b16 %v280
      %v531 = vunpack.c.l.b16 %v281
      %v532 = vunpack.c.h.b16 %v281
      %v533 = vunpack.c.l.b16 %v282
      %v534 = vunpack.c.h.b16 %v282
      %v535 = vunpack.c.l.b16 %v283
      %v536 = vunpack.c.h.b16 %v283
      %v537 = vunpack.c.l.b16 %v284
      %v538 = vunpack.c.h.b16 %v284
      %v539 = vunpack.c.l.b16 %v285
      %v540 = vunpack.c.h.b16 %v285
      %v541 = vunpack.c.l.b16 %v286
      %v542 = vunpack.c.h.b16 %v286
      %v543 = vunpack.c.l.b16 %v287
      %v544 = vunpack.c.h.b16 %v287
      %v545 = vunpack.c.l.b16 %v288
      %v546 = vunpack.c.h.b16 %v288
      %v547 = vunpack.c.l.b16 %v289
      %v548 = vunpack.c.h.b16 %v289
      %v549 = vunpack.c.l.b16 %v290
      %v550 = vunpack.c.h.b16 %v290
      %v551 = vunpack.c.l.b16 %v291
      %v552 = vunpack.c.h.b16 %v291
      %v553 = vunpack.c.l.b16 %v292
      %v554 = vunpack.c.h.b16 %v292
      %v555 = vunpack.c.l.b16 %v293
      %v556 = vunpack.c.h.b16 %v293
      %v557 = vunpack.c.l.b16 %v294
      %v558 = vunpack.c.h.b16 %v294
      %v559 = vunpack.c.l.b16 %v295
      %v560 = vunpack.c.h.b16 %v295
      %v561 = vunpack.c.l.b16 %v296
      %v562 = vunpack.c.h.b16 %v296
      %v563 = vunpack.c.l.b16 %v297
      %v564 = vunpack.c.h.b16 %v297
      %v565 = vunpack.c.l.b16 %v298
      %v566 = vunpack.c.h.b16 %v298
      %v567 = vunpack.c.l.b16 %v299
      %v568 = vunpack.c.h.b16 %v299
      %v569 = vunpack.c.l.b16 %v300
      %v570 = vunpack.c.h.b16 %v300
      %v571 = vunpack.c.l.b16 %v301
      %v572 = vunpack.c.h.b16 %v301
      %v573 = vunpack.c.l.b16 %v302
      %v574 = vunpack.c.h.b16 %v302
      %v575 = vunpack.c.l.b16 %v303
      %v576 = vunpack.c.h.b16 %v303
      %v577 = vunpack.c.l.b16 %v304
      %v578 = vunpack.c.h.b16 %v304
      %v579 = vunpack.c.l.b16 %v305
      %v580 = vunpack.c.h.b16 %v305
      %v581 = vunpack.c.l.b16 %v306
      %v582 = vunpack.c.h.b16 %v306
      %v583 = vunpack.c.l.b16 %v307
      %v584 = vunpack.c.h.b16 %v307
      %v585 = vunpack.c.l.b16 %v308
      %v586 = vunpack.c.h.b16 %v308
      %v587 = vunpack.c.l.b16 %v309
      %v588 = vunpack.c.h.b16 %v309
      %v589 = vunpack.c.l.b16 %v310
      %v590 = vunpack.c.h.b16 %v310
      %v591 = vunpack.c.l.b16 %v311
      %v592 = vunpack.c.h.b16 %v311
      %v593 = vunpack.c.l.b16 %v312
      %v594 = vunpack.c.h.b16 %v312
      %v595 = vunpack.c.l.b16 %v313
      %v596 = vunpack.c.h.b16 %v313
      %v597 = vunpack.c.l.b16 %v314
      %v598 = vunpack.c.h.b16 %v314
      %v599 = vunpack.c.l.b16 %v315
      %v600 = vunpack.c.h.b16 %v315
      %v601 = vunpack.c.l.b16 %v316
      %v602 = vunpack.c.h.b16 %v316
      %v603 = vunpack.c.l.b16 %v317
      %v604 = vunpack.c.h.b16 %v317
      %v605 = vunpack.c.l.b16 %v318
      %v606 = vunpack.c.h.b16 %v318
      %v607 = vpack.c.b16 %v421, %v415
      %v608 = vpack.c.b16 %v422, %v416
      %v609 = vpack.c.b16 %v423, %v417
      %v610 = vpack.c.b16 %v424, %v418
      %v611 = vpack.c.b16 %v425, %v419
      %v612 = vpack.c.b16 %v426, %v420
      %v613 = vpack.c.b16 %v433, %v427
      %v614 = vpack.c.b16 %v434, %v428
      %v615 = vpack.c.b16 %v435, %v429
      %v616 = vpack.c.b16 %v436, %v430
      %v617 = vpack.c.b16 %v437, %v431
      %v618 = vpack.c.b16 %v438, %v432
      %v619 = vpack.c.b16 %v445, %v439
      %v620 = vpack.c.b16 %v446, %v440
      %v621 = vpack.c.b16 %v447, %v441
      %v622 = vpack.c.b16 %v448, %v442
      %v623 = vpack.c.b16 %v449, %v443
      %v624 = vpack.c.b16 %v450, %v444
      %v625 = vpack.c.b16 %v457, %v451
      %v626 = vpack.c.b16 %v458, %v452
      %v627 = vpack.c.b16 %v459, %v453
      %v628 = vpack.c.b16 %v460, %v454
      %v629 = vpack.c.b16 %v461, %v455
      %v630 = vpack.c.b16 %v462, %v456
      %v631 = vpack.c.b16 %v469, %v463
      %v632 = vpack.c.b16 %v470, %v464
      %v633 = vpack.c.b16 %v471, %v465
      %v634 = vpack.c.b16 %v472, %v466
      %v635 = vpack.c.b16 %v473, %v467
      %v636 = vpack.c.b16 %v474, %v468
      %v637 = vpack.c.b16 %v481, %v475
      %v638 = vpack.c.b16 %v482, %v476
      %v639 = vpack.c.b16 %v483, %v477
      %v640 = vpack.c.b16 %v484, %v478
      %v641 = vpack.c.b16 %v485, %v479
      %v642 = vpack.c.b16 %v486, %v480
      %v643 = vpack.c.b16 %v493, %v487
      %v644 = vpack.c.b16 %v494, %v488
      %v645 = vpack.c.b16 %v495, %v489
      %v646 = vpack.c.b16 %v496, %v490
      %v647 = vpack.c.b16 %v497, %v491
      %v648 = vpack.c.b16 %v498, %v492
      %v649 = vpack.c.b16 %v505, %v499
      %v650 = vpack.c.b16 %v506, %v500
      %v651 = vpack.c.b16 %v507, %v501
      %v652 = vpack.c.b16 %v508, %v502
      %v653 = vpack.c.b16 %v509, %v503
      %v654 = vpack.c.b16 %v510, %v504
      %v655 = vpack.c.b16 %v517, %v511
      %v656 = vpack.c.b16 %v518, %v512
      %v657 = vpack.c.b16 %v519, %v513
      %v658 = vpack.c.b16 %v520, %v514
      %v659 = vpack.c.b16 %v521, %v515
      %v660 = vpack.c.b16 %v522, %v516
      %v661 = vpack.c.b16 %v529, %v523
      %v662 = vpack.c.b16 %v530, %v524
      %v663 = vpack.c.b16 %v531, %v525
      %v664 = vpack.c.b16 %v532, %v526
      %v665 = vpack.c.b16 %v533, %v527
      %v666 = vpack.c.b16 %v534, %v528
      %v667 = vpack.c.b16 %v541, %v535
      %v668 = vpack.c.b16 %v542, %v536
      %v669 = vpack.c.b16 %v543, %v537
      %v670 = vpack.c.b16 %v544, %v538
      %v671 = vpack.c.b16 %v545, %v539
      %v672 = vpack.c.b16 %v546, %v540
      %v673 = vpack.c.b16 %v553, %v547
      %v674 = vpack.c.b16 %v554, %v548
      %v675 = vpack.c.b16 %v555, %v549
      %v676 = vpack.c.b16 %v556, %v550
      %v677 = vpack.c.b16 %v557, %v551
      %v678 = vpack.c.b16 %v558, %v552
      %v679 = vpack.c.b16 %v565, %v559
      %v680 = vpack.c.b16 %v566, %v560
      %v681 = vpack.c.b16 %v567, %v561
      %v682 = vpack.c.b16 %v568, %v562
      %v683 = vpack.c.b16 %v569, %v563
      %v684 = vpack.c.b16 %v570, %v564
      %v685 = vpack.c.b16 %v577, %v571
      %v686 = vpack.c.b16 %v578, %v572
      %v687 = vpack.c.b16 %v579, %v573
      %v688 = vpack.c.b16 %v580, %v574
      %v689 = vpack.c.b16 %v581, %v575
      %v690 = vpack.c.b16 %v582, %v576
      %v691 = vpack.c.b16 %v589, %v583
      %v692 = vpack.c.b16 %v590, %v584
      %v693 = vpack.c.b16 %v591, %v585
      %v694 = vpack.c.b16 %v592, %v586
      %v695 = vpack.c.b16 %v593, %v587
      %v696 = vpack.c.b16 %v594, %v588
      %v697 = vpack.c.b16 %v601, %v595
      %v698 = vpack.c.b16 %v602, %v596
      %v699 = vpack.c.b16 %v603, %v597
      %v700 = vpack.c.b16 %v604, %v598
      %v701 = vpack.c.b16 %v605, %v599
      %v702 = vpack.c.b16 %v606, %v600
      %799 = vmatprep.subr.bf16.mxu0 %v650
      %800 = vmatpush1.bf16.msra.mxu0 %v649
      %801 = vmatprep.subr.bf16.mxu0 %v644
      %802 = vmatpush1.bf16.msra.mxu0 %v643
      %803 = vmatprep.subr.bf16.mxu0 %v638
      %804 = vmatpush1.bf16.msra.mxu0 %v637
      %805 = vmatprep.subr.bf16.mxu0 %v632
      %806 = vmatpush1.bf16.msra.mxu0 %v631
      %807 = vmatprep.subr.bf16.mxu0 %v626
      %808 = vmatpush1.bf16.msra.mxu0 %v625
      %809 = vmatprep.subr.bf16.mxu0 %v620
      %810 = vmatpush1.bf16.msra.mxu0 %v619
      %811 = vmatprep.subr.bf16.mxu0 %v614
      %812 = vmatpush1.bf16.msra.mxu0 %v613
      %813 = vmatprep.subr.bf16.mxu0 %v608
      %814 = vmatpush1.bf16.msra.mxu0 %v607
      %815 = vmatprep.subr.bf16.mxu0 %v698
      %816 = vmatpush2.bf16.msra.mxu0 %v697
      %817 = vmatprep.subr.bf16.mxu0 %v692
      %818 = vmatpush2.bf16.msra.mxu0 %v691
      %819 = vmatprep.subr.bf16.mxu0 %v686
      %820 = vmatpush2.bf16.msra.mxu0 %v685
      %821 = vmatprep.subr.bf16.mxu0 %v680
      %822 = vmatpush2.bf16.msra.mxu0 %v679
      %823 = vmatprep.subr.bf16.mxu0 %v674
      %824 = vmatpush2.bf16.msra.mxu0 %v673
      %825 = vmatprep.subr.bf16.mxu0 %v668
      %826 = vmatpush2.bf16.msra.mxu0 %v667
      %827 = vmatprep.subr.bf16.mxu0 %v662
      %828 = vmatpush2.bf16.msra.mxu0 %v661
      %829 = vmatprep.subr.bf16.mxu0 %v656
      %830 = vmatpush2.bf16.msra.mxu0 %v655
      %831 = vmatprep.mubr.bf16.mxu0 %v222
      %832 = vmatmul.mubr.bf16.gmra.mxu0 %v221
      %v833 = vpop.f32.mrf.mxu0
      %v834 = vadd.f32 0.0, %v833
      %v835 = vpop.f32.mrf.mxu0
      %v836 = vadd.f32 0.0, %v835
      %v837 = vpop.f32.mrf.mxu0
      %v838 = vpop.f32.mrf.mxu0
      %839 = vdwg.mxu0
      %840 = vmatprep.subr.bf16.mxu0 %v652
      %841 = vmatpush1.bf16.msra.mxu0 %v651
      %842 = vmatprep.subr.bf16.mxu0 %v646
      %843 = vmatpush1.bf16.msra.mxu0 %v645
      %844 = vmatprep.subr.bf16.mxu0 %v640
      %845 = vmatpush1.bf16.msra.mxu0 %v639
      %846 = vmatprep.subr.bf16.mxu0 %v634
      %847 = vmatpush1.bf16.msra.mxu0 %v633
      %848 = vmatprep.subr.bf16.mxu0 %v628
      %849 = vmatpush1.bf16.msra.mxu0 %v627
      %850 = vmatprep.subr.bf16.mxu0 %v622
      %851 = vmatpush1.bf16.msra.mxu0 %v621
      %852 = vmatprep.subr.bf16.mxu0 %v616
      %853 = vmatpush1.bf16.msra.mxu0 %v615
      %854 = vmatprep.subr.bf16.mxu0 %v610
      %855 = vmatpush1.bf16.msra.mxu0 %v609
      %856 = vmatprep.subr.bf16.mxu0 %v700
      %857 = vmatpush2.bf16.msra.mxu0 %v699
      %858 = vmatprep.subr.bf16.mxu0 %v694
      %859 = vmatpush2.bf16.msra.mxu0 %v693
      %860 = vmatprep.subr.bf16.mxu0 %v688
      %861 = vmatpush2.bf16.msra.mxu0 %v687
      %862 = vmatprep.subr.bf16.mxu0 %v682
      %863 = vmatpush2.bf16.msra.mxu0 %v681
      %864 = vmatprep.subr.bf16.mxu0 %v676
      %865 = vmatpush2.bf16.msra.mxu0 %v675
      %866 = vmatprep.subr.bf16.mxu0 %v670
      %867 = vmatpush2.bf16.msra.mxu0 %v669
      %868 = vmatprep.subr.bf16.mxu0 %v664
      %869 = vmatpush2.bf16.msra.mxu0 %v663
      %870 = vmatprep.subr.bf16.mxu0 %v658
      %871 = vmatpush2.bf16.msra.mxu0 %v657
      %872 = vmatprep.mubr.bf16.mxu0 %v222
      %873 = vmatmul.mubr.bf16.gmra.mxu0 %v221
      %v874 = vpop.f32.mrf.mxu0
      %v875 = vadd.f32 0.0, %v874
      %v876 = vpop.f32.mrf.mxu0
      %v877 = vadd.f32 0.0, %v876
      %v878 = vpop.f32.mrf.mxu0
      %v879 = vpop.f32.mrf.mxu0
      %880 = vdwg.mxu0
      %881 = vmatprep.subr.bf16.mxu0 %v654
      %882 = vmatpush1.bf16.msra.mxu0 %v653
      %883 = vmatprep.subr.bf16.mxu0 %v648
      %884 = vmatpush1.bf16.msra.mxu0 %v647
      %885 = vmatprep.subr.bf16.mxu0 %v642
      %886 = vmatpush1.bf16.msra.mxu0 %v641
      %887 = vmatprep.subr.bf16.mxu0 %v636
      %888 = vmatpush1.bf16.msra.mxu0 %v635
      %889 = vmatprep.subr.bf16.mxu0 %v630
      %890 = vmatpush1.bf16.msra.mxu0 %v629
      %891 = vmatprep.subr.bf16.mxu0 %v624
      %892 = vmatpush1.bf16.msra.mxu0 %v623
      %893 = vmatprep.subr.bf16.mxu0 %v618
      %894 = vmatpush1.bf16.msra.mxu0 %v617
      %895 = vmatprep.subr.bf16.mxu0 %v612
      %896 = vmatpush1.bf16.msra.mxu0 %v611
      %897 = vmatprep.subr.bf16.mxu0 %v702
      %898 = vmatpush2.bf16.msra.mxu0 %v701
      %899 = vmatprep.subr.bf16.mxu0 %v696
      %900 = vmatpush2.bf16.msra.mxu0 %v695
      %901 = vmatprep.subr.bf16.mxu0 %v690
      %902 = vmatpush2.bf16.msra.mxu0 %v689
      %903 = vmatprep.subr.bf16.mxu0 %v684
      %904 = vmatpush2.bf16.msra.mxu0 %v683
      %905 = vmatprep.subr.bf16.mxu0 %v678
      %906 = vmatpush2.bf16.msra.mxu0 %v677
      %907 = vmatprep.subr.bf16.mxu0 %v672
      %908 = vmatpush2.bf16.msra.mxu0 %v671
      %909 = vmatprep.subr.bf16.mxu0 %v666
      %910 = vmatpush2.bf16.msra.mxu0 %v665
      %911 = vmatprep.subr.bf16.mxu0 %v660
      %912 = vmatpush2.bf16.msra.mxu0 %v659
      %913 = vmatprep.mubr.bf16.mxu0 %v222
      %914 = vmatmul.mubr.bf16.gmra.mxu0 %v221
      %v915 = vpop.f32.mrf.mxu0
      %v916 = vadd.f32 0.0, %v915
      %v917 = vpop.f32.mrf.mxu0
      %v918 = vadd.f32 0.0, %v917
      %v919 = vpop.f32.mrf.mxu0
      %v920 = vpop.f32.mrf.mxu0
      %921 = vdwg.mxu0
      %v922 = vld [vmem:[%s192] ss:$8 sm:$0xf]
      %v923 = vld [vmem:[%s192] ss:$8 sm:$0x30]
      %v924 = vor.u32 %v922, %v923
      %v927 = vcombine.low %v834, %v836
      %v929 = vunpack.c.l.s4 1966171168
      %v930 = vunpack.c.0.s8 %v929
      %v931 = vlaneseq
      %v932 = vshrl.u32 %v931, 7
      %v933 = vsub.s32 %v930, %v932
      %v934 = vrot.slane %v927, %v933
      %v936 = vunpack.c.l.s4 1966171168
      %v937 = vunpack.c.0.s8 %v936
      %v938 = vlaneseq
      %v939 = vshrl.u32 %v938, 7
      %v940 = vsub.s32 %v937, %v939
      %v941 = vrot.slane %v934, %v940
      %v943 = vadd.f32 %v924, %v941
      %v944 = vxor.u32 %v943, 2147483648
      %v945 = vmul.f32 %v944, 1.442695
      %v946 = vpow.pop %v945
      %v947 = vadd.f32 %v946, 1.0
      %v948 = vrcp.pop %v947
      %v949 = vmul.f32 1.0, %v948
      %v951 = vrot.slane %v924, 2
      %v955 = vcombine.low %v875, %v877
      %v957 = vunpack.c.l.s4 1966171168
      %v958 = vunpack.c.0.s8 %v957
      %v959 = vlaneseq
      %v960 = vshrl.u32 %v959, 7
      %v961 = vsub.s32 %v958, %v960
      %v962 = vrot.slane %v955, %v961
      %v964 = vunpack.c.l.s4 1966171168
      %v965 = vunpack.c.0.s8 %v964
      %v966 = vlaneseq
      %v967 = vshrl.u32 %v966, 7
      %v968 = vsub.s32 %v965, %v967
      %v969 = vrot.slane %v962, %v968
      %v971 = vadd.f32 %v951, %v969
      %v972 = vxor.u32 %v971, 2147483648
      %v973 = vmul.f32 %v972, 1.442695
      %v974 = vpow.pop %v973
      %v975 = vadd.f32 %v974, 1.0
      %v976 = vrcp.pop %v975
      %v977 = vmul.f32 1.0, %v976
      %v979 = vlaneseq
      %v980 = vshrl.u32 %v979, 7
      %v981 = vsub.s32 0, %v980
      %v982 = vrot.slane %v208, %v981
      %v983 = vlaneseq
      %v984 = vshrl.u32 %v983, 7
      %v985 = vsub.s32 1, %v984
      %v986 = vrot.slane %v208, %v985
      %v989 = vadd.f32 %v916, %v982
      %v990 = vadd.f32 %v918, %v986
      %v993 = vcombine.low %v989, %v990
      %v995 = vunpack.c.l.s4 1966171168
      %v996 = vunpack.c.0.s8 %v995
      %v997 = vlaneseq
      %v998 = vshrl.u32 %v997, 7
      %v999 = vsub.s32 %v996, %v998
      %v1000 = vrot.slane %v993, %v999
      %v1002 = vunpack.c.l.s4 1966171168
      %v1003 = vunpack.c.0.s8 %v1002
      %v1004 = vlaneseq
      %v1005 = vshrl.u32 %v1004, 7
      %v1006 = vsub.s32 %v1003, %v1005
      %v1007 = vrot.slane %v1000, %v1006
      %v1009 = vmul.f32 %v949, %v1007
      %v1010 = vrot.slane %v924, 4
      %v1012 = vadd.f32 %v1010, %v1009
      %v1013 = vtanh.pop %v1012
      %v1014 = vsub.f32 1.0, %v977
      %v1015 = vmul.f32 %v1014, %v1013
      %v1016 = vmul.f32 %v977, %v209
      %v1017 = vadd.f32 %v1015, %v1016
      %v1018 = vlaneseq
      %vm1019 = vcmp.ge.s32.totalorder %v1018, 0
      %vm1020 = vcmp.lt.s32.totalorder %v1018, 256
      %vm1021 = vmand %vm1019, %vm1020
      %1022 = vst.msk [vmem:[%s197] ss:$8 sm:$0x3] %vm1021, %v1017
      %1023 = vst.msk [vmem:[%s197] ss:$8 sm:$0x0] %vm1021, %v1017
      %v1025 = vlaneseq
      %v1026 = vshrl.u32 %v1025, 7
      %v1027 = vsub.s32 0, %v1026
      %v1028 = vrot.slane %v1017, %v1027
      %v1029 = vlaneseq
      %v1030 = vshrl.u32 %v1029, 7
      %v1031 = vsub.s32 1, %v1030
      %v1032 = vrot.slane %v1017, %v1031
      %v1035 = vpack.c.bf16 %v1028, %v1028
      %v1036 = vpack.c.bf16 %v1032, %v1032
      %v1037 = vld [vmem:[%s1] sm:$0xff]
      %v1038 = vld [vmem:[%s1 + $0x8] sm:$0xff]
      %v1039 = vld [vmem:[%s1 + $0x10] sm:$0xff]
      %v1040 = vld [vmem:[%s1 + $0x18] sm:$0xff]
      %v1041 = vld [vmem:[%s1 + $0x20] sm:$0xff]
      %v1042 = vld [vmem:[%s1 + $0x28] sm:$0xff]
      %v1043 = vld [vmem:[%s1 + $0x30] sm:$0xff]
      %v1044 = vld [vmem:[%s1 + $0x38] sm:$0xff]
      %v1045 = vld [vmem:[%s1 + $0x40] sm:$0xff]
      %v1046 = vld [vmem:[%s1 + $0x48] sm:$0xff]
      %v1047 = vld [vmem:[%s1 + $0x50] sm:$0xff]
      %v1048 = vld [vmem:[%s1 + $0x58] sm:$0xff]
      %v1049 = vld [vmem:[%s1 + $0x60] sm:$0xff]
      %v1050 = vld [vmem:[%s1 + $0x68] sm:$0xff]
      %v1051 = vld [vmem:[%s1 + $0x70] sm:$0xff]
      %v1052 = vld [vmem:[%s1 + $0x78] sm:$0xff]
      %v1053 = vld [vmem:[%s1 + $0x80] sm:$0xff]
      %v1054 = vld [vmem:[%s1 + $0x88] sm:$0xff]
      %v1055 = vld [vmem:[%s1 + $0x90] sm:$0xff]
      %v1056 = vld [vmem:[%s1 + $0x98] sm:$0xff]
      %v1057 = vld [vmem:[%s1 + $0xa0] sm:$0xff]
      %v1058 = vld [vmem:[%s1 + $0xa8] sm:$0xff]
      %v1059 = vld [vmem:[%s1 + $0xb0] sm:$0xff]
      %v1060 = vld [vmem:[%s1 + $0xb8] sm:$0xff]
      %v1061 = vld [vmem:[%s1 + $0xc0] sm:$0xff]
      %v1062 = vld [vmem:[%s1 + $0xc8] sm:$0xff]
      %v1063 = vld [vmem:[%s1 + $0xd0] sm:$0xff]
      %v1064 = vld [vmem:[%s1 + $0xd8] sm:$0xff]
      %v1065 = vld [vmem:[%s1 + $0xe0] sm:$0xff]
      %v1066 = vld [vmem:[%s1 + $0xe8] sm:$0xff]
      %v1067 = vld [vmem:[%s1 + $0xf0] sm:$0xff]
      %v1068 = vld [vmem:[%s1 + $0xf8] sm:$0xff]
      %v1069 = vld [vmem:[%s1 + $0x100] sm:$0xff]
      %v1070 = vld [vmem:[%s1 + $0x108] sm:$0xff]
      %v1071 = vld [vmem:[%s1 + $0x110] sm:$0xff]
      %v1072 = vld [vmem:[%s1 + $0x118] sm:$0xff]
      %v1073 = vld [vmem:[%s1 + $0x120] sm:$0xff]
      %v1074 = vld [vmem:[%s1 + $0x128] sm:$0xff]
      %v1075 = vld [vmem:[%s1 + $0x130] sm:$0xff]
      %v1076 = vld [vmem:[%s1 + $0x138] sm:$0xff]
      %v1077 = vld [vmem:[%s1 + $0x140] sm:$0xff]
      %v1078 = vld [vmem:[%s1 + $0x148] sm:$0xff]
      %v1079 = vld [vmem:[%s1 + $0x150] sm:$0xff]
      %v1080 = vld [vmem:[%s1 + $0x158] sm:$0xff]
      %v1081 = vld [vmem:[%s1 + $0x160] sm:$0xff]
      %v1082 = vld [vmem:[%s1 + $0x168] sm:$0xff]
      %v1083 = vld [vmem:[%s1 + $0x170] sm:$0xff]
      %v1084 = vld [vmem:[%s1 + $0x178] sm:$0xff]
      %v1085 = vld [vmem:[%s1 + $0x180] sm:$0xff]
      %v1086 = vld [vmem:[%s1 + $0x188] sm:$0xff]
      %v1087 = vld [vmem:[%s1 + $0x190] sm:$0xff]
      %v1088 = vld [vmem:[%s1 + $0x198] sm:$0xff]
      %v1089 = vld [vmem:[%s1 + $0x1a0] sm:$0xff]
      %v1090 = vld [vmem:[%s1 + $0x1a8] sm:$0xff]
      %v1091 = vld [vmem:[%s1 + $0x1b0] sm:$0xff]
      %v1092 = vld [vmem:[%s1 + $0x1b8] sm:$0xff]
      %v1093 = vld [vmem:[%s1 + $0x1c0] sm:$0xff]
      %v1094 = vld [vmem:[%s1 + $0x1c8] sm:$0xff]
      %v1095 = vld [vmem:[%s1 + $0x1d0] sm:$0xff]
      %v1096 = vld [vmem:[%s1 + $0x1d8] sm:$0xff]
      %v1097 = vld [vmem:[%s1 + $0x1e0] sm:$0xff]
      %v1098 = vld [vmem:[%s1 + $0x1e8] sm:$0xff]
      %v1099 = vld [vmem:[%s1 + $0x1f0] sm:$0xff]
      %v1100 = vld [vmem:[%s1 + $0x1f8] sm:$0xff]
      %v1101 = vld [vmem:[%s1 + $0x200] sm:$0xff]
      %v1102 = vld [vmem:[%s1 + $0x208] sm:$0xff]
      %v1103 = vld [vmem:[%s1 + $0x210] sm:$0xff]
      %v1104 = vld [vmem:[%s1 + $0x218] sm:$0xff]
      %v1105 = vld [vmem:[%s1 + $0x220] sm:$0xff]
      %v1106 = vld [vmem:[%s1 + $0x228] sm:$0xff]
      %v1107 = vld [vmem:[%s1 + $0x230] sm:$0xff]
      %v1108 = vld [vmem:[%s1 + $0x238] sm:$0xff]
      %v1109 = vld [vmem:[%s1 + $0x240] sm:$0xff]
      %v1110 = vld [vmem:[%s1 + $0x248] sm:$0xff]
      %v1111 = vld [vmem:[%s1 + $0x250] sm:$0xff]
      %v1112 = vld [vmem:[%s1 + $0x258] sm:$0xff]
      %v1113 = vld [vmem:[%s1 + $0x260] sm:$0xff]
      %v1114 = vld [vmem:[%s1 + $0x268] sm:$0xff]
      %v1115 = vld [vmem:[%s1 + $0x270] sm:$0xff]
      %v1116 = vld [vmem:[%s1 + $0x278] sm:$0xff]
      %v1117 = vld [vmem:[%s1 + $0x280] sm:$0xff]
      %v1118 = vld [vmem:[%s1 + $0x288] sm:$0xff]
      %v1119 = vld [vmem:[%s1 + $0x290] sm:$0xff]
      %v1120 = vld [vmem:[%s1 + $0x298] sm:$0xff]
      %v1121 = vld [vmem:[%s1 + $0x2a0] sm:$0xff]
      %v1122 = vld [vmem:[%s1 + $0x2a8] sm:$0xff]
      %v1123 = vld [vmem:[%s1 + $0x2b0] sm:$0xff]
      %v1124 = vld [vmem:[%s1 + $0x2b8] sm:$0xff]
      %v1125 = vld [vmem:[%s1 + $0x2c0] sm:$0xff]
      %v1126 = vld [vmem:[%s1 + $0x2c8] sm:$0xff]
      %v1127 = vld [vmem:[%s1 + $0x2d0] sm:$0xff]
      %v1128 = vld [vmem:[%s1 + $0x2d8] sm:$0xff]
      %v1129 = vld [vmem:[%s1 + $0x2e0] sm:$0xff]
      %v1130 = vld [vmem:[%s1 + $0x2e8] sm:$0xff]
      %v1131 = vld [vmem:[%s1 + $0x2f0] sm:$0xff]
      %v1132 = vld [vmem:[%s1 + $0x2f8] sm:$0xff]
      %v1229 = vunpack.c.l.b16 %v1037
      %v1230 = vunpack.c.h.b16 %v1037
      %v1231 = vunpack.c.l.b16 %v1038
      %v1232 = vunpack.c.h.b16 %v1038
      %v1233 = vunpack.c.l.b16 %v1039
      %v1234 = vunpack.c.h.b16 %v1039
      %v1235 = vunpack.c.l.b16 %v1040
      %v1236 = vunpack.c.h.b16 %v1040
      %v1237 = vunpack.c.l.b16 %v1041
      %v1238 = vunpack.c.h.b16 %v1041
      %v1239 = vunpack.c.l.b16 %v1042
      %v1240 = vunpack.c.h.b16 %v1042
      %v1241 = vunpack.c.l.b16 %v1043
      %v1242 = vunpack.c.h.b16 %v1043
      %v1243 = vunpack.c.l.b16 %v1044
      %v1244 = vunpack.c.h.b16 %v1044
      %v1245 = vunpack.c.l.b16 %v1045
      %v1246 = vunpack.c.h.b16 %v1045
      %v1247 = vunpack.c.l.b16 %v1046
      %v1248 = vunpack.c.h.b16 %v1046
      %v1249 = vunpack.c.l.b16 %v1047
      %v1250 = vunpack.c.h.b16 %v1047
      %v1251 = vunpack.c.l.b16 %v1048
      %v1252 = vunpack.c.h.b16 %v1048
      %v1253 = vunpack.c.l.b16 %v1049
      %v1254 = vunpack.c.h.b16 %v1049
      %v1255 = vunpack.c.l.b16 %v1050
      %v1256 = vunpack.c.h.b16 %v1050
      %v1257 = vunpack.c.l.b16 %v1051
      %v1258 = vunpack.c.h.b16 %v1051
      %v1259 = vunpack.c.l.b16 %v1052
      %v1260 = vunpack.c.h.b16 %v1052
      %v1261 = vunpack.c.l.b16 %v1053
      %v1262 = vunpack.c.h.b16 %v1053
      %v1263 = vunpack.c.l.b16 %v1054
      %v1264 = vunpack.c.h.b16 %v1054
      %v1265 = vunpack.c.l.b16 %v1055
      %v1266 = vunpack.c.h.b16 %v1055
      %v1267 = vunpack.c.l.b16 %v1056
      %v1268 = vunpack.c.h.b16 %v1056
      %v1269 = vunpack.c.l.b16 %v1057
      %v1270 = vunpack.c.h.b16 %v1057
      %v1271 = vunpack.c.l.b16 %v1058
      %v1272 = vunpack.c.h.b16 %v1058
      %v1273 = vunpack.c.l.b16 %v1059
      %v1274 = vunpack.c.h.b16 %v1059
      %v1275 = vunpack.c.l.b16 %v1060
      %v1276 = vunpack.c.h.b16 %v1060
      %v1277 = vunpack.c.l.b16 %v1061
      %v1278 = vunpack.c.h.b16 %v1061
      %v1279 = vunpack.c.l.b16 %v1062
      %v1280 = vunpack.c.h.b16 %v1062
      %v1281 = vunpack.c.l.b16 %v1063
      %v1282 = vunpack.c.h.b16 %v1063
      %v1283 = vunpack.c.l.b16 %v1064
      %v1284 = vunpack.c.h.b16 %v1064
      %v1285 = vunpack.c.l.b16 %v1065
      %v1286 = vunpack.c.h.b16 %v1065
      %v1287 = vunpack.c.l.b16 %v1066
      %v1288 = vunpack.c.h.b16 %v1066
      %v1289 = vunpack.c.l.b16 %v1067
      %v1290 = vunpack.c.h.b16 %v1067
      %v1291 = vunpack.c.l.b16 %v1068
      %v1292 = vunpack.c.h.b16 %v1068
      %v1293 = vunpack.c.l.b16 %v1069
      %v1294 = vunpack.c.h.b16 %v1069
      %v1295 = vunpack.c.l.b16 %v1070
      %v1296 = vunpack.c.h.b16 %v1070
      %v1297 = vunpack.c.l.b16 %v1071
      %v1298 = vunpack.c.h.b16 %v1071
      %v1299 = vunpack.c.l.b16 %v1072
      %v1300 = vunpack.c.h.b16 %v1072
      %v1301 = vunpack.c.l.b16 %v1073
      %v1302 = vunpack.c.h.b16 %v1073
      %v1303 = vunpack.c.l.b16 %v1074
      %v1304 = vunpack.c.h.b16 %v1074
      %v1305 = vunpack.c.l.b16 %v1075
      %v1306 = vunpack.c.h.b16 %v1075
      %v1307 = vunpack.c.l.b16 %v1076
      %v1308 = vunpack.c.h.b16 %v1076
      %v1309 = vunpack.c.l.b16 %v1077
      %v1310 = vunpack.c.h.b16 %v1077
      %v1311 = vunpack.c.l.b16 %v1078
      %v1312 = vunpack.c.h.b16 %v1078
      %v1313 = vunpack.c.l.b16 %v1079
      %v1314 = vunpack.c.h.b16 %v1079
      %v1315 = vunpack.c.l.b16 %v1080
      %v1316 = vunpack.c.h.b16 %v1080
      %v1317 = vunpack.c.l.b16 %v1081
      %v1318 = vunpack.c.h.b16 %v1081
      %v1319 = vunpack.c.l.b16 %v1082
      %v1320 = vunpack.c.h.b16 %v1082
      %v1321 = vunpack.c.l.b16 %v1083
      %v1322 = vunpack.c.h.b16 %v1083
      %v1323 = vunpack.c.l.b16 %v1084
      %v1324 = vunpack.c.h.b16 %v1084
      %v1325 = vunpack.c.l.b16 %v1085
      %v1326 = vunpack.c.h.b16 %v1085
      %v1327 = vunpack.c.l.b16 %v1086
      %v1328 = vunpack.c.h.b16 %v1086
      %v1329 = vunpack.c.l.b16 %v1087
      %v1330 = vunpack.c.h.b16 %v1087
      %v1331 = vunpack.c.l.b16 %v1088
      %v1332 = vunpack.c.h.b16 %v1088
      %v1333 = vunpack.c.l.b16 %v1089
      %v1334 = vunpack.c.h.b16 %v1089
      %v1335 = vunpack.c.l.b16 %v1090
      %v1336 = vunpack.c.h.b16 %v1090
      %v1337 = vunpack.c.l.b16 %v1091
      %v1338 = vunpack.c.h.b16 %v1091
      %v1339 = vunpack.c.l.b16 %v1092
      %v1340 = vunpack.c.h.b16 %v1092
      %v1341 = vunpack.c.l.b16 %v1093
      %v1342 = vunpack.c.h.b16 %v1093
      %v1343 = vunpack.c.l.b16 %v1094
      %v1344 = vunpack.c.h.b16 %v1094
      %v1345 = vunpack.c.l.b16 %v1095
      %v1346 = vunpack.c.h.b16 %v1095
      %v1347 = vunpack.c.l.b16 %v1096
      %v1348 = vunpack.c.h.b16 %v1096
      %v1349 = vunpack.c.l.b16 %v1097
      %v1350 = vunpack.c.h.b16 %v1097
      %v1351 = vunpack.c.l.b16 %v1098
      %v1352 = vunpack.c.h.b16 %v1098
      %v1353 = vunpack.c.l.b16 %v1099
      %v1354 = vunpack.c.h.b16 %v1099
      %v1355 = vunpack.c.l.b16 %v1100
      %v1356 = vunpack.c.h.b16 %v1100
      %v1357 = vunpack.c.l.b16 %v1101
      %v1358 = vunpack.c.h.b16 %v1101
      %v1359 = vunpack.c.l.b16 %v1102
      %v1360 = vunpack.c.h.b16 %v1102
      %v1361 = vunpack.c.l.b16 %v1103
      %v1362 = vunpack.c.h.b16 %v1103
      %v1363 = vunpack.c.l.b16 %v1104
      %v1364 = vunpack.c.h.b16 %v1104
      %v1365 = vunpack.c.l.b16 %v1105
      %v1366 = vunpack.c.h.b16 %v1105
      %v1367 = vunpack.c.l.b16 %v1106
      %v1368 = vunpack.c.h.b16 %v1106
      %v1369 = vunpack.c.l.b16 %v1107
      %v1370 = vunpack.c.h.b16 %v1107
      %v1371 = vunpack.c.l.b16 %v1108
      %v1372 = vunpack.c.h.b16 %v1108
      %v1373 = vunpack.c.l.b16 %v1109
      %v1374 = vunpack.c.h.b16 %v1109
      %v1375 = vunpack.c.l.b16 %v1110
      %v1376 = vunpack.c.h.b16 %v1110
      %v1377 = vunpack.c.l.b16 %v1111
      %v1378 = vunpack.c.h.b16 %v1111
      %v1379 = vunpack.c.l.b16 %v1112
      %v1380 = vunpack.c.h.b16 %v1112
      %v1381 = vunpack.c.l.b16 %v1113
      %v1382 = vunpack.c.h.b16 %v1113
      %v1383 = vunpack.c.l.b16 %v1114
      %v1384 = vunpack.c.h.b16 %v1114
      %v1385 = vunpack.c.l.b16 %v1115
      %v1386 = vunpack.c.h.b16 %v1115
      %v1387 = vunpack.c.l.b16 %v1116
      %v1388 = vunpack.c.h.b16 %v1116
      %v1389 = vunpack.c.l.b16 %v1117
      %v1390 = vunpack.c.h.b16 %v1117
      %v1391 = vunpack.c.l.b16 %v1118
      %v1392 = vunpack.c.h.b16 %v1118
      %v1393 = vunpack.c.l.b16 %v1119
      %v1394 = vunpack.c.h.b16 %v1119
      %v1395 = vunpack.c.l.b16 %v1120
      %v1396 = vunpack.c.h.b16 %v1120
      %v1397 = vunpack.c.l.b16 %v1121
      %v1398 = vunpack.c.h.b16 %v1121
      %v1399 = vunpack.c.l.b16 %v1122
      %v1400 = vunpack.c.h.b16 %v1122
      %v1401 = vunpack.c.l.b16 %v1123
      %v1402 = vunpack.c.h.b16 %v1123
      %v1403 = vunpack.c.l.b16 %v1124
      %v1404 = vunpack.c.h.b16 %v1124
      %v1405 = vunpack.c.l.b16 %v1125
      %v1406 = vunpack.c.h.b16 %v1125
      %v1407 = vunpack.c.l.b16 %v1126
      %v1408 = vunpack.c.h.b16 %v1126
      %v1409 = vunpack.c.l.b16 %v1127
      %v1410 = vunpack.c.h.b16 %v1127
      %v1411 = vunpack.c.l.b16 %v1128
      %v1412 = vunpack.c.h.b16 %v1128
      %v1413 = vunpack.c.l.b16 %v1129
      %v1414 = vunpack.c.h.b16 %v1129
      %v1415 = vunpack.c.l.b16 %v1130
      %v1416 = vunpack.c.h.b16 %v1130
      %v1417 = vunpack.c.l.b16 %v1131
      %v1418 = vunpack.c.h.b16 %v1131
      %v1419 = vunpack.c.l.b16 %v1132
      %v1420 = vunpack.c.h.b16 %v1132
      %v1421 = vpack.c.b16 %v1235, %v1229
      %v1422 = vpack.c.b16 %v1236, %v1230
      %v1423 = vpack.c.b16 %v1237, %v1231
      %v1424 = vpack.c.b16 %v1238, %v1232
      %v1425 = vpack.c.b16 %v1239, %v1233
      %v1426 = vpack.c.b16 %v1240, %v1234
      %v1427 = vpack.c.b16 %v1247, %v1241
      %v1428 = vpack.c.b16 %v1248, %v1242
      %v1429 = vpack.c.b16 %v1249, %v1243
      %v1430 = vpack.c.b16 %v1250, %v1244
      %v1431 = vpack.c.b16 %v1251, %v1245
      %v1432 = vpack.c.b16 %v1252, %v1246
      %v1433 = vpack.c.b16 %v1259, %v1253
      %v1434 = vpack.c.b16 %v1260, %v1254
      %v1435 = vpack.c.b16 %v1261, %v1255
      %v1436 = vpack.c.b16 %v1262, %v1256
      %v1437 = vpack.c.b16 %v1263, %v1257
      %v1438 = vpack.c.b16 %v1264, %v1258
      %v1439 = vpack.c.b16 %v1271, %v1265
      %v1440 = vpack.c.b16 %v1272, %v1266
      %v1441 = vpack.c.b16 %v1273, %v1267
      %v1442 = vpack.c.b16 %v1274, %v1268
      %v1443 = vpack.c.b16 %v1275, %v1269
      %v1444 = vpack.c.b16 %v1276, %v1270
      %v1445 = vpack.c.b16 %v1283, %v1277
      %v1446 = vpack.c.b16 %v1284, %v1278
      %v1447 = vpack.c.b16 %v1285, %v1279
      %v1448 = vpack.c.b16 %v1286, %v1280
      %v1449 = vpack.c.b16 %v1287, %v1281
      %v1450 = vpack.c.b16 %v1288, %v1282
      %v1451 = vpack.c.b16 %v1295, %v1289
      %v1452 = vpack.c.b16 %v1296, %v1290
      %v1453 = vpack.c.b16 %v1297, %v1291
      %v1454 = vpack.c.b16 %v1298, %v1292
      %v1455 = vpack.c.b16 %v1299, %v1293
      %v1456 = vpack.c.b16 %v1300, %v1294
      %v1457 = vpack.c.b16 %v1307, %v1301
      %v1458 = vpack.c.b16 %v1308, %v1302
      %v1459 = vpack.c.b16 %v1309, %v1303
      %v1460 = vpack.c.b16 %v1310, %v1304
      %v1461 = vpack.c.b16 %v1311, %v1305
      %v1462 = vpack.c.b16 %v1312, %v1306
      %v1463 = vpack.c.b16 %v1319, %v1313
      %v1464 = vpack.c.b16 %v1320, %v1314
      %v1465 = vpack.c.b16 %v1321, %v1315
      %v1466 = vpack.c.b16 %v1322, %v1316
      %v1467 = vpack.c.b16 %v1323, %v1317
      %v1468 = vpack.c.b16 %v1324, %v1318
      %v1469 = vpack.c.b16 %v1331, %v1325
      %v1470 = vpack.c.b16 %v1332, %v1326
      %v1471 = vpack.c.b16 %v1333, %v1327
      %v1472 = vpack.c.b16 %v1334, %v1328
      %v1473 = vpack.c.b16 %v1335, %v1329
      %v1474 = vpack.c.b16 %v1336, %v1330
      %v1475 = vpack.c.b16 %v1343, %v1337
      %v1476 = vpack.c.b16 %v1344, %v1338
      %v1477 = vpack.c.b16 %v1345, %v1339
      %v1478 = vpack.c.b16 %v1346, %v1340
      %v1479 = vpack.c.b16 %v1347, %v1341
      %v1480 = vpack.c.b16 %v1348, %v1342
      %v1481 = vpack.c.b16 %v1355, %v1349
      %v1482 = vpack.c.b16 %v1356, %v1350
      %v1483 = vpack.c.b16 %v1357, %v1351
      %v1484 = vpack.c.b16 %v1358, %v1352
      %v1485 = vpack.c.b16 %v1359, %v1353
      %v1486 = vpack.c.b16 %v1360, %v1354
      %v1487 = vpack.c.b16 %v1367, %v1361
      %v1488 = vpack.c.b16 %v1368, %v1362
      %v1489 = vpack.c.b16 %v1369, %v1363
      %v1490 = vpack.c.b16 %v1370, %v1364
      %v1491 = vpack.c.b16 %v1371, %v1365
      %v1492 = vpack.c.b16 %v1372, %v1366
      %v1493 = vpack.c.b16 %v1379, %v1373
      %v1494 = vpack.c.b16 %v1380, %v1374
      %v1495 = vpack.c.b16 %v1381, %v1375
      %v1496 = vpack.c.b16 %v1382, %v1376
      %v1497 = vpack.c.b16 %v1383, %v1377
      %v1498 = vpack.c.b16 %v1384, %v1378
      %v1499 = vpack.c.b16 %v1391, %v1385
      %v1500 = vpack.c.b16 %v1392, %v1386
      %v1501 = vpack.c.b16 %v1393, %v1387
      %v1502 = vpack.c.b16 %v1394, %v1388
      %v1503 = vpack.c.b16 %v1395, %v1389
      %v1504 = vpack.c.b16 %v1396, %v1390
      %v1505 = vpack.c.b16 %v1403, %v1397
      %v1506 = vpack.c.b16 %v1404, %v1398
      %v1507 = vpack.c.b16 %v1405, %v1399
      %v1508 = vpack.c.b16 %v1406, %v1400
      %v1509 = vpack.c.b16 %v1407, %v1401
      %v1510 = vpack.c.b16 %v1408, %v1402
      %v1511 = vpack.c.b16 %v1415, %v1409
      %v1512 = vpack.c.b16 %v1416, %v1410
      %v1513 = vpack.c.b16 %v1417, %v1411
      %v1514 = vpack.c.b16 %v1418, %v1412
      %v1515 = vpack.c.b16 %v1419, %v1413
      %v1516 = vpack.c.b16 %v1420, %v1414
      %1613 = vmatprep.subr.bf16.mxu0 %v1464
      %1614 = vmatpush1.bf16.msra.mxu0 %v1463
      %1615 = vmatprep.subr.bf16.mxu0 %v1458
      %1616 = vmatpush1.bf16.msra.mxu0 %v1457
      %1617 = vmatprep.subr.bf16.mxu0 %v1452
      %1618 = vmatpush1.bf16.msra.mxu0 %v1451
      %1619 = vmatprep.subr.bf16.mxu0 %v1446
      %1620 = vmatpush1.bf16.msra.mxu0 %v1445
      %1621 = vmatprep.subr.bf16.mxu0 %v1440
      %1622 = vmatpush1.bf16.msra.mxu0 %v1439
      %1623 = vmatprep.subr.bf16.mxu0 %v1434
      %1624 = vmatpush1.bf16.msra.mxu0 %v1433
      %1625 = vmatprep.subr.bf16.mxu0 %v1428
      %1626 = vmatpush1.bf16.msra.mxu0 %v1427
      %1627 = vmatprep.subr.bf16.mxu0 %v1422
      %1628 = vmatpush1.bf16.msra.mxu0 %v1421
      %1629 = vmatprep.subr.bf16.mxu0 %v1512
      %1630 = vmatpush2.bf16.msra.mxu0 %v1511
      %1631 = vmatprep.subr.bf16.mxu0 %v1506
      %1632 = vmatpush2.bf16.msra.mxu0 %v1505
      %1633 = vmatprep.subr.bf16.mxu0 %v1500
      %1634 = vmatpush2.bf16.msra.mxu0 %v1499
      %1635 = vmatprep.subr.bf16.mxu0 %v1494
      %1636 = vmatpush2.bf16.msra.mxu0 %v1493
      %1637 = vmatprep.subr.bf16.mxu0 %v1488
      %1638 = vmatpush2.bf16.msra.mxu0 %v1487
      %1639 = vmatprep.subr.bf16.mxu0 %v1482
      %1640 = vmatpush2.bf16.msra.mxu0 %v1481
      %1641 = vmatprep.subr.bf16.mxu0 %v1476
      %1642 = vmatpush2.bf16.msra.mxu0 %v1475
      %1643 = vmatprep.subr.bf16.mxu0 %v1470
      %1644 = vmatpush2.bf16.msra.mxu0 %v1469
      %1645 = vmatprep.mubr.bf16.mxu0 %v1036
      %1646 = vmatmul.mubr.bf16.gmra.mxu0 %v1035
      %v1647 = vpop.f32.mrf.mxu0
      %v1648 = vadd.f32 0.0, %v1647
      %v1649 = vpop.f32.mrf.mxu0
      %v1650 = vadd.f32 0.0, %v1649
      %v1651 = vpop.f32.mrf.mxu0
      %v1652 = vpop.f32.mrf.mxu0
      %1653 = vdwg.mxu0
      %1654 = vmatprep.subr.bf16.mxu0 %v1466
      %1655 = vmatpush1.bf16.msra.mxu0 %v1465
      %1656 = vmatprep.subr.bf16.mxu0 %v1460
      %1657 = vmatpush1.bf16.msra.mxu0 %v1459
      %1658 = vmatprep.subr.bf16.mxu0 %v1454
      %1659 = vmatpush1.bf16.msra.mxu0 %v1453
      %1660 = vmatprep.subr.bf16.mxu0 %v1448
      %1661 = vmatpush1.bf16.msra.mxu0 %v1447
      %1662 = vmatprep.subr.bf16.mxu0 %v1442
      %1663 = vmatpush1.bf16.msra.mxu0 %v1441
      %1664 = vmatprep.subr.bf16.mxu0 %v1436
      %1665 = vmatpush1.bf16.msra.mxu0 %v1435
      %1666 = vmatprep.subr.bf16.mxu0 %v1430
      %1667 = vmatpush1.bf16.msra.mxu0 %v1429
      %1668 = vmatprep.subr.bf16.mxu0 %v1424
      %1669 = vmatpush1.bf16.msra.mxu0 %v1423
      %1670 = vmatprep.subr.bf16.mxu0 %v1514
      %1671 = vmatpush2.bf16.msra.mxu0 %v1513
      %1672 = vmatprep.subr.bf16.mxu0 %v1508
      %1673 = vmatpush2.bf16.msra.mxu0 %v1507
      %1674 = vmatprep.subr.bf16.mxu0 %v1502
      %1675 = vmatpush2.bf16.msra.mxu0 %v1501
      %1676 = vmatprep.subr.bf16.mxu0 %v1496
      %1677 = vmatpush2.bf16.msra.mxu0 %v1495
      %1678 = vmatprep.subr.bf16.mxu0 %v1490
      %1679 = vmatpush2.bf16.msra.mxu0 %v1489
      %1680 = vmatprep.subr.bf16.mxu0 %v1484
      %1681 = vmatpush2.bf16.msra.mxu0 %v1483
      %1682 = vmatprep.subr.bf16.mxu0 %v1478
      %1683 = vmatpush2.bf16.msra.mxu0 %v1477
      %1684 = vmatprep.subr.bf16.mxu0 %v1472
      %1685 = vmatpush2.bf16.msra.mxu0 %v1471
      %1686 = vmatprep.mubr.bf16.mxu0 %v1036
      %1687 = vmatmul.mubr.bf16.gmra.mxu0 %v1035
      %v1688 = vpop.f32.mrf.mxu0
      %v1689 = vadd.f32 0.0, %v1688
      %v1690 = vpop.f32.mrf.mxu0
      %v1691 = vadd.f32 0.0, %v1690
      %v1692 = vpop.f32.mrf.mxu0
      %v1693 = vpop.f32.mrf.mxu0
      %1694 = vdwg.mxu0
      %1695 = vmatprep.subr.bf16.mxu0 %v1468
      %1696 = vmatpush1.bf16.msra.mxu0 %v1467
      %1697 = vmatprep.subr.bf16.mxu0 %v1462
      %1698 = vmatpush1.bf16.msra.mxu0 %v1461
      %1699 = vmatprep.subr.bf16.mxu0 %v1456
      %1700 = vmatpush1.bf16.msra.mxu0 %v1455
      %1701 = vmatprep.subr.bf16.mxu0 %v1450
      %1702 = vmatpush1.bf16.msra.mxu0 %v1449
      %1703 = vmatprep.subr.bf16.mxu0 %v1444
      %1704 = vmatpush1.bf16.msra.mxu0 %v1443
      %1705 = vmatprep.subr.bf16.mxu0 %v1438
      %1706 = vmatpush1.bf16.msra.mxu0 %v1437
      %1707 = vmatprep.subr.bf16.mxu0 %v1432
      %1708 = vmatpush1.bf16.msra.mxu0 %v1431
      %1709 = vmatprep.subr.bf16.mxu0 %v1426
      %1710 = vmatpush1.bf16.msra.mxu0 %v1425
      %1711 = vmatprep.subr.bf16.mxu0 %v1516
      %1712 = vmatpush2.bf16.msra.mxu0 %v1515
      %1713 = vmatprep.subr.bf16.mxu0 %v1510
      %1714 = vmatpush2.bf16.msra.mxu0 %v1509
      %1715 = vmatprep.subr.bf16.mxu0 %v1504
      %1716 = vmatpush2.bf16.msra.mxu0 %v1503
      %1717 = vmatprep.subr.bf16.mxu0 %v1498
      %1718 = vmatpush2.bf16.msra.mxu0 %v1497
      %1719 = vmatprep.subr.bf16.mxu0 %v1492
      %1720 = vmatpush2.bf16.msra.mxu0 %v1491
      %1721 = vmatprep.subr.bf16.mxu0 %v1486
      %1722 = vmatpush2.bf16.msra.mxu0 %v1485
      %1723 = vmatprep.subr.bf16.mxu0 %v1480
      %1724 = vmatpush2.bf16.msra.mxu0 %v1479
      %1725 = vmatprep.subr.bf16.mxu0 %v1474
      %1726 = vmatpush2.bf16.msra.mxu0 %v1473
      %1727 = vmatprep.mubr.bf16.mxu0 %v1036
      %1728 = vmatmul.mubr.bf16.gmra.mxu0 %v1035
      %v1729 = vpop.f32.mrf.mxu0
      %v1730 = vadd.f32 0.0, %v1729
      %v1731 = vpop.f32.mrf.mxu0
      %v1732 = vadd.f32 0.0, %v1731
      %v1733 = vpop.f32.mrf.mxu0
      %v1734 = vpop.f32.mrf.mxu0
      %1735 = vdwg.mxu0
      %s1736 = scalar_lea.vmem %s192, 1
      %v1737 = vld [vmem:[%s1736] ss:$8 sm:$0xf]
      %v1738 = vld [vmem:[%s1736] ss:$8 sm:$0x30]
      %v1739 = vor.u32 %v1737, %v1738
      %v1742 = vcombine.low %v1648, %v1650
      %v1744 = vunpack.c.l.s4 1966171168
      %v1745 = vunpack.c.0.s8 %v1744
      %v1746 = vlaneseq
      %v1747 = vshrl.u32 %v1746, 7
      %v1748 = vsub.s32 %v1745, %v1747
      %v1749 = vrot.slane %v1742, %v1748
      %v1751 = vunpack.c.l.s4 1966171168
      %v1752 = vunpack.c.0.s8 %v1751
      %v1753 = vlaneseq
      %v1754 = vshrl.u32 %v1753, 7
      %v1755 = vsub.s32 %v1752, %v1754
      %v1756 = vrot.slane %v1749, %v1755
      %v1758 = vadd.f32 %v1739, %v1756
      %v1759 = vxor.u32 %v1758, 2147483648
      %v1760 = vmul.f32 %v1759, 1.442695
      %v1761 = vpow.pop %v1760
      %v1762 = vadd.f32 %v1761, 1.0
      %v1763 = vrcp.pop %v1762
      %v1764 = vmul.f32 1.0, %v1763
      %v1766 = vrot.slane %v1739, 2
      %v1770 = vcombine.low %v1689, %v1691
      %v1772 = vunpack.c.l.s4 1966171168
      %v1773 = vunpack.c.0.s8 %v1772
      %v1774 = vlaneseq
      %v1775 = vshrl.u32 %v1774, 7
      %v1776 = vsub.s32 %v1773, %v1775
      %v1777 = vrot.slane %v1770, %v1776
      %v1779 = vunpack.c.l.s4 1966171168
      %v1780 = vunpack.c.0.s8 %v1779
      %v1781 = vlaneseq
      %v1782 = vshrl.u32 %v1781, 7
      %v1783 = vsub.s32 %v1780, %v1782
      %v1784 = vrot.slane %v1777, %v1783
      %v1786 = vadd.f32 %v1766, %v1784
      %v1787 = vxor.u32 %v1786, 2147483648
      %v1788 = vmul.f32 %v1787, 1.442695
      %v1789 = vpow.pop %v1788
      %v1790 = vadd.f32 %v1789, 1.0
      %v1791 = vrcp.pop %v1790
      %v1792 = vmul.f32 1.0, %v1791
      %v1793 = vadd.f32 %v1730, %v982
      %v1794 = vadd.f32 %v1732, %v986
      %v1797 = vcombine.low %v1793, %v1794
      %v1799 = vunpack.c.l.s4 1966171168
      %v1800 = vunpack.c.0.s8 %v1799
      %v1801 = vlaneseq
      %v1802 = vshrl.u32 %v1801, 7
      %v1803 = vsub.s32 %v1800, %v1802
      %v1804 = vrot.slane %v1797, %v1803
      %v1806 = vunpack.c.l.s4 1966171168
      %v1807 = vunpack.c.0.s8 %v1806
      %v1808 = vlaneseq
      %v1809 = vshrl.u32 %v1808, 7
      %v1810 = vsub.s32 %v1807, %v1809
      %v1811 = vrot.slane %v1804, %v1810
      %v1813 = vmul.f32 %v1764, %v1811
      %v1814 = vrot.slane %v1739, 4
      %v1816 = vadd.f32 %v1814, %v1813
      %v1817 = vtanh.pop %v1816
      %v1818 = vsub.f32 1.0, %v1792
      %v1819 = vmul.f32 %v1818, %v1817
      %v1820 = vmul.f32 %v1792, %v1017
      %v1821 = vadd.f32 %v1819, %v1820
      %s1822 = scalar_lea.vmem %s197, 1
      %1823 = vst.msk [vmem:[%s1822] ss:$8 sm:$0x3] %vm1021, %v1821
      %1824 = vst.msk [vmem:[%s1822] ss:$8 sm:$0x0] %vm1021, %v1821
      %v1826 = vlaneseq
      %v1827 = vshrl.u32 %v1826, 7
      %v1828 = vsub.s32 0, %v1827
      %v1829 = vrot.slane %v1821, %v1828
      %v1830 = vlaneseq
      %v1831 = vshrl.u32 %v1830, 7
      %v1832 = vsub.s32 1, %v1831
      %v1833 = vrot.slane %v1821, %v1832
      %v1836 = vpack.c.bf16 %v1829, %v1829
      %v1837 = vpack.c.bf16 %v1833, %v1833
      %v1838 = vld [vmem:[%s1] sm:$0xff]
      %v1839 = vld [vmem:[%s1 + $0x8] sm:$0xff]
      %v1840 = vld [vmem:[%s1 + $0x10] sm:$0xff]
      %v1841 = vld [vmem:[%s1 + $0x18] sm:$0xff]
      %v1842 = vld [vmem:[%s1 + $0x20] sm:$0xff]
      %v1843 = vld [vmem:[%s1 + $0x28] sm:$0xff]
      %v1844 = vld [vmem:[%s1 + $0x30] sm:$0xff]
      %v1845 = vld [vmem:[%s1 + $0x38] sm:$0xff]
      %v1846 = vld [vmem:[%s1 + $0x40] sm:$0xff]
      %v1847 = vld [vmem:[%s1 + $0x48] sm:$0xff]
      %v1848 = vld [vmem:[%s1 + $0x50] sm:$0xff]
      %v1849 = vld [vmem:[%s1 + $0x58] sm:$0xff]
      %v1850 = vld [vmem:[%s1 + $0x60] sm:$0xff]
      %v1851 = vld [vmem:[%s1 + $0x68] sm:$0xff]
      %v1852 = vld [vmem:[%s1 + $0x70] sm:$0xff]
      %v1853 = vld [vmem:[%s1 + $0x78] sm:$0xff]
      %v1854 = vld [vmem:[%s1 + $0x80] sm:$0xff]
      %v1855 = vld [vmem:[%s1 + $0x88] sm:$0xff]
      %v1856 = vld [vmem:[%s1 + $0x90] sm:$0xff]
      %v1857 = vld [vmem:[%s1 + $0x98] sm:$0xff]
      %v1858 = vld [vmem:[%s1 + $0xa0] sm:$0xff]
      %v1859 = vld [vmem:[%s1 + $0xa8] sm:$0xff]
      %v1860 = vld [vmem:[%s1 + $0xb0] sm:$0xff]
      %v1861 = vld [vmem:[%s1 + $0xb8] sm:$0xff]
      %v1862 = vld [vmem:[%s1 + $0xc0] sm:$0xff]
      %v1863 = vld [vmem:[%s1 + $0xc8] sm:$0xff]
      %v1864 = vld [vmem:[%s1 + $0xd0] sm:$0xff]
      %v1865 = vld [vmem:[%s1 + $0xd8] sm:$0xff]
      %v1866 = vld [vmem:[%s1 + $0xe0] sm:$0xff]
      %v1867 = vld [vmem:[%s1 + $0xe8] sm:$0xff]
      %v1868 = vld [vmem:[%s1 + $0xf0] sm:$0xff]
      %v1869 = vld [vmem:[%s1 + $0xf8] sm:$0xff]
      %v1870 = vld [vmem:[%s1 + $0x100] sm:$0xff]
      %v1871 = vld [vmem:[%s1 + $0x108] sm:$0xff]
      %v1872 = vld [vmem:[%s1 + $0x110] sm:$0xff]
      %v1873 = vld [vmem:[%s1 + $0x118] sm:$0xff]
      %v1874 = vld [vmem:[%s1 + $0x120] sm:$0xff]
      %v1875 = vld [vmem:[%s1 + $0x128] sm:$0xff]
      %v1876 = vld [vmem:[%s1 + $0x130] sm:$0xff]
      %v1877 = vld [vmem:[%s1 + $0x138] sm:$0xff]
      %v1878 = vld [vmem:[%s1 + $0x140] sm:$0xff]
      %v1879 = vld [vmem:[%s1 + $0x148] sm:$0xff]
      %v1880 = vld [vmem:[%s1 + $0x150] sm:$0xff]
      %v1881 = vld [vmem:[%s1 + $0x158] sm:$0xff]
      %v1882 = vld [vmem:[%s1 + $0x160] sm:$0xff]
      %v1883 = vld [vmem:[%s1 + $0x168] sm:$0xff]
      %v1884 = vld [vmem:[%s1 + $0x170] sm:$0xff]
      %v1885 = vld [vmem:[%s1 + $0x178] sm:$0xff]
      %v1886 = vld [vmem:[%s1 + $0x180] sm:$0xff]
      %v1887 = vld [vmem:[%s1 + $0x188] sm:$0xff]
      %v1888 = vld [vmem:[%s1 + $0x190] sm:$0xff]
      %v1889 = vld [vmem:[%s1 + $0x198] sm:$0xff]
      %v1890 = vld [vmem:[%s1 + $0x1a0] sm:$0xff]
      %v1891 = vld [vmem:[%s1 + $0x1a8] sm:$0xff]
      %v1892 = vld [vmem:[%s1 + $0x1b0] sm:$0xff]
      %v1893 = vld [vmem:[%s1 + $0x1b8] sm:$0xff]
      %v1894 = vld [vmem:[%s1 + $0x1c0] sm:$0xff]
      %v1895 = vld [vmem:[%s1 + $0x1c8] sm:$0xff]
      %v1896 = vld [vmem:[%s1 + $0x1d0] sm:$0xff]
      %v1897 = vld [vmem:[%s1 + $0x1d8] sm:$0xff]
      %v1898 = vld [vmem:[%s1 + $0x1e0] sm:$0xff]
      %v1899 = vld [vmem:[%s1 + $0x1e8] sm:$0xff]
      %v1900 = vld [vmem:[%s1 + $0x1f0] sm:$0xff]
      %v1901 = vld [vmem:[%s1 + $0x1f8] sm:$0xff]
      %v1902 = vld [vmem:[%s1 + $0x200] sm:$0xff]
      %v1903 = vld [vmem:[%s1 + $0x208] sm:$0xff]
      %v1904 = vld [vmem:[%s1 + $0x210] sm:$0xff]
      %v1905 = vld [vmem:[%s1 + $0x218] sm:$0xff]
      %v1906 = vld [vmem:[%s1 + $0x220] sm:$0xff]
      %v1907 = vld [vmem:[%s1 + $0x228] sm:$0xff]
      %v1908 = vld [vmem:[%s1 + $0x230] sm:$0xff]
      %v1909 = vld [vmem:[%s1 + $0x238] sm:$0xff]
      %v1910 = vld [vmem:[%s1 + $0x240] sm:$0xff]
      %v1911 = vld [vmem:[%s1 + $0x248] sm:$0xff]
      %v1912 = vld [vmem:[%s1 + $0x250] sm:$0xff]
      %v1913 = vld [vmem:[%s1 + $0x258] sm:$0xff]
      %v1914 = vld [vmem:[%s1 + $0x260] sm:$0xff]
      %v1915 = vld [vmem:[%s1 + $0x268] sm:$0xff]
      %v1916 = vld [vmem:[%s1 + $0x270] sm:$0xff]
      %v1917 = vld [vmem:[%s1 + $0x278] sm:$0xff]
      %v1918 = vld [vmem:[%s1 + $0x280] sm:$0xff]
      %v1919 = vld [vmem:[%s1 + $0x288] sm:$0xff]
      %v1920 = vld [vmem:[%s1 + $0x290] sm:$0xff]
      %v1921 = vld [vmem:[%s1 + $0x298] sm:$0xff]
      %v1922 = vld [vmem:[%s1 + $0x2a0] sm:$0xff]
      %v1923 = vld [vmem:[%s1 + $0x2a8] sm:$0xff]
      %v1924 = vld [vmem:[%s1 + $0x2b0] sm:$0xff]
      %v1925 = vld [vmem:[%s1 + $0x2b8] sm:$0xff]
      %v1926 = vld [vmem:[%s1 + $0x2c0] sm:$0xff]
      %v1927 = vld [vmem:[%s1 + $0x2c8] sm:$0xff]
      %v1928 = vld [vmem:[%s1 + $0x2d0] sm:$0xff]
      %v1929 = vld [vmem:[%s1 + $0x2d8] sm:$0xff]
      %v1930 = vld [vmem:[%s1 + $0x2e0] sm:$0xff]
      %v1931 = vld [vmem:[%s1 + $0x2e8] sm:$0xff]
      %v1932 = vld [vmem:[%s1 + $0x2f0] sm:$0xff]
      %v1933 = vld [vmem:[%s1 + $0x2f8] sm:$0xff]
      %v2030 = vunpack.c.l.b16 %v1838
      %v2031 = vunpack.c.h.b16 %v1838
      %v2032 = vunpack.c.l.b16 %v1839
      %v2033 = vunpack.c.h.b16 %v1839
      %v2034 = vunpack.c.l.b16 %v1840
      %v2035 = vunpack.c.h.b16 %v1840
      %v2036 = vunpack.c.l.b16 %v1841
      %v2037 = vunpack.c.h.b16 %v1841
      %v2038 = vunpack.c.l.b16 %v1842
      %v2039 = vunpack.c.h.b16 %v1842
      %v2040 = vunpack.c.l.b16 %v1843
      %v2041 = vunpack.c.h.b16 %v1843
      %v2042 = vunpack.c.l.b16 %v1844
      %v2043 = vunpack.c.h.b16 %v1844
      %v2044 = vunpack.c.l.b16 %v1845
      %v2045 = vunpack.c.h.b16 %v1845
      %v2046 = vunpack.c.l.b16 %v1846
      %v2047 = vunpack.c.h.b16 %v1846
      %v2048 = vunpack.c.l.b16 %v1847
      %v2049 = vunpack.c.h.b16 %v1847
      %v2050 = vunpack.c.l.b16 %v1848
      %v2051 = vunpack.c.h.b16 %v1848
      %v2052 = vunpack.c.l.b16 %v1849
      %v2053 = vunpack.c.h.b16 %v1849
      %v2054 = vunpack.c.l.b16 %v1850
      %v2055 = vunpack.c.h.b16 %v1850
      %v2056 = vunpack.c.l.b16 %v1851
      %v2057 = vunpack.c.h.b16 %v1851
      %v2058 = vunpack.c.l.b16 %v1852
      %v2059 = vunpack.c.h.b16 %v1852
      %v2060 = vunpack.c.l.b16 %v1853
      %v2061 = vunpack.c.h.b16 %v1853
      %v2062 = vunpack.c.l.b16 %v1854
      %v2063 = vunpack.c.h.b16 %v1854
      %v2064 = vunpack.c.l.b16 %v1855
      %v2065 = vunpack.c.h.b16 %v1855
      %v2066 = vunpack.c.l.b16 %v1856
      %v2067 = vunpack.c.h.b16 %v1856
      %v2068 = vunpack.c.l.b16 %v1857
      %v2069 = vunpack.c.h.b16 %v1857
      %v2070 = vunpack.c.l.b16 %v1858
      %v2071 = vunpack.c.h.b16 %v1858
      %v2072 = vunpack.c.l.b16 %v1859
      %v2073 = vunpack.c.h.b16 %v1859
      %v2074 = vunpack.c.l.b16 %v1860
      %v2075 = vunpack.c.h.b16 %v1860
      %v2076 = vunpack.c.l.b16 %v1861
      %v2077 = vunpack.c.h.b16 %v1861
      %v2078 = vunpack.c.l.b16 %v1862
      %v2079 = vunpack.c.h.b16 %v1862
      %v2080 = vunpack.c.l.b16 %v1863
      %v2081 = vunpack.c.h.b16 %v1863
      %v2082 = vunpack.c.l.b16 %v1864
      %v2083 = vunpack.c.h.b16 %v1864
      %v2084 = vunpack.c.l.b16 %v1865
      %v2085 = vunpack.c.h.b16 %v1865
      %v2086 = vunpack.c.l.b16 %v1866
      %v2087 = vunpack.c.h.b16 %v1866
      %v2088 = vunpack.c.l.b16 %v1867
      %v2089 = vunpack.c.h.b16 %v1867
      %v2090 = vunpack.c.l.b16 %v1868
      %v2091 = vunpack.c.h.b16 %v1868
      %v2092 = vunpack.c.l.b16 %v1869
      %v2093 = vunpack.c.h.b16 %v1869
      %v2094 = vunpack.c.l.b16 %v1870
      %v2095 = vunpack.c.h.b16 %v1870
      %v2096 = vunpack.c.l.b16 %v1871
      %v2097 = vunpack.c.h.b16 %v1871
      %v2098 = vunpack.c.l.b16 %v1872
      %v2099 = vunpack.c.h.b16 %v1872
      %v2100 = vunpack.c.l.b16 %v1873
      %v2101 = vunpack.c.h.b16 %v1873
      %v2102 = vunpack.c.l.b16 %v1874
      %v2103 = vunpack.c.h.b16 %v1874
      %v2104 = vunpack.c.l.b16 %v1875
      %v2105 = vunpack.c.h.b16 %v1875
      %v2106 = vunpack.c.l.b16 %v1876
      %v2107 = vunpack.c.h.b16 %v1876
      %v2108 = vunpack.c.l.b16 %v1877
      %v2109 = vunpack.c.h.b16 %v1877
      %v2110 = vunpack.c.l.b16 %v1878
      %v2111 = vunpack.c.h.b16 %v1878
      %v2112 = vunpack.c.l.b16 %v1879
      %v2113 = vunpack.c.h.b16 %v1879
      %v2114 = vunpack.c.l.b16 %v1880
      %v2115 = vunpack.c.h.b16 %v1880
      %v2116 = vunpack.c.l.b16 %v1881
      %v2117 = vunpack.c.h.b16 %v1881
      %v2118 = vunpack.c.l.b16 %v1882
      %v2119 = vunpack.c.h.b16 %v1882
      %v2120 = vunpack.c.l.b16 %v1883
      %v2121 = vunpack.c.h.b16 %v1883
      %v2122 = vunpack.c.l.b16 %v1884
      %v2123 = vunpack.c.h.b16 %v1884
      %v2124 = vunpack.c.l.b16 %v1885
      %v2125 = vunpack.c.h.b16 %v1885
      %v2126 = vunpack.c.l.b16 %v1886
      %v2127 = vunpack.c.h.b16 %v1886
      %v2128 = vunpack.c.l.b16 %v1887
      %v2129 = vunpack.c.h.b16 %v1887
      %v2130 = vunpack.c.l.b16 %v1888
      %v2131 = vunpack.c.h.b16 %v1888
      %v2132 = vunpack.c.l.b16 %v1889
      %v2133 = vunpack.c.h.b16 %v1889
      %v2134 = vunpack.c.l.b16 %v1890
      %v2135 = vunpack.c.h.b16 %v1890
      %v2136 = vunpack.c.l.b16 %v1891
      %v2137 = vunpack.c.h.b16 %v1891
      %v2138 = vunpack.c.l.b16 %v1892
      %v2139 = vunpack.c.h.b16 %v1892
      %v2140 = vunpack.c.l.b16 %v1893
      %v2141 = vunpack.c.h.b16 %v1893
      %v2142 = vunpack.c.l.b16 %v1894
      %v2143 = vunpack.c.h.b16 %v1894
      %v2144 = vunpack.c.l.b16 %v1895
      %v2145 = vunpack.c.h.b16 %v1895
      %v2146 = vunpack.c.l.b16 %v1896
      %v2147 = vunpack.c.h.b16 %v1896
      %v2148 = vunpack.c.l.b16 %v1897
      %v2149 = vunpack.c.h.b16 %v1897
      %v2150 = vunpack.c.l.b16 %v1898
      %v2151 = vunpack.c.h.b16 %v1898
      %v2152 = vunpack.c.l.b16 %v1899
      %v2153 = vunpack.c.h.b16 %v1899
      %v2154 = vunpack.c.l.b16 %v1900
      %v2155 = vunpack.c.h.b16 %v1900
      %v2156 = vunpack.c.l.b16 %v1901
      %v2157 = vunpack.c.h.b16 %v1901
      %v2158 = vunpack.c.l.b16 %v1902
      %v2159 = vunpack.c.h.b16 %v1902
      %v2160 = vunpack.c.l.b16 %v1903
      %v2161 = vunpack.c.h.b16 %v1903
      %v2162 = vunpack.c.l.b16 %v1904
      %v2163 = vunpack.c.h.b16 %v1904
      %v2164 = vunpack.c.l.b16 %v1905
      %v2165 = vunpack.c.h.b16 %v1905
      %v2166 = vunpack.c.l.b16 %v1906
      %v2167 = vunpack.c.h.b16 %v1906
      %v2168 = vunpack.c.l.b16 %v1907
      %v2169 = vunpack.c.h.b16 %v1907
      %v2170 = vunpack.c.l.b16 %v1908
      %v2171 = vunpack.c.h.b16 %v1908
      %v2172 = vunpack.c.l.b16 %v1909
      %v2173 = vunpack.c.h.b16 %v1909
      %v2174 = vunpack.c.l.b16 %v1910
      %v2175 = vunpack.c.h.b16 %v1910
      %v2176 = vunpack.c.l.b16 %v1911
      %v2177 = vunpack.c.h.b16 %v1911
      %v2178 = vunpack.c.l.b16 %v1912
      %v2179 = vunpack.c.h.b16 %v1912
      %v2180 = vunpack.c.l.b16 %v1913
      %v2181 = vunpack.c.h.b16 %v1913
      %v2182 = vunpack.c.l.b16 %v1914
      %v2183 = vunpack.c.h.b16 %v1914
      %v2184 = vunpack.c.l.b16 %v1915
      %v2185 = vunpack.c.h.b16 %v1915
      %v2186 = vunpack.c.l.b16 %v1916
      %v2187 = vunpack.c.h.b16 %v1916
      %v2188 = vunpack.c.l.b16 %v1917
      %v2189 = vunpack.c.h.b16 %v1917
      %v2190 = vunpack.c.l.b16 %v1918
      %v2191 = vunpack.c.h.b16 %v1918
      %v2192 = vunpack.c.l.b16 %v1919
      %v2193 = vunpack.c.h.b16 %v1919
      %v2194 = vunpack.c.l.b16 %v1920
      %v2195 = vunpack.c.h.b16 %v1920
      %v2196 = vunpack.c.l.b16 %v1921
      %v2197 = vunpack.c.h.b16 %v1921
      %v2198 = vunpack.c.l.b16 %v1922
      %v2199 = vunpack.c.h.b16 %v1922
      %v2200 = vunpack.c.l.b16 %v1923
      %v2201 = vunpack.c.h.b16 %v1923
      %v2202 = vunpack.c.l.b16 %v1924
      %v2203 = vunpack.c.h.b16 %v1924
      %v2204 = vunpack.c.l.b16 %v1925
      %v2205 = vunpack.c.h.b16 %v1925
      %v2206 = vunpack.c.l.b16 %v1926
      %v2207 = vunpack.c.h.b16 %v1926
      %v2208 = vunpack.c.l.b16 %v1927
      %v2209 = vunpack.c.h.b16 %v1927
      %v2210 = vunpack.c.l.b16 %v1928
      %v2211 = vunpack.c.h.b16 %v1928
      %v2212 = vunpack.c.l.b16 %v1929
      %v2213 = vunpack.c.h.b16 %v1929
      %v2214 = vunpack.c.l.b16 %v1930
      %v2215 = vunpack.c.h.b16 %v1930
      %v2216 = vunpack.c.l.b16 %v1931
      %v2217 = vunpack.c.h.b16 %v1931
      %v2218 = vunpack.c.l.b16 %v1932
      %v2219 = vunpack.c.h.b16 %v1932
      %v2220 = vunpack.c.l.b16 %v1933
      %v2221 = vunpack.c.h.b16 %v1933
      %v2222 = vpack.c.b16 %v2036, %v2030
      %v2223 = vpack.c.b16 %v2037, %v2031
      %v2224 = vpack.c.b16 %v2038, %v2032
      %v2225 = vpack.c.b16 %v2039, %v2033
      %v2226 = vpack.c.b16 %v2040, %v2034
      %v2227 = vpack.c.b16 %v2041, %v2035
      %v2228 = vpack.c.b16 %v2048, %v2042
      %v2229 = vpack.c.b16 %v2049, %v2043
      %v2230 = vpack.c.b16 %v2050, %v2044
      %v2231 = vpack.c.b16 %v2051, %v2045
      %v2232 = vpack.c.b16 %v2052, %v2046
      %v2233 = vpack.c.b16 %v2053, %v2047
      %v2234 = vpack.c.b16 %v2060, %v2054
      %v2235 = vpack.c.b16 %v2061, %v2055
      %v2236 = vpack.c.b16 %v2062, %v2056
      %v2237 = vpack.c.b16 %v2063, %v2057
      %v2238 = vpack.c.b16 %v2064, %v2058
      %v2239 = vpack.c.b16 %v2065, %v2059
      %v2240 = vpack.c.b16 %v2072, %v2066
      %v2241 = vpack.c.b16 %v2073, %v2067
      %v2242 = vpack.c.b16 %v2074, %v2068
      %v2243 = vpack.c.b16 %v2075, %v2069
      %v2244 = vpack.c.b16 %v2076, %v2070
      %v2245 = vpack.c.b16 %v2077, %v2071
      %v2246 = vpack.c.b16 %v2084, %v2078
      %v2247 = vpack.c.b16 %v2085, %v2079
      %v2248 = vpack.c.b16 %v2086, %v2080
      %v2249 = vpack.c.b16 %v2087, %v2081
      %v2250 = vpack.c.b16 %v2088, %v2082
      %v2251 = vpack.c.b16 %v2089, %v2083
      %v2252 = vpack.c.b16 %v2096, %v2090
      %v2253 = vpack.c.b16 %v2097, %v2091
      %v2254 = vpack.c.b16 %v2098, %v2092
      %v2255 = vpack.c.b16 %v2099, %v2093
      %v2256 = vpack.c.b16 %v2100, %v2094
      %v2257 = vpack.c.b16 %v2101, %v2095
      %v2258 = vpack.c.b16 %v2108, %v2102
      %v2259 = vpack.c.b16 %v2109, %v2103
      %v2260 = vpack.c.b16 %v2110, %v2104
      %v2261 = vpack.c.b16 %v2111, %v2105
      %v2262 = vpack.c.b16 %v2112, %v2106
      %v2263 = vpack.c.b16 %v2113, %v2107
      %v2264 = vpack.c.b16 %v2120, %v2114
      %v2265 = vpack.c.b16 %v2121, %v2115
      %v2266 = vpack.c.b16 %v2122, %v2116
      %v2267 = vpack.c.b16 %v2123, %v2117
      %v2268 = vpack.c.b16 %v2124, %v2118
      %v2269 = vpack.c.b16 %v2125, %v2119
      %v2270 = vpack.c.b16 %v2132, %v2126
      %v2271 = vpack.c.b16 %v2133, %v2127
      %v2272 = vpack.c.b16 %v2134, %v2128
      %v2273 = vpack.c.b16 %v2135, %v2129
      %v2274 = vpack.c.b16 %v2136, %v2130
      %v2275 = vpack.c.b16 %v2137, %v2131
      %v2276 = vpack.c.b16 %v2144, %v2138
      %v2277 = vpack.c.b16 %v2145, %v2139
      %v2278 = vpack.c.b16 %v2146, %v2140
      %v2279 = vpack.c.b16 %v2147, %v2141
      %v2280 = vpack.c.b16 %v2148, %v2142
      %v2281 = vpack.c.b16 %v2149, %v2143
      %v2282 = vpack.c.b16 %v2156, %v2150
      %v2283 = vpack.c.b16 %v2157, %v2151
      %v2284 = vpack.c.b16 %v2158, %v2152
      %v2285 = vpack.c.b16 %v2159, %v2153
      %v2286 = vpack.c.b16 %v2160, %v2154
      %v2287 = vpack.c.b16 %v2161, %v2155
      %v2288 = vpack.c.b16 %v2168, %v2162
      %v2289 = vpack.c.b16 %v2169, %v2163
      %v2290 = vpack.c.b16 %v2170, %v2164
      %v2291 = vpack.c.b16 %v2171, %v2165
      %v2292 = vpack.c.b16 %v2172, %v2166
      %v2293 = vpack.c.b16 %v2173, %v2167
      %v2294 = vpack.c.b16 %v2180, %v2174
      %v2295 = vpack.c.b16 %v2181, %v2175
      %v2296 = vpack.c.b16 %v2182, %v2176
      %v2297 = vpack.c.b16 %v2183, %v2177
      %v2298 = vpack.c.b16 %v2184, %v2178
      %v2299 = vpack.c.b16 %v2185, %v2179
      %v2300 = vpack.c.b16 %v2192, %v2186
      %v2301 = vpack.c.b16 %v2193, %v2187
      %v2302 = vpack.c.b16 %v2194, %v2188
      %v2303 = vpack.c.b16 %v2195, %v2189
      %v2304 = vpack.c.b16 %v2196, %v2190
      %v2305 = vpack.c.b16 %v2197, %v2191
      %v2306 = vpack.c.b16 %v2204, %v2198
      %v2307 = vpack.c.b16 %v2205, %v2199
      %v2308 = vpack.c.b16 %v2206, %v2200
      %v2309 = vpack.c.b16 %v2207, %v2201
      %v2310 = vpack.c.b16 %v2208, %v2202
      %v2311 = vpack.c.b16 %v2209, %v2203
      %v2312 = vpack.c.b16 %v2216, %v2210
      %v2313 = vpack.c.b16 %v2217, %v2211
      %v2314 = vpack.c.b16 %v2218, %v2212
      %v2315 = vpack.c.b16 %v2219, %v2213
      %v2316 = vpack.c.b16 %v2220, %v2214
      %v2317 = vpack.c.b16 %v2221, %v2215
      %2414 = vmatprep.subr.bf16.mxu0 %v2265
      %2415 = vmatpush1.bf16.msra.mxu0 %v2264
      %2416 = vmatprep.subr.bf16.mxu0 %v2259
      %2417 = vmatpush1.bf16.msra.mxu0 %v2258
      %2418 = vmatprep.subr.bf16.mxu0 %v2253
      %2419 = vmatpush1.bf16.msra.mxu0 %v2252
      %2420 = vmatprep.subr.bf16.mxu0 %v2247
      %2421 = vmatpush1.bf16.msra.mxu0 %v2246
      %2422 = vmatprep.subr.bf16.mxu0 %v2241
      %2423 = vmatpush1.bf16.msra.mxu0 %v2240
      %2424 = vmatprep.subr.bf16.mxu0 %v2235
      %2425 = vmatpush1.bf16.msra.mxu0 %v2234
      %2426 = vmatprep.subr.bf16.mxu0 %v2229
      %2427 = vmatpush1.bf16.msra.mxu0 %v2228
      %2428 = vmatprep.subr.bf16.mxu0 %v2223
      %2429 = vmatpush1.bf16.msra.mxu0 %v2222
      %2430 = vmatprep.subr.bf16.mxu0 %v2313
      %2431 = vmatpush2.bf16.msra.mxu0 %v2312
      %2432 = vmatprep.subr.bf16.mxu0 %v2307
      %2433 = vmatpush2.bf16.msra.mxu0 %v2306
      %2434 = vmatprep.subr.bf16.mxu0 %v2301
      %2435 = vmatpush2.bf16.msra.mxu0 %v2300
      %2436 = vmatprep.subr.bf16.mxu0 %v2295
      %2437 = vmatpush2.bf16.msra.mxu0 %v2294
      %2438 = vmatprep.subr.bf16.mxu0 %v2289
      %2439 = vmatpush2.bf16.msra.mxu0 %v2288
      %2440 = vmatprep.subr.bf16.mxu0 %v2283
      %2441 = vmatpush2.bf16.msra.mxu0 %v2282
      %2442 = vmatprep.subr.bf16.mxu0 %v2277
      %2443 = vmatpush2.bf16.msra.mxu0 %v2276
      %2444 = vmatprep.subr.bf16.mxu0 %v2271
      %2445 = vmatpush2.bf16.msra.mxu0 %v2270
      %2446 = vmatprep.mubr.bf16.mxu0 %v1837
      %2447 = vmatmul.mubr.bf16.gmra.mxu0 %v1836
      %v2448 = vpop.f32.mrf.mxu0
      %v2449 = vadd.f32 0.0, %v2448
      %v2450 = vpop.f32.mrf.mxu0
      %v2451 = vadd.f32 0.0, %v2450
      %v2452 = vpop.f32.mrf.mxu0
      %v2453 = vpop.f32.mrf.mxu0
      %2454 = vdwg.mxu0
      %2455 = vmatprep.subr.bf16.mxu0 %v2267
      %2456 = vmatpush1.bf16.msra.mxu0 %v2266
      %2457 = vmatprep.subr.bf16.mxu0 %v2261
      %2458 = vmatpush1.bf16.msra.mxu0 %v2260
      %2459 = vmatprep.subr.bf16.mxu0 %v2255
      %2460 = vmatpush1.bf16.msra.mxu0 %v2254
      %2461 = vmatprep.subr.bf16.mxu0 %v2249
      %2462 = vmatpush1.bf16.msra.mxu0 %v2248
      %2463 = vmatprep.subr.bf16.mxu0 %v2243
      %2464 = vmatpush1.bf16.msra.mxu0 %v2242
      %2465 = vmatprep.subr.bf16.mxu0 %v2237
      %2466 = vmatpush1.bf16.msra.mxu0 %v2236
      %2467 = vmatprep.subr.bf16.mxu0 %v2231
      %2468 = vmatpush1.bf16.msra.mxu0 %v2230
      %2469 = vmatprep.subr.bf16.mxu0 %v2225
      %2470 = vmatpush1.bf16.msra.mxu0 %v2224
      %2471 = vmatprep.subr.bf16.mxu0 %v2315
      %2472 = vmatpush2.bf16.msra.mxu0 %v2314
      %2473 = vmatprep.subr.bf16.mxu0 %v2309
      %2474 = vmatpush2.bf16.msra.mxu0 %v2308
      %2475 = vmatprep.subr.bf16.mxu0 %v2303
      %2476 = vmatpush2.bf16.msra.mxu0 %v2302
      %2477 = vmatprep.subr.bf16.mxu0 %v2297
      %2478 = vmatpush2.bf16.msra.mxu0 %v2296
      %2479 = vmatprep.subr.bf16.mxu0 %v2291
      %2480 = vmatpush2.bf16.msra.mxu0 %v2290
      %2481 = vmatprep.subr.bf16.mxu0 %v2285
      %2482 = vmatpush2.bf16.msra.mxu0 %v2284
      %2483 = vmatprep.subr.bf16.mxu0 %v2279
      %2484 = vmatpush2.bf16.msra.mxu0 %v2278
      %2485 = vmatprep.subr.bf16.mxu0 %v2273
      %2486 = vmatpush2.bf16.msra.mxu0 %v2272
      %2487 = vmatprep.mubr.bf16.mxu0 %v1837
      %2488 = vmatmul.mubr.bf16.gmra.mxu0 %v1836
      %v2489 = vpop.f32.mrf.mxu0
      %v2490 = vadd.f32 0.0, %v2489
      %v2491 = vpop.f32.mrf.mxu0
      %v2492 = vadd.f32 0.0, %v2491
      %v2493 = vpop.f32.mrf.mxu0
      %v2494 = vpop.f32.mrf.mxu0
      %2495 = vdwg.mxu0
      %2496 = vmatprep.subr.bf16.mxu0 %v2269
      %2497 = vmatpush1.bf16.msra.mxu0 %v2268
      %2498 = vmatprep.subr.bf16.mxu0 %v2263
      %2499 = vmatpush1.bf16.msra.mxu0 %v2262
      %2500 = vmatprep.subr.bf16.mxu0 %v2257
      %2501 = vmatpush1.bf16.msra.mxu0 %v2256
      %2502 = vmatprep.subr.bf16.mxu0 %v2251
      %2503 = vmatpush1.bf16.msra.mxu0 %v2250
      %2504 = vmatprep.subr.bf16.mxu0 %v2245
      %2505 = vmatpush1.bf16.msra.mxu0 %v2244
      %2506 = vmatprep.subr.bf16.mxu0 %v2239
      %2507 = vmatpush1.bf16.msra.mxu0 %v2238
      %2508 = vmatprep.subr.bf16.mxu0 %v2233
      %2509 = vmatpush1.bf16.msra.mxu0 %v2232
      %2510 = vmatprep.subr.bf16.mxu0 %v2227
      %2511 = vmatpush1.bf16.msra.mxu0 %v2226
      %2512 = vmatprep.subr.bf16.mxu0 %v2317
      %2513 = vmatpush2.bf16.msra.mxu0 %v2316
      %2514 = vmatprep.subr.bf16.mxu0 %v2311
      %2515 = vmatpush2.bf16.msra.mxu0 %v2310
      %2516 = vmatprep.subr.bf16.mxu0 %v2305
      %2517 = vmatpush2.bf16.msra.mxu0 %v2304
      %2518 = vmatprep.subr.bf16.mxu0 %v2299
      %2519 = vmatpush2.bf16.msra.mxu0 %v2298
      %2520 = vmatprep.subr.bf16.mxu0 %v2293
      %2521 = vmatpush2.bf16.msra.mxu0 %v2292
      %2522 = vmatprep.subr.bf16.mxu0 %v2287
      %2523 = vmatpush2.bf16.msra.mxu0 %v2286
      %2524 = vmatprep.subr.bf16.mxu0 %v2281
      %2525 = vmatpush2.bf16.msra.mxu0 %v2280
      %2526 = vmatprep.subr.bf16.mxu0 %v2275
      %2527 = vmatpush2.bf16.msra.mxu0 %v2274
      %2528 = vmatprep.mubr.bf16.mxu0 %v1837
      %2529 = vmatmul.mubr.bf16.gmra.mxu0 %v1836
      %v2530 = vpop.f32.mrf.mxu0
      %v2531 = vadd.f32 0.0, %v2530
      %v2532 = vpop.f32.mrf.mxu0
      %v2533 = vadd.f32 0.0, %v2532
      %v2534 = vpop.f32.mrf.mxu0
      %v2535 = vpop.f32.mrf.mxu0
      %2536 = vdwg.mxu0
      %s2537 = scalar_lea.vmem %s192, 2
      %v2538 = vld [vmem:[%s2537] ss:$8 sm:$0xf]
      %v2539 = vld [vmem:[%s2537] ss:$8 sm:$0x30]
      %v2540 = vor.u32 %v2538, %v2539
      %v2543 = vcombine.low %v2449, %v2451
      %v2545 = vunpack.c.l.s4 1966171168
      %v2546 = vunpack.c.0.s8 %v2545
      %v2547 = vlaneseq
      %v2548 = vshrl.u32 %v2547, 7
      %v2549 = vsub.s32 %v2546, %v2548
      %v2550 = vrot.slane %v2543, %v2549
      %v2552 = vunpack.c.l.s4 1966171168
      %v2553 = vunpack.c.0.s8 %v2552
      %v2554 = vlaneseq
      %v2555 = vshrl.u32 %v2554, 7
      %v2556 = vsub.s32 %v2553, %v2555
      %v2557 = vrot.slane %v2550, %v2556
      %v2559 = vadd.f32 %v2540, %v2557
      %v2560 = vxor.u32 %v2559, 2147483648
      %v2561 = vmul.f32 %v2560, 1.442695
      %v2562 = vpow.pop %v2561
      %v2563 = vadd.f32 %v2562, 1.0
      %v2564 = vrcp.pop %v2563
      %v2565 = vmul.f32 1.0, %v2564
      %v2567 = vrot.slane %v2540, 2
      %v2571 = vcombine.low %v2490, %v2492
      %v2573 = vunpack.c.l.s4 1966171168
      %v2574 = vunpack.c.0.s8 %v2573
      %v2575 = vlaneseq
      %v2576 = vshrl.u32 %v2575, 7
      %v2577 = vsub.s32 %v2574, %v2576
      %v2578 = vrot.slane %v2571, %v2577
      %v2580 = vunpack.c.l.s4 1966171168
      %v2581 = vunpack.c.0.s8 %v2580
      %v2582 = vlaneseq
      %v2583 = vshrl.u32 %v2582, 7
      %v2584 = vsub.s32 %v2581, %v2583
      %v2585 = vrot.slane %v2578, %v2584
      %v2587 = vadd.f32 %v2567, %v2585
      %v2588 = vxor.u32 %v2587, 2147483648
      %v2589 = vmul.f32 %v2588, 1.442695
      %v2590 = vpow.pop %v2589
      %v2591 = vadd.f32 %v2590, 1.0
      %v2592 = vrcp.pop %v2591
      %v2593 = vmul.f32 1.0, %v2592
      %v2594 = vadd.f32 %v2531, %v982
      %v2595 = vadd.f32 %v2533, %v986
      %v2598 = vcombine.low %v2594, %v2595
      %v2600 = vunpack.c.l.s4 1966171168
      %v2601 = vunpack.c.0.s8 %v2600
      %v2602 = vlaneseq
      %v2603 = vshrl.u32 %v2602, 7
      %v2604 = vsub.s32 %v2601, %v2603
      %v2605 = vrot.slane %v2598, %v2604
      %v2607 = vunpack.c.l.s4 1966171168
      %v2608 = vunpack.c.0.s8 %v2607
      %v2609 = vlaneseq
      %v2610 = vshrl.u32 %v2609, 7
      %v2611 = vsub.s32 %v2608, %v2610
      %v2612 = vrot.slane %v2605, %v2611
      %v2614 = vmul.f32 %v2565, %v2612
      %v2615 = vrot.slane %v2540, 4
      %v2617 = vadd.f32 %v2615, %v2614
      %v2618 = vtanh.pop %v2617
      %v2619 = vsub.f32 1.0, %v2593
      %v2620 = vmul.f32 %v2619, %v2618
      %v2621 = vmul.f32 %v2593, %v1821
      %v2622 = vadd.f32 %v2620, %v2621
      %s2623 = scalar_lea.vmem %s197, 2
      %2624 = vst.msk [vmem:[%s2623] ss:$8 sm:$0x3] %vm1021, %v2622
      %2625 = vst.msk [vmem:[%s2623] ss:$8 sm:$0x0] %vm1021, %v2622
      %v2627 = vlaneseq
      %v2628 = vshrl.u32 %v2627, 7
      %v2629 = vsub.s32 0, %v2628
      %v2630 = vrot.slane %v2622, %v2629
      %v2631 = vlaneseq
      %v2632 = vshrl.u32 %v2631, 7
      %v2633 = vsub.s32 1, %v2632
      %v2634 = vrot.slane %v2622, %v2633
      %v2637 = vpack.c.bf16 %v2630, %v2630
      %v2638 = vpack.c.bf16 %v2634, %v2634
      %v2639 = vld [vmem:[%s1] sm:$0xff]
      %v2640 = vld [vmem:[%s1 + $0x8] sm:$0xff]
      %v2641 = vld [vmem:[%s1 + $0x10] sm:$0xff]
      %v2642 = vld [vmem:[%s1 + $0x18] sm:$0xff]
      %v2643 = vld [vmem:[%s1 + $0x20] sm:$0xff]
      %v2644 = vld [vmem:[%s1 + $0x28] sm:$0xff]
      %v2645 = vld [vmem:[%s1 + $0x30] sm:$0xff]
      %v2646 = vld [vmem:[%s1 + $0x38] sm:$0xff]
      %v2647 = vld [vmem:[%s1 + $0x40] sm:$0xff]
      %v2648 = vld [vmem:[%s1 + $0x48] sm:$0xff]
      %v2649 = vld [vmem:[%s1 + $0x50] sm:$0xff]
      %v2650 = vld [vmem:[%s1 + $0x58] sm:$0xff]
      %v2651 = vld [vmem:[%s1 + $0x60] sm:$0xff]
      %v2652 = vld [vmem:[%s1 + $0x68] sm:$0xff]
      %v2653 = vld [vmem:[%s1 + $0x70] sm:$0xff]
      %v2654 = vld [vmem:[%s1 + $0x78] sm:$0xff]
      %v2655 = vld [vmem:[%s1 + $0x80] sm:$0xff]
      %v2656 = vld [vmem:[%s1 + $0x88] sm:$0xff]
      %v2657 = vld [vmem:[%s1 + $0x90] sm:$0xff]
      %v2658 = vld [vmem:[%s1 + $0x98] sm:$0xff]
      %v2659 = vld [vmem:[%s1 + $0xa0] sm:$0xff]
      %v2660 = vld [vmem:[%s1 + $0xa8] sm:$0xff]
      %v2661 = vld [vmem:[%s1 + $0xb0] sm:$0xff]
      %v2662 = vld [vmem:[%s1 + $0xb8] sm:$0xff]
      %v2663 = vld [vmem:[%s1 + $0xc0] sm:$0xff]
      %v2664 = vld [vmem:[%s1 + $0xc8] sm:$0xff]
      %v2665 = vld [vmem:[%s1 + $0xd0] sm:$0xff]
      %v2666 = vld [vmem:[%s1 + $0xd8] sm:$0xff]
      %v2667 = vld [vmem:[%s1 + $0xe0] sm:$0xff]
      %v2668 = vld [vmem:[%s1 + $0xe8] sm:$0xff]
      %v2669 = vld [vmem:[%s1 + $0xf0] sm:$0xff]
      %v2670 = vld [vmem:[%s1 + $0xf8] sm:$0xff]
      %v2671 = vld [vmem:[%s1 + $0x100] sm:$0xff]
      %v2672 = vld [vmem:[%s1 + $0x108] sm:$0xff]
      %v2673 = vld [vmem:[%s1 + $0x110] sm:$0xff]
      %v2674 = vld [vmem:[%s1 + $0x118] sm:$0xff]
      %v2675 = vld [vmem:[%s1 + $0x120] sm:$0xff]
      %v2676 = vld [vmem:[%s1 + $0x128] sm:$0xff]
      %v2677 = vld [vmem:[%s1 + $0x130] sm:$0xff]
      %v2678 = vld [vmem:[%s1 + $0x138] sm:$0xff]
      %v2679 = vld [vmem:[%s1 + $0x140] sm:$0xff]
      %v2680 = vld [vmem:[%s1 + $0x148] sm:$0xff]
      %v2681 = vld [vmem:[%s1 + $0x150] sm:$0xff]
      %v2682 = vld [vmem:[%s1 + $0x158] sm:$0xff]
      %v2683 = vld [vmem:[%s1 + $0x160] sm:$0xff]
      %v2684 = vld [vmem:[%s1 + $0x168] sm:$0xff]
      %v2685 = vld [vmem:[%s1 + $0x170] sm:$0xff]
      %v2686 = vld [vmem:[%s1 + $0x178] sm:$0xff]
      %v2687 = vld [vmem:[%s1 + $0x180] sm:$0xff]
      %v2688 = vld [vmem:[%s1 + $0x188] sm:$0xff]
      %v2689 = vld [vmem:[%s1 + $0x190] sm:$0xff]
      %v2690 = vld [vmem:[%s1 + $0x198] sm:$0xff]
      %v2691 = vld [vmem:[%s1 + $0x1a0] sm:$0xff]
      %v2692 = vld [vmem:[%s1 + $0x1a8] sm:$0xff]
      %v2693 = vld [vmem:[%s1 + $0x1b0] sm:$0xff]
      %v2694 = vld [vmem:[%s1 + $0x1b8] sm:$0xff]
      %v2695 = vld [vmem:[%s1 + $0x1c0] sm:$0xff]
      %v2696 = vld [vmem:[%s1 + $0x1c8] sm:$0xff]
      %v2697 = vld [vmem:[%s1 + $0x1d0] sm:$0xff]
      %v2698 = vld [vmem:[%s1 + $0x1d8] sm:$0xff]
      %v2699 = vld [vmem:[%s1 + $0x1e0] sm:$0xff]
      %v2700 = vld [vmem:[%s1 + $0x1e8] sm:$0xff]
      %v2701 = vld [vmem:[%s1 + $0x1f0] sm:$0xff]
      %v2702 = vld [vmem:[%s1 + $0x1f8] sm:$0xff]
      %v2703 = vld [vmem:[%s1 + $0x200] sm:$0xff]
      %v2704 = vld [vmem:[%s1 + $0x208] sm:$0xff]
      %v2705 = vld [vmem:[%s1 + $0x210] sm:$0xff]
      %v2706 = vld [vmem:[%s1 + $0x218] sm:$0xff]
      %v2707 = vld [vmem:[%s1 + $0x220] sm:$0xff]
      %v2708 = vld [vmem:[%s1 + $0x228] sm:$0xff]
      %v2709 = vld [vmem:[%s1 + $0x230] sm:$0xff]
      %v2710 = vld [vmem:[%s1 + $0x238] sm:$0xff]
      %v2711 = vld [vmem:[%s1 + $0x240] sm:$0xff]
      %v2712 = vld [vmem:[%s1 + $0x248] sm:$0xff]
      %v2713 = vld [vmem:[%s1 + $0x250] sm:$0xff]
      %v2714 = vld [vmem:[%s1 + $0x258] sm:$0xff]
      %v2715 = vld [vmem:[%s1 + $0x260] sm:$0xff]
      %v2716 = vld [vmem:[%s1 + $0x268] sm:$0xff]
      %v2717 = vld [vmem:[%s1 + $0x270] sm:$0xff]
      %v2718 = vld [vmem:[%s1 + $0x278] sm:$0xff]
      %v2719 = vld [vmem:[%s1 + $0x280] sm:$0xff]
      %v2720 = vld [vmem:[%s1 + $0x288] sm:$0xff]
      %v2721 = vld [vmem:[%s1 + $0x290] sm:$0xff]
      %v2722 = vld [vmem:[%s1 + $0x298] sm:$0xff]
      %v2723 = vld [vmem:[%s1 + $0x2a0] sm:$0xff]
      %v2724 = vld [vmem:[%s1 + $0x2a8] sm:$0xff]
      %v2725 = vld [vmem:[%s1 + $0x2b0] sm:$0xff]
      %v2726 = vld [vmem:[%s1 + $0x2b8] sm:$0xff]
      %v2727 = vld [vmem:[%s1 + $0x2c0] sm:$0xff]
      %v2728 = vld [vmem:[%s1 + $0x2c8] sm:$0xff]
      %v2729 = vld [vmem:[%s1 + $0x2d0] sm:$0xff]
      %v2730 = vld [vmem:[%s1 + $0x2d8] sm:$0xff]
      %v2731 = vld [vmem:[%s1 + $0x2e0] sm:$0xff]
      %v2732 = vld [vmem:[%s1 + $0x2e8] sm:$0xff]
      %v2733 = vld [vmem:[%s1 + $0x2f0] sm:$0xff]
      %v2734 = vld [vmem:[%s1 + $0x2f8] sm:$0xff]
      %v2831 = vunpack.c.l.b16 %v2639
      %v2832 = vunpack.c.h.b16 %v2639
      %v2833 = vunpack.c.l.b16 %v2640
      %v2834 = vunpack.c.h.b16 %v2640
      %v2835 = vunpack.c.l.b16 %v2641
      %v2836 = vunpack.c.h.b16 %v2641
      %v2837 = vunpack.c.l.b16 %v2642
      %v2838 = vunpack.c.h.b16 %v2642
      %v2839 = vunpack.c.l.b16 %v2643
      %v2840 = vunpack.c.h.b16 %v2643
      %v2841 = vunpack.c.l.b16 %v2644
      %v2842 = vunpack.c.h.b16 %v2644
      %v2843 = vunpack.c.l.b16 %v2645
      %v2844 = vunpack.c.h.b16 %v2645
      %v2845 = vunpack.c.l.b16 %v2646
      %v2846 = vunpack.c.h.b16 %v2646
      %v2847 = vunpack.c.l.b16 %v2647
      %v2848 = vunpack.c.h.b16 %v2647
      %v2849 = vunpack.c.l.b16 %v2648
      %v2850 = vunpack.c.h.b16 %v2648
      %v2851 = vunpack.c.l.b16 %v2649
      %v2852 = vunpack.c.h.b16 %v2649
      %v2853 = vunpack.c.l.b16 %v2650
      %v2854 = vunpack.c.h.b16 %v2650
      %v2855 = vunpack.c.l.b16 %v2651
      %v2856 = vunpack.c.h.b16 %v2651
      %v2857 = vunpack.c.l.b16 %v2652
      %v2858 = vunpack.c.h.b16 %v2652
      %v2859 = vunpack.c.l.b16 %v2653
      %v2860 = vunpack.c.h.b16 %v2653
      %v2861 = vunpack.c.l.b16 %v2654
      %v2862 = vunpack.c.h.b16 %v2654
      %v2863 = vunpack.c.l.b16 %v2655
      %v2864 = vunpack.c.h.b16 %v2655
      %v2865 = vunpack.c.l.b16 %v2656
      %v2866 = vunpack.c.h.b16 %v2656
      %v2867 = vunpack.c.l.b16 %v2657
      %v2868 = vunpack.c.h.b16 %v2657
      %v2869 = vunpack.c.l.b16 %v2658
      %v2870 = vunpack.c.h.b16 %v2658
      %v2871 = vunpack.c.l.b16 %v2659
      %v2872 = vunpack.c.h.b16 %v2659
      %v2873 = vunpack.c.l.b16 %v2660
      %v2874 = vunpack.c.h.b16 %v2660
      %v2875 = vunpack.c.l.b16 %v2661
      %v2876 = vunpack.c.h.b16 %v2661
      %v2877 = vunpack.c.l.b16 %v2662
      %v2878 = vunpack.c.h.b16 %v2662
      %v2879 = vunpack.c.l.b16 %v2663
      %v2880 = vunpack.c.h.b16 %v2663
      %v2881 = vunpack.c.l.b16 %v2664
      %v2882 = vunpack.c.h.b16 %v2664
      %v2883 = vunpack.c.l.b16 %v2665
      %v2884 = vunpack.c.h.b16 %v2665
      %v2885 = vunpack.c.l.b16 %v2666
      %v2886 = vunpack.c.h.b16 %v2666
      %v2887 = vunpack.c.l.b16 %v2667
      %v2888 = vunpack.c.h.b16 %v2667
      %v2889 = vunpack.c.l.b16 %v2668
      %v2890 = vunpack.c.h.b16 %v2668
      %v2891 = vunpack.c.l.b16 %v2669
      %v2892 = vunpack.c.h.b16 %v2669
      %v2893 = vunpack.c.l.b16 %v2670
      %v2894 = vunpack.c.h.b16 %v2670
      %v2895 = vunpack.c.l.b16 %v2671
      %v2896 = vunpack.c.h.b16 %v2671
      %v2897 = vunpack.c.l.b16 %v2672
      %v2898 = vunpack.c.h.b16 %v2672
      %v2899 = vunpack.c.l.b16 %v2673
      %v2900 = vunpack.c.h.b16 %v2673
      %v2901 = vunpack.c.l.b16 %v2674
      %v2902 = vunpack.c.h.b16 %v2674
      %v2903 = vunpack.c.l.b16 %v2675
      %v2904 = vunpack.c.h.b16 %v2675
      %v2905 = vunpack.c.l.b16 %v2676
      %v2906 = vunpack.c.h.b16 %v2676
      %v2907 = vunpack.c.l.b16 %v2677
      %v2908 = vunpack.c.h.b16 %v2677
      %v2909 = vunpack.c.l.b16 %v2678
      %v2910 = vunpack.c.h.b16 %v2678
      %v2911 = vunpack.c.l.b16 %v2679
      %v2912 = vunpack.c.h.b16 %v2679
      %v2913 = vunpack.c.l.b16 %v2680
      %v2914 = vunpack.c.h.b16 %v2680
      %v2915 = vunpack.c.l.b16 %v2681
      %v2916 = vunpack.c.h.b16 %v2681
      %v2917 = vunpack.c.l.b16 %v2682
      %v2918 = vunpack.c.h.b16 %v2682
      %v2919 = vunpack.c.l.b16 %v2683
      %v2920 = vunpack.c.h.b16 %v2683
      %v2921 = vunpack.c.l.b16 %v2684
      %v2922 = vunpack.c.h.b16 %v2684
      %v2923 = vunpack.c.l.b16 %v2685
      %v2924 = vunpack.c.h.b16 %v2685
      %v2925 = vunpack.c.l.b16 %v2686
      %v2926 = vunpack.c.h.b16 %v2686
      %v2927 = vunpack.c.l.b16 %v2687
      %v2928 = vunpack.c.h.b16 %v2687
      %v2929 = vunpack.c.l.b16 %v2688
      %v2930 = vunpack.c.h.b16 %v2688
      %v2931 = vunpack.c.l.b16 %v2689
      %v2932 = vunpack.c.h.b16 %v2689
      %v2933 = vunpack.c.l.b16 %v2690
      %v2934 = vunpack.c.h.b16 %v2690
      %v2935 = vunpack.c.l.b16 %v2691
      %v2936 = vunpack.c.h.b16 %v2691
      %v2937 = vunpack.c.l.b16 %v2692
      %v2938 = vunpack.c.h.b16 %v2692
      %v2939 = vunpack.c.l.b16 %v2693
      %v2940 = vunpack.c.h.b16 %v2693
      %v2941 = vunpack.c.l.b16 %v2694
      %v2942 = vunpack.c.h.b16 %v2694
      %v2943 = vunpack.c.l.b16 %v2695
      %v2944 = vunpack.c.h.b16 %v2695
      %v2945 = vunpack.c.l.b16 %v2696
      %v2946 = vunpack.c.h.b16 %v2696
      %v2947 = vunpack.c.l.b16 %v2697
      %v2948 = vunpack.c.h.b16 %v2697
      %v2949 = vunpack.c.l.b16 %v2698
      %v2950 = vunpack.c.h.b16 %v2698
      %v2951 = vunpack.c.l.b16 %v2699
      %v2952 = vunpack.c.h.b16 %v2699
      %v2953 = vunpack.c.l.b16 %v2700
      %v2954 = vunpack.c.h.b16 %v2700
      %v2955 = vunpack.c.l.b16 %v2701
      %v2956 = vunpack.c.h.b16 %v2701
      %v2957 = vunpack.c.l.b16 %v2702
      %v2958 = vunpack.c.h.b16 %v2702
      %v2959 = vunpack.c.l.b16 %v2703
      %v2960 = vunpack.c.h.b16 %v2703
      %v2961 = vunpack.c.l.b16 %v2704
      %v2962 = vunpack.c.h.b16 %v2704
      %v2963 = vunpack.c.l.b16 %v2705
      %v2964 = vunpack.c.h.b16 %v2705
      %v2965 = vunpack.c.l.b16 %v2706
      %v2966 = vunpack.c.h.b16 %v2706
      %v2967 = vunpack.c.l.b16 %v2707
      %v2968 = vunpack.c.h.b16 %v2707
      %v2969 = vunpack.c.l.b16 %v2708
      %v2970 = vunpack.c.h.b16 %v2708
      %v2971 = vunpack.c.l.b16 %v2709
      %v2972 = vunpack.c.h.b16 %v2709
      %v2973 = vunpack.c.l.b16 %v2710
      %v2974 = vunpack.c.h.b16 %v2710
      %v2975 = vunpack.c.l.b16 %v2711
      %v2976 = vunpack.c.h.b16 %v2711
      %v2977 = vunpack.c.l.b16 %v2712
      %v2978 = vunpack.c.h.b16 %v2712
      %v2979 = vunpack.c.l.b16 %v2713
      %v2980 = vunpack.c.h.b16 %v2713
      %v2981 = vunpack.c.l.b16 %v2714
      %v2982 = vunpack.c.h.b16 %v2714
      %v2983 = vunpack.c.l.b16 %v2715
      %v2984 = vunpack.c.h.b16 %v2715
      %v2985 = vunpack.c.l.b16 %v2716
      %v2986 = vunpack.c.h.b16 %v2716
      %v2987 = vunpack.c.l.b16 %v2717
      %v2988 = vunpack.c.h.b16 %v2717
      %v2989 = vunpack.c.l.b16 %v2718
      %v2990 = vunpack.c.h.b16 %v2718
      %v2991 = vunpack.c.l.b16 %v2719
      %v2992 = vunpack.c.h.b16 %v2719
      %v2993 = vunpack.c.l.b16 %v2720
      %v2994 = vunpack.c.h.b16 %v2720
      %v2995 = vunpack.c.l.b16 %v2721
      %v2996 = vunpack.c.h.b16 %v2721
      %v2997 = vunpack.c.l.b16 %v2722
      %v2998 = vunpack.c.h.b16 %v2722
      %v2999 = vunpack.c.l.b16 %v2723
      %v3000 = vunpack.c.h.b16 %v2723
      %v3001 = vunpack.c.l.b16 %v2724
      %v3002 = vunpack.c.h.b16 %v2724
      %v3003 = vunpack.c.l.b16 %v2725
      %v3004 = vunpack.c.h.b16 %v2725
      %v3005 = vunpack.c.l.b16 %v2726
      %v3006 = vunpack.c.h.b16 %v2726
      %v3007 = vunpack.c.l.b16 %v2727
      %v3008 = vunpack.c.h.b16 %v2727
      %v3009 = vunpack.c.l.b16 %v2728
      %v3010 = vunpack.c.h.b16 %v2728
      %v3011 = vunpack.c.l.b16 %v2729
      %v3012 = vunpack.c.h.b16 %v2729
      %v3013 = vunpack.c.l.b16 %v2730
      %v3014 = vunpack.c.h.b16 %v2730
      %v3015 = vunpack.c.l.b16 %v2731
      %v3016 = vunpack.c.h.b16 %v2731
      %v3017 = vunpack.c.l.b16 %v2732
      %v3018 = vunpack.c.h.b16 %v2732
      %v3019 = vunpack.c.l.b16 %v2733
      %v3020 = vunpack.c.h.b16 %v2733
      %v3021 = vunpack.c.l.b16 %v2734
      %v3022 = vunpack.c.h.b16 %v2734
      %v3023 = vpack.c.b16 %v2837, %v2831
      %v3024 = vpack.c.b16 %v2838, %v2832
      %v3025 = vpack.c.b16 %v2839, %v2833
      %v3026 = vpack.c.b16 %v2840, %v2834
      %v3027 = vpack.c.b16 %v2841, %v2835
      %v3028 = vpack.c.b16 %v2842, %v2836
      %v3029 = vpack.c.b16 %v2849, %v2843
      %v3030 = vpack.c.b16 %v2850, %v2844
      %v3031 = vpack.c.b16 %v2851, %v2845
      %v3032 = vpack.c.b16 %v2852, %v2846
      %v3033 = vpack.c.b16 %v2853, %v2847
      %v3034 = vpack.c.b16 %v2854, %v2848
      %v3035 = vpack.c.b16 %v2861, %v2855
      %v3036 = vpack.c.b16 %v2862, %v2856
      %v3037 = vpack.c.b16 %v2863, %v2857
      %v3038 = vpack.c.b16 %v2864, %v2858
      %v3039 = vpack.c.b16 %v2865, %v2859
      %v3040 = vpack.c.b16 %v2866, %v2860
      %v3041 = vpack.c.b16 %v2873, %v2867
      %v3042 = vpack.c.b16 %v2874, %v2868
      %v3043 = vpack.c.b16 %v2875, %v2869
      %v3044 = vpack.c.b16 %v2876, %v2870
      %v3045 = vpack.c.b16 %v2877, %v2871
      %v3046 = vpack.c.b16 %v2878, %v2872
      %v3047 = vpack.c.b16 %v2885, %v2879
      %v3048 = vpack.c.b16 %v2886, %v2880
      %v3049 = vpack.c.b16 %v2887, %v2881
      %v3050 = vpack.c.b16 %v2888, %v2882
      %v3051 = vpack.c.b16 %v2889, %v2883
      %v3052 = vpack.c.b16 %v2890, %v2884
      %v3053 = vpack.c.b16 %v2897, %v2891
      %v3054 = vpack.c.b16 %v2898, %v2892
      %v3055 = vpack.c.b16 %v2899, %v2893
      %v3056 = vpack.c.b16 %v2900, %v2894
      %v3057 = vpack.c.b16 %v2901, %v2895
      %v3058 = vpack.c.b16 %v2902, %v2896
      %v3059 = vpack.c.b16 %v2909, %v2903
      %v3060 = vpack.c.b16 %v2910, %v2904
      %v3061 = vpack.c.b16 %v2911, %v2905
      %v3062 = vpack.c.b16 %v2912, %v2906
      %v3063 = vpack.c.b16 %v2913, %v2907
      %v3064 = vpack.c.b16 %v2914, %v2908
      %v3065 = vpack.c.b16 %v2921, %v2915
      %v3066 = vpack.c.b16 %v2922, %v2916
      %v3067 = vpack.c.b16 %v2923, %v2917
      %v3068 = vpack.c.b16 %v2924, %v2918
      %v3069 = vpack.c.b16 %v2925, %v2919
      %v3070 = vpack.c.b16 %v2926, %v2920
      %v3071 = vpack.c.b16 %v2933, %v2927
      %v3072 = vpack.c.b16 %v2934, %v2928
      %v3073 = vpack.c.b16 %v2935, %v2929
      %v3074 = vpack.c.b16 %v2936, %v2930
      %v3075 = vpack.c.b16 %v2937, %v2931
      %v3076 = vpack.c.b16 %v2938, %v2932
      %v3077 = vpack.c.b16 %v2945, %v2939
      %v3078 = vpack.c.b16 %v2946, %v2940
      %v3079 = vpack.c.b16 %v2947, %v2941
      %v3080 = vpack.c.b16 %v2948, %v2942
      %v3081 = vpack.c.b16 %v2949, %v2943
      %v3082 = vpack.c.b16 %v2950, %v2944
      %v3083 = vpack.c.b16 %v2957, %v2951
      %v3084 = vpack.c.b16 %v2958, %v2952
      %v3085 = vpack.c.b16 %v2959, %v2953
      %v3086 = vpack.c.b16 %v2960, %v2954
      %v3087 = vpack.c.b16 %v2961, %v2955
      %v3088 = vpack.c.b16 %v2962, %v2956
      %v3089 = vpack.c.b16 %v2969, %v2963
      %v3090 = vpack.c.b16 %v2970, %v2964
      %v3091 = vpack.c.b16 %v2971, %v2965
      %v3092 = vpack.c.b16 %v2972, %v2966
      %v3093 = vpack.c.b16 %v2973, %v2967
      %v3094 = vpack.c.b16 %v2974, %v2968
      %v3095 = vpack.c.b16 %v2981, %v2975
      %v3096 = vpack.c.b16 %v2982, %v2976
      %v3097 = vpack.c.b16 %v2983, %v2977
      %v3098 = vpack.c.b16 %v2984, %v2978
      %v3099 = vpack.c.b16 %v2985, %v2979
      %v3100 = vpack.c.b16 %v2986, %v2980
      %v3101 = vpack.c.b16 %v2993, %v2987
      %v3102 = vpack.c.b16 %v2994, %v2988
      %v3103 = vpack.c.b16 %v2995, %v2989
      %v3104 = vpack.c.b16 %v2996, %v2990
      %v3105 = vpack.c.b16 %v2997, %v2991
      %v3106 = vpack.c.b16 %v2998, %v2992
      %v3107 = vpack.c.b16 %v3005, %v2999
      %v3108 = vpack.c.b16 %v3006, %v3000
      %v3109 = vpack.c.b16 %v3007, %v3001
      %v3110 = vpack.c.b16 %v3008, %v3002
      %v3111 = vpack.c.b16 %v3009, %v3003
      %v3112 = vpack.c.b16 %v3010, %v3004
      %v3113 = vpack.c.b16 %v3017, %v3011
      %v3114 = vpack.c.b16 %v3018, %v3012
      %v3115 = vpack.c.b16 %v3019, %v3013
      %v3116 = vpack.c.b16 %v3020, %v3014
      %v3117 = vpack.c.b16 %v3021, %v3015
      %v3118 = vpack.c.b16 %v3022, %v3016
      %3215 = vmatprep.subr.bf16.mxu0 %v3066
      %3216 = vmatpush1.bf16.msra.mxu0 %v3065
      %3217 = vmatprep.subr.bf16.mxu0 %v3060
      %3218 = vmatpush1.bf16.msra.mxu0 %v3059
      %3219 = vmatprep.subr.bf16.mxu0 %v3054
      %3220 = vmatpush1.bf16.msra.mxu0 %v3053
      %3221 = vmatprep.subr.bf16.mxu0 %v3048
      %3222 = vmatpush1.bf16.msra.mxu0 %v3047
      %3223 = vmatprep.subr.bf16.mxu0 %v3042
      %3224 = vmatpush1.bf16.msra.mxu0 %v3041
      %3225 = vmatprep.subr.bf16.mxu0 %v3036
      %3226 = vmatpush1.bf16.msra.mxu0 %v3035
      %3227 = vmatprep.subr.bf16.mxu0 %v3030
      %3228 = vmatpush1.bf16.msra.mxu0 %v3029
      %3229 = vmatprep.subr.bf16.mxu0 %v3024
      %3230 = vmatpush1.bf16.msra.mxu0 %v3023
      %3231 = vmatprep.subr.bf16.mxu0 %v3114
      %3232 = vmatpush2.bf16.msra.mxu0 %v3113
      %3233 = vmatprep.subr.bf16.mxu0 %v3108
      %3234 = vmatpush2.bf16.msra.mxu0 %v3107
      %3235 = vmatprep.subr.bf16.mxu0 %v3102
      %3236 = vmatpush2.bf16.msra.mxu0 %v3101
      %3237 = vmatprep.subr.bf16.mxu0 %v3096
      %3238 = vmatpush2.bf16.msra.mxu0 %v3095
      %3239 = vmatprep.subr.bf16.mxu0 %v3090
      %3240 = vmatpush2.bf16.msra.mxu0 %v3089
      %3241 = vmatprep.subr.bf16.mxu0 %v3084
      %3242 = vmatpush2.bf16.msra.mxu0 %v3083
      %3243 = vmatprep.subr.bf16.mxu0 %v3078
      %3244 = vmatpush2.bf16.msra.mxu0 %v3077
      %3245 = vmatprep.subr.bf16.mxu0 %v3072
      %3246 = vmatpush2.bf16.msra.mxu0 %v3071
      %3247 = vmatprep.mubr.bf16.mxu0 %v2638
      %3248 = vmatmul.mubr.bf16.gmra.mxu0 %v2637
      %v3249 = vpop.f32.mrf.mxu0
      %v3250 = vadd.f32 0.0, %v3249
      %v3251 = vpop.f32.mrf.mxu0
      %v3252 = vadd.f32 0.0, %v3251
      %v3253 = vpop.f32.mrf.mxu0
      %v3254 = vpop.f32.mrf.mxu0
      %3255 = vdwg.mxu0
      %3256 = vmatprep.subr.bf16.mxu0 %v3068
      %3257 = vmatpush1.bf16.msra.mxu0 %v3067
      %3258 = vmatprep.subr.bf16.mxu0 %v3062
      %3259 = vmatpush1.bf16.msra.mxu0 %v3061
      %3260 = vmatprep.subr.bf16.mxu0 %v3056
      %3261 = vmatpush1.bf16.msra.mxu0 %v3055
      %3262 = vmatprep.subr.bf16.mxu0 %v3050
      %3263 = vmatpush1.bf16.msra.mxu0 %v3049
      %3264 = vmatprep.subr.bf16.mxu0 %v3044
      %3265 = vmatpush1.bf16.msra.mxu0 %v3043
      %3266 = vmatprep.subr.bf16.mxu0 %v3038
      %3267 = vmatpush1.bf16.msra.mxu0 %v3037
      %3268 = vmatprep.subr.bf16.mxu0 %v3032
      %3269 = vmatpush1.bf16.msra.mxu0 %v3031
      %3270 = vmatprep.subr.bf16.mxu0 %v3026
      %3271 = vmatpush1.bf16.msra.mxu0 %v3025
      %3272 = vmatprep.subr.bf16.mxu0 %v3116
      %3273 = vmatpush2.bf16.msra.mxu0 %v3115
      %3274 = vmatprep.subr.bf16.mxu0 %v3110
      %3275 = vmatpush2.bf16.msra.mxu0 %v3109
      %3276 = vmatprep.subr.bf16.mxu0 %v3104
      %3277 = vmatpush2.bf16.msra.mxu0 %v3103
      %3278 = vmatprep.subr.bf16.mxu0 %v3098
      %3279 = vmatpush2.bf16.msra.mxu0 %v3097
      %3280 = vmatprep.subr.bf16.mxu0 %v3092
      %3281 = vmatpush2.bf16.msra.mxu0 %v3091
      %3282 = vmatprep.subr.bf16.mxu0 %v3086
      %3283 = vmatpush2.bf16.msra.mxu0 %v3085
      %3284 = vmatprep.subr.bf16.mxu0 %v3080
      %3285 = vmatpush2.bf16.msra.mxu0 %v3079
      %3286 = vmatprep.subr.bf16.mxu0 %v3074
      %3287 = vmatpush2.bf16.msra.mxu0 %v3073
      %3288 = vmatprep.mubr.bf16.mxu0 %v2638
      %3289 = vmatmul.mubr.bf16.gmra.mxu0 %v2637
      %v3290 = vpop.f32.mrf.mxu0
      %v3291 = vadd.f32 0.0, %v3290
      %v3292 = vpop.f32.mrf.mxu0
      %v3293 = vadd.f32 0.0, %v3292
      %v3294 = vpop.f32.mrf.mxu0
      %v3295 = vpop.f32.mrf.mxu0
      %3296 = vdwg.mxu0
      %3297 = vmatprep.subr.bf16.mxu0 %v3070
      %3298 = vmatpush1.bf16.msra.mxu0 %v3069
      %3299 = vmatprep.subr.bf16.mxu0 %v3064
      %3300 = vmatpush1.bf16.msra.mxu0 %v3063
      %3301 = vmatprep.subr.bf16.mxu0 %v3058
      %3302 = vmatpush1.bf16.msra.mxu0 %v3057
      %3303 = vmatprep.subr.bf16.mxu0 %v3052
      %3304 = vmatpush1.bf16.msra.mxu0 %v3051
      %3305 = vmatprep.subr.bf16.mxu0 %v3046
      %3306 = vmatpush1.bf16.msra.mxu0 %v3045
      %3307 = vmatprep.subr.bf16.mxu0 %v3040
      %3308 = vmatpush1.bf16.msra.mxu0 %v3039
      %3309 = vmatprep.subr.bf16.mxu0 %v3034
      %3310 = vmatpush1.bf16.msra.mxu0 %v3033
      %3311 = vmatprep.subr.bf16.mxu0 %v3028
      %3312 = vmatpush1.bf16.msra.mxu0 %v3027
      %3313 = vmatprep.subr.bf16.mxu0 %v3118
      %3314 = vmatpush2.bf16.msra.mxu0 %v3117
      %3315 = vmatprep.subr.bf16.mxu0 %v3112
      %3316 = vmatpush2.bf16.msra.mxu0 %v3111
      %3317 = vmatprep.subr.bf16.mxu0 %v3106
      %3318 = vmatpush2.bf16.msra.mxu0 %v3105
      %3319 = vmatprep.subr.bf16.mxu0 %v3100
      %3320 = vmatpush2.bf16.msra.mxu0 %v3099
      %3321 = vmatprep.subr.bf16.mxu0 %v3094
      %3322 = vmatpush2.bf16.msra.mxu0 %v3093
      %3323 = vmatprep.subr.bf16.mxu0 %v3088
      %3324 = vmatpush2.bf16.msra.mxu0 %v3087
      %3325 = vmatprep.subr.bf16.mxu0 %v3082
      %3326 = vmatpush2.bf16.msra.mxu0 %v3081
      %3327 = vmatprep.subr.bf16.mxu0 %v3076
      %3328 = vmatpush2.bf16.msra.mxu0 %v3075
      %3329 = vmatprep.mubr.bf16.mxu0 %v2638
      %3330 = vmatmul.mubr.bf16.gmra.mxu0 %v2637
      %v3331 = vpop.f32.mrf.mxu0
      %v3332 = vadd.f32 0.0, %v3331
      %v3333 = vpop.f32.mrf.mxu0
      %v3334 = vadd.f32 0.0, %v3333
      %v3335 = vpop.f32.mrf.mxu0
      %v3336 = vpop.f32.mrf.mxu0
      %3337 = vdwg.mxu0
      %s3338 = scalar_lea.vmem %s192, 3
      %v3339 = vld [vmem:[%s3338] ss:$8 sm:$0xf]
      %v3340 = vld [vmem:[%s3338] ss:$8 sm:$0x30]
      %v3341 = vor.u32 %v3339, %v3340
      %v3344 = vcombine.low %v3250, %v3252
      %v3346 = vunpack.c.l.s4 1966171168
      %v3347 = vunpack.c.0.s8 %v3346
      %v3348 = vlaneseq
      %v3349 = vshrl.u32 %v3348, 7
      %v3350 = vsub.s32 %v3347, %v3349
      %v3351 = vrot.slane %v3344, %v3350
      %v3353 = vunpack.c.l.s4 1966171168
      %v3354 = vunpack.c.0.s8 %v3353
      %v3355 = vlaneseq
      %v3356 = vshrl.u32 %v3355, 7
      %v3357 = vsub.s32 %v3354, %v3356
      %v3358 = vrot.slane %v3351, %v3357
      %v3360 = vadd.f32 %v3341, %v3358
      %v3361 = vxor.u32 %v3360, 2147483648
      %v3362 = vmul.f32 %v3361, 1.442695
      %v3363 = vpow.pop %v3362
      %v3364 = vadd.f32 %v3363, 1.0
      %v3365 = vrcp.pop %v3364
      %v3366 = vmul.f32 1.0, %v3365
      %v3368 = vrot.slane %v3341, 2
      %v3372 = vcombine.low %v3291, %v3293
      %v3374 = vunpack.c.l.s4 1966171168
      %v3375 = vunpack.c.0.s8 %v3374
      %v3376 = vlaneseq
      %v3377 = vshrl.u32 %v3376, 7
      %v3378 = vsub.s32 %v3375, %v3377
      %v3379 = vrot.slane %v3372, %v3378
      %v3381 = vunpack.c.l.s4 1966171168
      %v3382 = vunpack.c.0.s8 %v3381
      %v3383 = vlaneseq
      %v3384 = vshrl.u32 %v3383, 7
      %v3385 = vsub.s32 %v3382, %v3384
      %v3386 = vrot.slane %v3379, %v3385
      %v3388 = vadd.f32 %v3368, %v3386
      %v3389 = vxor.u32 %v3388, 2147483648
      %v3390 = vmul.f32 %v3389, 1.442695
      %v3391 = vpow.pop %v3390
      %v3392 = vadd.f32 %v3391, 1.0
      %v3393 = vrcp.pop %v3392
      %v3394 = vmul.f32 1.0, %v3393
      %v3395 = vadd.f32 %v3332, %v982
      %v3396 = vadd.f32 %v3334, %v986
      %v3399 = vcombine.low %v3395, %v3396
      %v3401 = vunpack.c.l.s4 1966171168
      %v3402 = vunpack.c.0.s8 %v3401
      %v3403 = vlaneseq
      %v3404 = vshrl.u32 %v3403, 7
      %v3405 = vsub.s32 %v3402, %v3404
      %v3406 = vrot.slane %v3399, %v3405
      %v3408 = vunpack.c.l.s4 1966171168
      %v3409 = vunpack.c.0.s8 %v3408
      %v3410 = vlaneseq
      %v3411 = vshrl.u32 %v3410, 7
      %v3412 = vsub.s32 %v3409, %v3411
      %v3413 = vrot.slane %v3406, %v3412
      %v3415 = vmul.f32 %v3366, %v3413
      %v3416 = vrot.slane %v3341, 4
      %v3418 = vadd.f32 %v3416, %v3415
      %v3419 = vtanh.pop %v3418
      %v3420 = vsub.f32 1.0, %v3394
      %v3421 = vmul.f32 %v3420, %v3419
      %v3422 = vmul.f32 %v3394, %v2622
      %v3423 = vadd.f32 %v3421, %v3422
      %s3424 = scalar_lea.vmem %s197, 3
      %3425 = vst.msk [vmem:[%s3424] ss:$8 sm:$0x3] %vm1021, %v3423
      %3426 = vst.msk [vmem:[%s3424] ss:$8 sm:$0x0] %vm1021, %v3423
      %v3428 = vlaneseq
      %v3429 = vshrl.u32 %v3428, 7
      %v3430 = vsub.s32 0, %v3429
      %v3431 = vrot.slane %v3423, %v3430
      %v3432 = vlaneseq
      %v3433 = vshrl.u32 %v3432, 7
      %v3434 = vsub.s32 1, %v3433
      %v3435 = vrot.slane %v3423, %v3434
      %v3438 = vpack.c.bf16 %v3431, %v3431
      %v3439 = vpack.c.bf16 %v3435, %v3435
      %v3440 = vld [vmem:[%s1] sm:$0xff]
      %v3441 = vld [vmem:[%s1 + $0x8] sm:$0xff]
      %v3442 = vld [vmem:[%s1 + $0x10] sm:$0xff]
      %v3443 = vld [vmem:[%s1 + $0x18] sm:$0xff]
      %v3444 = vld [vmem:[%s1 + $0x20] sm:$0xff]
      %v3445 = vld [vmem:[%s1 + $0x28] sm:$0xff]
      %v3446 = vld [vmem:[%s1 + $0x30] sm:$0xff]
      %v3447 = vld [vmem:[%s1 + $0x38] sm:$0xff]
      %v3448 = vld [vmem:[%s1 + $0x40] sm:$0xff]
      %v3449 = vld [vmem:[%s1 + $0x48] sm:$0xff]
      %v3450 = vld [vmem:[%s1 + $0x50] sm:$0xff]
      %v3451 = vld [vmem:[%s1 + $0x58] sm:$0xff]
      %v3452 = vld [vmem:[%s1 + $0x60] sm:$0xff]
      %v3453 = vld [vmem:[%s1 + $0x68] sm:$0xff]
      %v3454 = vld [vmem:[%s1 + $0x70] sm:$0xff]
      %v3455 = vld [vmem:[%s1 + $0x78] sm:$0xff]
      %v3456 = vld [vmem:[%s1 + $0x80] sm:$0xff]
      %v3457 = vld [vmem:[%s1 + $0x88] sm:$0xff]
      %v3458 = vld [vmem:[%s1 + $0x90] sm:$0xff]
      %v3459 = vld [vmem:[%s1 + $0x98] sm:$0xff]
      %v3460 = vld [vmem:[%s1 + $0xa0] sm:$0xff]
      %v3461 = vld [vmem:[%s1 + $0xa8] sm:$0xff]
      %v3462 = vld [vmem:[%s1 + $0xb0] sm:$0xff]
      %v3463 = vld [vmem:[%s1 + $0xb8] sm:$0xff]
      %v3464 = vld [vmem:[%s1 + $0xc0] sm:$0xff]
      %v3465 = vld [vmem:[%s1 + $0xc8] sm:$0xff]
      %v3466 = vld [vmem:[%s1 + $0xd0] sm:$0xff]
      %v3467 = vld [vmem:[%s1 + $0xd8] sm:$0xff]
      %v3468 = vld [vmem:[%s1 + $0xe0] sm:$0xff]
      %v3469 = vld [vmem:[%s1 + $0xe8] sm:$0xff]
      %v3470 = vld [vmem:[%s1 + $0xf0] sm:$0xff]
      %v3471 = vld [vmem:[%s1 + $0xf8] sm:$0xff]
      %v3472 = vld [vmem:[%s1 + $0x100] sm:$0xff]
      %v3473 = vld [vmem:[%s1 + $0x108] sm:$0xff]
      %v3474 = vld [vmem:[%s1 + $0x110] sm:$0xff]
      %v3475 = vld [vmem:[%s1 + $0x118] sm:$0xff]
      %v3476 = vld [vmem:[%s1 + $0x120] sm:$0xff]
      %v3477 = vld [vmem:[%s1 + $0x128] sm:$0xff]
      %v3478 = vld [vmem:[%s1 + $0x130] sm:$0xff]
      %v3479 = vld [vmem:[%s1 + $0x138] sm:$0xff]
      %v3480 = vld [vmem:[%s1 + $0x140] sm:$0xff]
      %v3481 = vld [vmem:[%s1 + $0x148] sm:$0xff]
      %v3482 = vld [vmem:[%s1 + $0x150] sm:$0xff]
      %v3483 = vld [vmem:[%s1 + $0x158] sm:$0xff]
      %v3484 = vld [vmem:[%s1 + $0x160] sm:$0xff]
      %v3485 = vld [vmem:[%s1 + $0x168] sm:$0xff]
      %v3486 = vld [vmem:[%s1 + $0x170] sm:$0xff]
      %v3487 = vld [vmem:[%s1 + $0x178] sm:$0xff]
      %v3488 = vld [vmem:[%s1 + $0x180] sm:$0xff]
      %v3489 = vld [vmem:[%s1 + $0x188] sm:$0xff]
      %v3490 = vld [vmem:[%s1 + $0x190] sm:$0xff]
      %v3491 = vld [vmem:[%s1 + $0x198] sm:$0xff]
      %v3492 = vld [vmem:[%s1 + $0x1a0] sm:$0xff]
      %v3493 = vld [vmem:[%s1 + $0x1a8] sm:$0xff]
      %v3494 = vld [vmem:[%s1 + $0x1b0] sm:$0xff]
      %v3495 = vld [vmem:[%s1 + $0x1b8] sm:$0xff]
      %v3496 = vld [vmem:[%s1 + $0x1c0] sm:$0xff]
      %v3497 = vld [vmem:[%s1 + $0x1c8] sm:$0xff]
      %v3498 = vld [vmem:[%s1 + $0x1d0] sm:$0xff]
      %v3499 = vld [vmem:[%s1 + $0x1d8] sm:$0xff]
      %v3500 = vld [vmem:[%s1 + $0x1e0] sm:$0xff]
      %v3501 = vld [vmem:[%s1 + $0x1e8] sm:$0xff]
      %v3502 = vld [vmem:[%s1 + $0x1f0] sm:$0xff]
      %v3503 = vld [vmem:[%s1 + $0x1f8] sm:$0xff]
      %v3504 = vld [vmem:[%s1 + $0x200] sm:$0xff]
      %v3505 = vld [vmem:[%s1 + $0x208] sm:$0xff]
      %v3506 = vld [vmem:[%s1 + $0x210] sm:$0xff]
      %v3507 = vld [vmem:[%s1 + $0x218] sm:$0xff]
      %v3508 = vld [vmem:[%s1 + $0x220] sm:$0xff]
      %v3509 = vld [vmem:[%s1 + $0x228] sm:$0xff]
      %v3510 = vld [vmem:[%s1 + $0x230] sm:$0xff]
      %v3511 = vld [vmem:[%s1 + $0x238] sm:$0xff]
      %v3512 = vld [vmem:[%s1 + $0x240] sm:$0xff]
      %v3513 = vld [vmem:[%s1 + $0x248] sm:$0xff]
      %v3514 = vld [vmem:[%s1 + $0x250] sm:$0xff]
      %v3515 = vld [vmem:[%s1 + $0x258] sm:$0xff]
      %v3516 = vld [vmem:[%s1 + $0x260] sm:$0xff]
      %v3517 = vld [vmem:[%s1 + $0x268] sm:$0xff]
      %v3518 = vld [vmem:[%s1 + $0x270] sm:$0xff]
      %v3519 = vld [vmem:[%s1 + $0x278] sm:$0xff]
      %v3520 = vld [vmem:[%s1 + $0x280] sm:$0xff]
      %v3521 = vld [vmem:[%s1 + $0x288] sm:$0xff]
      %v3522 = vld [vmem:[%s1 + $0x290] sm:$0xff]
      %v3523 = vld [vmem:[%s1 + $0x298] sm:$0xff]
      %v3524 = vld [vmem:[%s1 + $0x2a0] sm:$0xff]
      %v3525 = vld [vmem:[%s1 + $0x2a8] sm:$0xff]
      %v3526 = vld [vmem:[%s1 + $0x2b0] sm:$0xff]
      %v3527 = vld [vmem:[%s1 + $0x2b8] sm:$0xff]
      %v3528 = vld [vmem:[%s1 + $0x2c0] sm:$0xff]
      %v3529 = vld [vmem:[%s1 + $0x2c8] sm:$0xff]
      %v3530 = vld [vmem:[%s1 + $0x2d0] sm:$0xff]
      %v3531 = vld [vmem:[%s1 + $0x2d8] sm:$0xff]
      %v3532 = vld [vmem:[%s1 + $0x2e0] sm:$0xff]
      %v3533 = vld [vmem:[%s1 + $0x2e8] sm:$0xff]
      %v3534 = vld [vmem:[%s1 + $0x2f0] sm:$0xff]
      %v3535 = vld [vmem:[%s1 + $0x2f8] sm:$0xff]
      %v3632 = vunpack.c.l.b16 %v3440
      %v3633 = vunpack.c.h.b16 %v3440
      %v3634 = vunpack.c.l.b16 %v3441
      %v3635 = vunpack.c.h.b16 %v3441
      %v3636 = vunpack.c.l.b16 %v3442
      %v3637 = vunpack.c.h.b16 %v3442
      %v3638 = vunpack.c.l.b16 %v3443
      %v3639 = vunpack.c.h.b16 %v3443
      %v3640 = vunpack.c.l.b16 %v3444
      %v3641 = vunpack.c.h.b16 %v3444
      %v3642 = vunpack.c.l.b16 %v3445
      %v3643 = vunpack.c.h.b16 %v3445
      %v3644 = vunpack.c.l.b16 %v3446
      %v3645 = vunpack.c.h.b16 %v3446
      %v3646 = vunpack.c.l.b16 %v3447
      %v3647 = vunpack.c.h.b16 %v3447
      %v3648 = vunpack.c.l.b16 %v3448
      %v3649 = vunpack.c.h.b16 %v3448
      %v3650 = vunpack.c.l.b16 %v3449
      %v3651 = vunpack.c.h.b16 %v3449
      %v3652 = vunpack.c.l.b16 %v3450
      %v3653 = vunpack.c.h.b16 %v3450
      %v3654 = vunpack.c.l.b16 %v3451
      %v3655 = vunpack.c.h.b16 %v3451
      %v3656 = vunpack.c.l.b16 %v3452
      %v3657 = vunpack.c.h.b16 %v3452
      %v3658 = vunpack.c.l.b16 %v3453
      %v3659 = vunpack.c.h.b16 %v3453
      %v3660 = vunpack.c.l.b16 %v3454
      %v3661 = vunpack.c.h.b16 %v3454
      %v3662 = vunpack.c.l.b16 %v3455
      %v3663 = vunpack.c.h.b16 %v3455
      %v3664 = vunpack.c.l.b16 %v3456
      %v3665 = vunpack.c.h.b16 %v3456
      %v3666 = vunpack.c.l.b16 %v3457
      %v3667 = vunpack.c.h.b16 %v3457
      %v3668 = vunpack.c.l.b16 %v3458
      %v3669 = vunpack.c.h.b16 %v3458
      %v3670 = vunpack.c.l.b16 %v3459
      %v3671 = vunpack.c.h.b16 %v3459
      %v3672 = vunpack.c.l.b16 %v3460
      %v3673 = vunpack.c.h.b16 %v3460
      %v3674 = vunpack.c.l.b16 %v3461
      %v3675 = vunpack.c.h.b16 %v3461
      %v3676 = vunpack.c.l.b16 %v3462
      %v3677 = vunpack.c.h.b16 %v3462
      %v3678 = vunpack.c.l.b16 %v3463
      %v3679 = vunpack.c.h.b16 %v3463
      %v3680 = vunpack.c.l.b16 %v3464
      %v3681 = vunpack.c.h.b16 %v3464
      %v3682 = vunpack.c.l.b16 %v3465
      %v3683 = vunpack.c.h.b16 %v3465
      %v3684 = vunpack.c.l.b16 %v3466
      %v3685 = vunpack.c.h.b16 %v3466
      %v3686 = vunpack.c.l.b16 %v3467
      %v3687 = vunpack.c.h.b16 %v3467
      %v3688 = vunpack.c.l.b16 %v3468
      %v3689 = vunpack.c.h.b16 %v3468
      %v3690 = vunpack.c.l.b16 %v3469
      %v3691 = vunpack.c.h.b16 %v3469
      %v3692 = vunpack.c.l.b16 %v3470
      %v3693 = vunpack.c.h.b16 %v3470
      %v3694 = vunpack.c.l.b16 %v3471
      %v3695 = vunpack.c.h.b16 %v3471
      %v3696 = vunpack.c.l.b16 %v3472
      %v3697 = vunpack.c.h.b16 %v3472
      %v3698 = vunpack.c.l.b16 %v3473
      %v3699 = vunpack.c.h.b16 %v3473
      %v3700 = vunpack.c.l.b16 %v3474
      %v3701 = vunpack.c.h.b16 %v3474
      %v3702 = vunpack.c.l.b16 %v3475
      %v3703 = vunpack.c.h.b16 %v3475
      %v3704 = vunpack.c.l.b16 %v3476
      %v3705 = vunpack.c.h.b16 %v3476
      %v3706 = vunpack.c.l.b16 %v3477
      %v3707 = vunpack.c.h.b16 %v3477
      %v3708 = vunpack.c.l.b16 %v3478
      %v3709 = vunpack.c.h.b16 %v3478
      %v3710 = vunpack.c.l.b16 %v3479
      %v3711 = vunpack.c.h.b16 %v3479
      %v3712 = vunpack.c.l.b16 %v3480
      %v3713 = vunpack.c.h.b16 %v3480
      %v3714 = vunpack.c.l.b16 %v3481
      %v3715 = vunpack.c.h.b16 %v3481
      %v3716 = vunpack.c.l.b16 %v3482
      %v3717 = vunpack.c.h.b16 %v3482
      %v3718 = vunpack.c.l.b16 %v3483
      %v3719 = vunpack.c.h.b16 %v3483
      %v3720 = vunpack.c.l.b16 %v3484
      %v3721 = vunpack.c.h.b16 %v3484
      %v3722 = vunpack.c.l.b16 %v3485
      %v3723 = vunpack.c.h.b16 %v3485
      %v3724 = vunpack.c.l.b16 %v3486
      %v3725 = vunpack.c.h.b16 %v3486
      %v3726 = vunpack.c.l.b16 %v3487
      %v3727 = vunpack.c.h.b16 %v3487
      %v3728 = vunpack.c.l.b16 %v3488
      %v3729 = vunpack.c.h.b16 %v3488
      %v3730 = vunpack.c.l.b16 %v3489
      %v3731 = vunpack.c.h.b16 %v3489
      %v3732 = vunpack.c.l.b16 %v3490
      %v3733 = vunpack.c.h.b16 %v3490
      %v3734 = vunpack.c.l.b16 %v3491
      %v3735 = vunpack.c.h.b16 %v3491
      %v3736 = vunpack.c.l.b16 %v3492
      %v3737 = vunpack.c.h.b16 %v3492
      %v3738 = vunpack.c.l.b16 %v3493
      %v3739 = vunpack.c.h.b16 %v3493
      %v3740 = vunpack.c.l.b16 %v3494
      %v3741 = vunpack.c.h.b16 %v3494
      %v3742 = vunpack.c.l.b16 %v3495
      %v3743 = vunpack.c.h.b16 %v3495
      %v3744 = vunpack.c.l.b16 %v3496
      %v3745 = vunpack.c.h.b16 %v3496
      %v3746 = vunpack.c.l.b16 %v3497
      %v3747 = vunpack.c.h.b16 %v3497
      %v3748 = vunpack.c.l.b16 %v3498
      %v3749 = vunpack.c.h.b16 %v3498
      %v3750 = vunpack.c.l.b16 %v3499
      %v3751 = vunpack.c.h.b16 %v3499
      %v3752 = vunpack.c.l.b16 %v3500
      %v3753 = vunpack.c.h.b16 %v3500
      %v3754 = vunpack.c.l.b16 %v3501
      %v3755 = vunpack.c.h.b16 %v3501
      %v3756 = vunpack.c.l.b16 %v3502
      %v3757 = vunpack.c.h.b16 %v3502
      %v3758 = vunpack.c.l.b16 %v3503
      %v3759 = vunpack.c.h.b16 %v3503
      %v3760 = vunpack.c.l.b16 %v3504
      %v3761 = vunpack.c.h.b16 %v3504
      %v3762 = vunpack.c.l.b16 %v3505
      %v3763 = vunpack.c.h.b16 %v3505
      %v3764 = vunpack.c.l.b16 %v3506
      %v3765 = vunpack.c.h.b16 %v3506
      %v3766 = vunpack.c.l.b16 %v3507
      %v3767 = vunpack.c.h.b16 %v3507
      %v3768 = vunpack.c.l.b16 %v3508
      %v3769 = vunpack.c.h.b16 %v3508
      %v3770 = vunpack.c.l.b16 %v3509
      %v3771 = vunpack.c.h.b16 %v3509
      %v3772 = vunpack.c.l.b16 %v3510
      %v3773 = vunpack.c.h.b16 %v3510
      %v3774 = vunpack.c.l.b16 %v3511
      %v3775 = vunpack.c.h.b16 %v3511
      %v3776 = vunpack.c.l.b16 %v3512
      %v3777 = vunpack.c.h.b16 %v3512
      %v3778 = vunpack.c.l.b16 %v3513
      %v3779 = vunpack.c.h.b16 %v3513
      %v3780 = vunpack.c.l.b16 %v3514
      %v3781 = vunpack.c.h.b16 %v3514
      %v3782 = vunpack.c.l.b16 %v3515
      %v3783 = vunpack.c.h.b16 %v3515
      %v3784 = vunpack.c.l.b16 %v3516
      %v3785 = vunpack.c.h.b16 %v3516
      %v3786 = vunpack.c.l.b16 %v3517
      %v3787 = vunpack.c.h.b16 %v3517
      %v3788 = vunpack.c.l.b16 %v3518
      %v3789 = vunpack.c.h.b16 %v3518
      %v3790 = vunpack.c.l.b16 %v3519
      %v3791 = vunpack.c.h.b16 %v3519
      %v3792 = vunpack.c.l.b16 %v3520
      %v3793 = vunpack.c.h.b16 %v3520
      %v3794 = vunpack.c.l.b16 %v3521
      %v3795 = vunpack.c.h.b16 %v3521
      %v3796 = vunpack.c.l.b16 %v3522
      %v3797 = vunpack.c.h.b16 %v3522
      %v3798 = vunpack.c.l.b16 %v3523
      %v3799 = vunpack.c.h.b16 %v3523
      %v3800 = vunpack.c.l.b16 %v3524
      %v3801 = vunpack.c.h.b16 %v3524
      %v3802 = vunpack.c.l.b16 %v3525
      %v3803 = vunpack.c.h.b16 %v3525
      %v3804 = vunpack.c.l.b16 %v3526
      %v3805 = vunpack.c.h.b16 %v3526
      %v3806 = vunpack.c.l.b16 %v3527
      %v3807 = vunpack.c.h.b16 %v3527
      %v3808 = vunpack.c.l.b16 %v3528
      %v3809 = vunpack.c.h.b16 %v3528
      %v3810 = vunpack.c.l.b16 %v3529
      %v3811 = vunpack.c.h.b16 %v3529
      %v3812 = vunpack.c.l.b16 %v3530
      %v3813 = vunpack.c.h.b16 %v3530
      %v3814 = vunpack.c.l.b16 %v3531
      %v3815 = vunpack.c.h.b16 %v3531
      %v3816 = vunpack.c.l.b16 %v3532
      %v3817 = vunpack.c.h.b16 %v3532
      %v3818 = vunpack.c.l.b16 %v3533
      %v3819 = vunpack.c.h.b16 %v3533
      %v3820 = vunpack.c.l.b16 %v3534
      %v3821 = vunpack.c.h.b16 %v3534
      %v3822 = vunpack.c.l.b16 %v3535
      %v3823 = vunpack.c.h.b16 %v3535
      %v3824 = vpack.c.b16 %v3638, %v3632
      %v3825 = vpack.c.b16 %v3639, %v3633
      %v3826 = vpack.c.b16 %v3640, %v3634
      %v3827 = vpack.c.b16 %v3641, %v3635
      %v3828 = vpack.c.b16 %v3642, %v3636
      %v3829 = vpack.c.b16 %v3643, %v3637
      %v3830 = vpack.c.b16 %v3650, %v3644
      %v3831 = vpack.c.b16 %v3651, %v3645
      %v3832 = vpack.c.b16 %v3652, %v3646
      %v3833 = vpack.c.b16 %v3653, %v3647
      %v3834 = vpack.c.b16 %v3654, %v3648
      %v3835 = vpack.c.b16 %v3655, %v3649
      %v3836 = vpack.c.b16 %v3662, %v3656
      %v3837 = vpack.c.b16 %v3663, %v3657
      %v3838 = vpack.c.b16 %v3664, %v3658
      %v3839 = vpack.c.b16 %v3665, %v3659
      %v3840 = vpack.c.b16 %v3666, %v3660
      %v3841 = vpack.c.b16 %v3667, %v3661
      %v3842 = vpack.c.b16 %v3674, %v3668
      %v3843 = vpack.c.b16 %v3675, %v3669
      %v3844 = vpack.c.b16 %v3676, %v3670
      %v3845 = vpack.c.b16 %v3677, %v3671
      %v3846 = vpack.c.b16 %v3678, %v3672
      %v3847 = vpack.c.b16 %v3679, %v3673
      %v3848 = vpack.c.b16 %v3686, %v3680
      %v3849 = vpack.c.b16 %v3687, %v3681
      %v3850 = vpack.c.b16 %v3688, %v3682
      %v3851 = vpack.c.b16 %v3689, %v3683
      %v3852 = vpack.c.b16 %v3690, %v3684
      %v3853 = vpack.c.b16 %v3691, %v3685
      %v3854 = vpack.c.b16 %v3698, %v3692
      %v3855 = vpack.c.b16 %v3699, %v3693
      %v3856 = vpack.c.b16 %v3700, %v3694
      %v3857 = vpack.c.b16 %v3701, %v3695
      %v3858 = vpack.c.b16 %v3702, %v3696
      %v3859 = vpack.c.b16 %v3703, %v3697
      %v3860 = vpack.c.b16 %v3710, %v3704
      %v3861 = vpack.c.b16 %v3711, %v3705
      %v3862 = vpack.c.b16 %v3712, %v3706
      %v3863 = vpack.c.b16 %v3713, %v3707
      %v3864 = vpack.c.b16 %v3714, %v3708
      %v3865 = vpack.c.b16 %v3715, %v3709
      %v3866 = vpack.c.b16 %v3722, %v3716
      %v3867 = vpack.c.b16 %v3723, %v3717
      %v3868 = vpack.c.b16 %v3724, %v3718
      %v3869 = vpack.c.b16 %v3725, %v3719
      %v3870 = vpack.c.b16 %v3726, %v3720
      %v3871 = vpack.c.b16 %v3727, %v3721
      %v3872 = vpack.c.b16 %v3734, %v3728
      %v3873 = vpack.c.b16 %v3735, %v3729
      %v3874 = vpack.c.b16 %v3736, %v3730
      %v3875 = vpack.c.b16 %v3737, %v3731
      %v3876 = vpack.c.b16 %v3738, %v3732
      %v3877 = vpack.c.b16 %v3739, %v3733
      %v3878 = vpack.c.b16 %v3746, %v3740
      %v3879 = vpack.c.b16 %v3747, %v3741
      %v3880 = vpack.c.b16 %v3748, %v3742
      %v3881 = vpack.c.b16 %v3749, %v3743
      %v3882 = vpack.c.b16 %v3750, %v3744
      %v3883 = vpack.c.b16 %v3751, %v3745
      %v3884 = vpack.c.b16 %v3758, %v3752
      %v3885 = vpack.c.b16 %v3759, %v3753
      %v3886 = vpack.c.b16 %v3760, %v3754
      %v3887 = vpack.c.b16 %v3761, %v3755
      %v3888 = vpack.c.b16 %v3762, %v3756
      %v3889 = vpack.c.b16 %v3763, %v3757
      %v3890 = vpack.c.b16 %v3770, %v3764
      %v3891 = vpack.c.b16 %v3771, %v3765
      %v3892 = vpack.c.b16 %v3772, %v3766
      %v3893 = vpack.c.b16 %v3773, %v3767
      %v3894 = vpack.c.b16 %v3774, %v3768
      %v3895 = vpack.c.b16 %v3775, %v3769
      %v3896 = vpack.c.b16 %v3782, %v3776
      %v3897 = vpack.c.b16 %v3783, %v3777
      %v3898 = vpack.c.b16 %v3784, %v3778
      %v3899 = vpack.c.b16 %v3785, %v3779
      %v3900 = vpack.c.b16 %v3786, %v3780
      %v3901 = vpack.c.b16 %v3787, %v3781
      %v3902 = vpack.c.b16 %v3794, %v3788
      %v3903 = vpack.c.b16 %v3795, %v3789
      %v3904 = vpack.c.b16 %v3796, %v3790
      %v3905 = vpack.c.b16 %v3797, %v3791
      %v3906 = vpack.c.b16 %v3798, %v3792
      %v3907 = vpack.c.b16 %v3799, %v3793
      %v3908 = vpack.c.b16 %v3806, %v3800
      %v3909 = vpack.c.b16 %v3807, %v3801
      %v3910 = vpack.c.b16 %v3808, %v3802
      %v3911 = vpack.c.b16 %v3809, %v3803
      %v3912 = vpack.c.b16 %v3810, %v3804
      %v3913 = vpack.c.b16 %v3811, %v3805
      %v3914 = vpack.c.b16 %v3818, %v3812
      %v3915 = vpack.c.b16 %v3819, %v3813
      %v3916 = vpack.c.b16 %v3820, %v3814
      %v3917 = vpack.c.b16 %v3821, %v3815
      %v3918 = vpack.c.b16 %v3822, %v3816
      %v3919 = vpack.c.b16 %v3823, %v3817
      %4016 = vmatprep.subr.bf16.mxu0 %v3867
      %4017 = vmatpush1.bf16.msra.mxu0 %v3866
      %4018 = vmatprep.subr.bf16.mxu0 %v3861
      %4019 = vmatpush1.bf16.msra.mxu0 %v3860
      %4020 = vmatprep.subr.bf16.mxu0 %v3855
      %4021 = vmatpush1.bf16.msra.mxu0 %v3854
      %4022 = vmatprep.subr.bf16.mxu0 %v3849
      %4023 = vmatpush1.bf16.msra.mxu0 %v3848
      %4024 = vmatprep.subr.bf16.mxu0 %v3843
      %4025 = vmatpush1.bf16.msra.mxu0 %v3842
      %4026 = vmatprep.subr.bf16.mxu0 %v3837
      %4027 = vmatpush1.bf16.msra.mxu0 %v3836
      %4028 = vmatprep.subr.bf16.mxu0 %v3831
      %4029 = vmatpush1.bf16.msra.mxu0 %v3830
      %4030 = vmatprep.subr.bf16.mxu0 %v3825
      %4031 = vmatpush1.bf16.msra.mxu0 %v3824
      %4032 = vmatprep.subr.bf16.mxu0 %v3915
      %4033 = vmatpush2.bf16.msra.mxu0 %v3914
      %4034 = vmatprep.subr.bf16.mxu0 %v3909
      %4035 = vmatpush2.bf16.msra.mxu0 %v3908
      %4036 = vmatprep.subr.bf16.mxu0 %v3903
      %4037 = vmatpush2.bf16.msra.mxu0 %v3902
      %4038 = vmatprep.subr.bf16.mxu0 %v3897
      %4039 = vmatpush2.bf16.msra.mxu0 %v3896
      %4040 = vmatprep.subr.bf16.mxu0 %v3891
      %4041 = vmatpush2.bf16.msra.mxu0 %v3890
      %4042 = vmatprep.subr.bf16.mxu0 %v3885
      %4043 = vmatpush2.bf16.msra.mxu0 %v3884
      %4044 = vmatprep.subr.bf16.mxu0 %v3879
      %4045 = vmatpush2.bf16.msra.mxu0 %v3878
      %4046 = vmatprep.subr.bf16.mxu0 %v3873
      %4047 = vmatpush2.bf16.msra.mxu0 %v3872
      %4048 = vmatprep.mubr.bf16.mxu0 %v3439
      %4049 = vmatmul.mubr.bf16.gmra.mxu0 %v3438
      %v4050 = vpop.f32.mrf.mxu0
      %v4051 = vadd.f32 0.0, %v4050
      %v4052 = vpop.f32.mrf.mxu0
      %v4053 = vadd.f32 0.0, %v4052
      %v4054 = vpop.f32.mrf.mxu0
      %v4055 = vpop.f32.mrf.mxu0
      %4056 = vdwg.mxu0
      %4057 = vmatprep.subr.bf16.mxu0 %v3869
      %4058 = vmatpush1.bf16.msra.mxu0 %v3868
      %4059 = vmatprep.subr.bf16.mxu0 %v3863
      %4060 = vmatpush1.bf16.msra.mxu0 %v3862
      %4061 = vmatprep.subr.bf16.mxu0 %v3857
      %4062 = vmatpush1.bf16.msra.mxu0 %v3856
      %4063 = vmatprep.subr.bf16.mxu0 %v3851
      %4064 = vmatpush1.bf16.msra.mxu0 %v3850
      %4065 = vmatprep.subr.bf16.mxu0 %v3845
      %4066 = vmatpush1.bf16.msra.mxu0 %v3844
      %4067 = vmatprep.subr.bf16.mxu0 %v3839
      %4068 = vmatpush1.bf16.msra.mxu0 %v3838
      %4069 = vmatprep.subr.bf16.mxu0 %v3833
      %4070 = vmatpush1.bf16.msra.mxu0 %v3832
      %4071 = vmatprep.subr.bf16.mxu0 %v3827
      %4072 = vmatpush1.bf16.msra.mxu0 %v3826
      %4073 = vmatprep.subr.bf16.mxu0 %v3917
      %4074 = vmatpush2.bf16.msra.mxu0 %v3916
      %4075 = vmatprep.subr.bf16.mxu0 %v3911
      %4076 = vmatpush2.bf16.msra.mxu0 %v3910
      %4077 = vmatprep.subr.bf16.mxu0 %v3905
      %4078 = vmatpush2.bf16.msra.mxu0 %v3904
      %4079 = vmatprep.subr.bf16.mxu0 %v3899
      %4080 = vmatpush2.bf16.msra.mxu0 %v3898
      %4081 = vmatprep.subr.bf16.mxu0 %v3893
      %4082 = vmatpush2.bf16.msra.mxu0 %v3892
      %4083 = vmatprep.subr.bf16.mxu0 %v3887
      %4084 = vmatpush2.bf16.msra.mxu0 %v3886
      %4085 = vmatprep.subr.bf16.mxu0 %v3881
      %4086 = vmatpush2.bf16.msra.mxu0 %v3880
      %4087 = vmatprep.subr.bf16.mxu0 %v3875
      %4088 = vmatpush2.bf16.msra.mxu0 %v3874
      %4089 = vmatprep.mubr.bf16.mxu0 %v3439
      %4090 = vmatmul.mubr.bf16.gmra.mxu0 %v3438
      %v4091 = vpop.f32.mrf.mxu0
      %v4092 = vadd.f32 0.0, %v4091
      %v4093 = vpop.f32.mrf.mxu0
      %v4094 = vadd.f32 0.0, %v4093
      %v4095 = vpop.f32.mrf.mxu0
      %v4096 = vpop.f32.mrf.mxu0
      %4097 = vdwg.mxu0
      %4098 = vmatprep.subr.bf16.mxu0 %v3871
      %4099 = vmatpush1.bf16.msra.mxu0 %v3870
      %4100 = vmatprep.subr.bf16.mxu0 %v3865
      %4101 = vmatpush1.bf16.msra.mxu0 %v3864
      %4102 = vmatprep.subr.bf16.mxu0 %v3859
      %4103 = vmatpush1.bf16.msra.mxu0 %v3858
      %4104 = vmatprep.subr.bf16.mxu0 %v3853
      %4105 = vmatpush1.bf16.msra.mxu0 %v3852
      %4106 = vmatprep.subr.bf16.mxu0 %v3847
      %4107 = vmatpush1.bf16.msra.mxu0 %v3846
      %4108 = vmatprep.subr.bf16.mxu0 %v3841
      %4109 = vmatpush1.bf16.msra.mxu0 %v3840
      %4110 = vmatprep.subr.bf16.mxu0 %v3835
      %4111 = vmatpush1.bf16.msra.mxu0 %v3834
      %4112 = vmatprep.subr.bf16.mxu0 %v3829
      %4113 = vmatpush1.bf16.msra.mxu0 %v3828
      %4114 = vmatprep.subr.bf16.mxu0 %v3919
      %4115 = vmatpush2.bf16.msra.mxu0 %v3918
      %4116 = vmatprep.subr.bf16.mxu0 %v3913
      %4117 = vmatpush2.bf16.msra.mxu0 %v3912
      %4118 = vmatprep.subr.bf16.mxu0 %v3907
      %4119 = vmatpush2.bf16.msra.mxu0 %v3906
      %4120 = vmatprep.subr.bf16.mxu0 %v3901
      %4121 = vmatpush2.bf16.msra.mxu0 %v3900
      %4122 = vmatprep.subr.bf16.mxu0 %v3895
      %4123 = vmatpush2.bf16.msra.mxu0 %v3894
      %4124 = vmatprep.subr.bf16.mxu0 %v3889
      %4125 = vmatpush2.bf16.msra.mxu0 %v3888
      %4126 = vmatprep.subr.bf16.mxu0 %v3883
      %4127 = vmatpush2.bf16.msra.mxu0 %v3882
      %4128 = vmatprep.subr.bf16.mxu0 %v3877
      %4129 = vmatpush2.bf16.msra.mxu0 %v3876
      %4130 = vmatprep.mubr.bf16.mxu0 %v3439
      %4131 = vmatmul.mubr.bf16.gmra.mxu0 %v3438
      %v4132 = vpop.f32.mrf.mxu0
      %v4133 = vadd.f32 0.0, %v4132
      %v4134 = vpop.f32.mrf.mxu0
      %v4135 = vadd.f32 0.0, %v4134
      %v4136 = vpop.f32.mrf.mxu0
      %v4137 = vpop.f32.mrf.mxu0
      %4138 = vdwg.mxu0
      %s4139 = scalar_lea.vmem %s192, 4
      %v4140 = vld [vmem:[%s4139] ss:$8 sm:$0xf]
      %v4141 = vld [vmem:[%s4139] ss:$8 sm:$0x30]
      %v4142 = vor.u32 %v4140, %v4141
      %v4145 = vcombine.low %v4051, %v4053
      %v4147 = vunpack.c.l.s4 1966171168
      %v4148 = vunpack.c.0.s8 %v4147
      %v4149 = vlaneseq
      %v4150 = vshrl.u32 %v4149, 7
      %v4151 = vsub.s32 %v4148, %v4150
      %v4152 = vrot.slane %v4145, %v4151
      %v4154 = vunpack.c.l.s4 1966171168
      %v4155 = vunpack.c.0.s8 %v4154
      %v4156 = vlaneseq
      %v4157 = vshrl.u32 %v4156, 7
      %v4158 = vsub.s32 %v4155, %v4157
      %v4159 = vrot.slane %v4152, %v4158
      %v4161 = vadd.f32 %v4142, %v4159
      %v4162 = vxor.u32 %v4161, 2147483648
      %v4163 = vmul.f32 %v4162, 1.442695
      %v4164 = vpow.pop %v4163
      %v4165 = vadd.f32 %v4164, 1.0
      %v4166 = vrcp.pop %v4165
      %v4167 = vmul.f32 1.0, %v4166
      %v4169 = vrot.slane %v4142, 2
      %v4173 = vcombine.low %v4092, %v4094
      %v4175 = vunpack.c.l.s4 1966171168
      %v4176 = vunpack.c.0.s8 %v4175
      %v4177 = vlaneseq
      %v4178 = vshrl.u32 %v4177, 7
      %v4179 = vsub.s32 %v4176, %v4178
      %v4180 = vrot.slane %v4173, %v4179
      %v4182 = vunpack.c.l.s4 1966171168
      %v4183 = vunpack.c.0.s8 %v4182
      %v4184 = vlaneseq
      %v4185 = vshrl.u32 %v4184, 7
      %v4186 = vsub.s32 %v4183, %v4185
      %v4187 = vrot.slane %v4180, %v4186
      %v4189 = vadd.f32 %v4169, %v4187
      %v4190 = vxor.u32 %v4189, 2147483648
      %v4191 = vmul.f32 %v4190, 1.442695
      %v4192 = vpow.pop %v4191
      %v4193 = vadd.f32 %v4192, 1.0
      %v4194 = vrcp.pop %v4193
      %v4195 = vmul.f32 1.0, %v4194
      %v4196 = vadd.f32 %v4133, %v982
      %v4197 = vadd.f32 %v4135, %v986
      %v4200 = vcombine.low %v4196, %v4197
      %v4202 = vunpack.c.l.s4 1966171168
      %v4203 = vunpack.c.0.s8 %v4202
      %v4204 = vlaneseq
      %v4205 = vshrl.u32 %v4204, 7
      %v4206 = vsub.s32 %v4203, %v4205
      %v4207 = vrot.slane %v4200, %v4206
      %v4209 = vunpack.c.l.s4 1966171168
      %v4210 = vunpack.c.0.s8 %v4209
      %v4211 = vlaneseq
      %v4212 = vshrl.u32 %v4211, 7
      %v4213 = vsub.s32 %v4210, %v4212
      %v4214 = vrot.slane %v4207, %v4213
      %v4216 = vmul.f32 %v4167, %v4214
      %v4217 = vrot.slane %v4142, 4
      %v4219 = vadd.f32 %v4217, %v4216
      %v4220 = vtanh.pop %v4219
      %v4221 = vsub.f32 1.0, %v4195
      %v4222 = vmul.f32 %v4221, %v4220
      %v4223 = vmul.f32 %v4195, %v3423
      %v4224 = vadd.f32 %v4222, %v4223
      %s4225 = scalar_lea.vmem %s197, 4
      %4226 = vst.msk [vmem:[%s4225] ss:$8 sm:$0x3] %vm1021, %v4224
      %4227 = vst.msk [vmem:[%s4225] ss:$8 sm:$0x0] %vm1021, %v4224
      %v4229 = vlaneseq
      %v4230 = vshrl.u32 %v4229, 7
      %v4231 = vsub.s32 0, %v4230
      %v4232 = vrot.slane %v4224, %v4231
      %v4233 = vlaneseq
      %v4234 = vshrl.u32 %v4233, 7
      %v4235 = vsub.s32 1, %v4234
      %v4236 = vrot.slane %v4224, %v4235
      %v4239 = vpack.c.bf16 %v4232, %v4232
      %v4240 = vpack.c.bf16 %v4236, %v4236
      %v4241 = vld [vmem:[%s1] sm:$0xff]
      %v4242 = vld [vmem:[%s1 + $0x8] sm:$0xff]
      %v4243 = vld [vmem:[%s1 + $0x10] sm:$0xff]
      %v4244 = vld [vmem:[%s1 + $0x18] sm:$0xff]
      %v4245 = vld [vmem:[%s1 + $0x20] sm:$0xff]
      %v4246 = vld [vmem:[%s1 + $0x28] sm:$0xff]
      %v4247 = vld [vmem:[%s1 + $0x30] sm:$0xff]
      %v4248 = vld [vmem:[%s1 + $0x38] sm:$0xff]
      %v4249 = vld [vmem:[%s1 + $0x40] sm:$0xff]
      %v4250 = vld [vmem:[%s1 + $0x48] sm:$0xff]
      %v4251 = vld [vmem:[%s1 + $0x50] sm:$0xff]
      %v4252 = vld [vmem:[%s1 + $0x58] sm:$0xff]
      %v4253 = vld [vmem:[%s1 + $0x60] sm:$0xff]
      %v4254 = vld [vmem:[%s1 + $0x68] sm:$0xff]
      %v4255 = vld [vmem:[%s1 + $0x70] sm:$0xff]
      %v4256 = vld [vmem:[%s1 + $0x78] sm:$0xff]
      %v4257 = vld [vmem:[%s1 + $0x80] sm:$0xff]
      %v4258 = vld [vmem:[%s1 + $0x88] sm:$0xff]
      %v4259 = vld [vmem:[%s1 + $0x90] sm:$0xff]
      %v4260 = vld [vmem:[%s1 + $0x98] sm:$0xff]
      %v4261 = vld [vmem:[%s1 + $0xa0] sm:$0xff]
      %v4262 = vld [vmem:[%s1 + $0xa8] sm:$0xff]
      %v4263 = vld [vmem:[%s1 + $0xb0] sm:$0xff]
      %v4264 = vld [vmem:[%s1 + $0xb8] sm:$0xff]
      %v4265 = vld [vmem:[%s1 + $0xc0] sm:$0xff]
      %v4266 = vld [vmem:[%s1 + $0xc8] sm:$0xff]
      %v4267 = vld [vmem:[%s1 + $0xd0] sm:$0xff]
      %v4268 = vld [vmem:[%s1 + $0xd8] sm:$0xff]
      %v4269 = vld [vmem:[%s1 + $0xe0] sm:$0xff]
      %v4270 = vld [vmem:[%s1 + $0xe8] sm:$0xff]
      %v4271 = vld [vmem:[%s1 + $0xf0] sm:$0xff]
      %v4272 = vld [vmem:[%s1 + $0xf8] sm:$0xff]
      %v4273 = vld [vmem:[%s1 + $0x100] sm:$0xff]
      %v4274 = vld [vmem:[%s1 + $0x108] sm:$0xff]
      %v4275 = vld [vmem:[%s1 + $0x110] sm:$0xff]
      %v4276 = vld [vmem:[%s1 + $0x118] sm:$0xff]
      %v4277 = vld [vmem:[%s1 + $0x120] sm:$0xff]
      %v4278 = vld [vmem:[%s1 + $0x128] sm:$0xff]
      %v4279 = vld [vmem:[%s1 + $0x130] sm:$0xff]
      %v4280 = vld [vmem:[%s1 + $0x138] sm:$0xff]
      %v4281 = vld [vmem:[%s1 + $0x140] sm:$0xff]
      %v4282 = vld [vmem:[%s1 + $0x148] sm:$0xff]
      %v4283 = vld [vmem:[%s1 + $0x150] sm:$0xff]
      %v4284 = vld [vmem:[%s1 + $0x158] sm:$0xff]
      %v4285 = vld [vmem:[%s1 + $0x160] sm:$0xff]
      %v4286 = vld [vmem:[%s1 + $0x168] sm:$0xff]
      %v4287 = vld [vmem:[%s1 + $0x170] sm:$0xff]
      %v4288 = vld [vmem:[%s1 + $0x178] sm:$0xff]
      %v4289 = vld [vmem:[%s1 + $0x180] sm:$0xff]
      %v4290 = vld [vmem:[%s1 + $0x188] sm:$0xff]
      %v4291 = vld [vmem:[%s1 + $0x190] sm:$0xff]
      %v4292 = vld [vmem:[%s1 + $0x198] sm:$0xff]
      %v4293 = vld [vmem:[%s1 + $0x1a0] sm:$0xff]
      %v4294 = vld [vmem:[%s1 + $0x1a8] sm:$0xff]
      %v4295 = vld [vmem:[%s1 + $0x1b0] sm:$0xff]
      %v4296 = vld [vmem:[%s1 + $0x1b8] sm:$0xff]
      %v4297 = vld [vmem:[%s1 + $0x1c0] sm:$0xff]
      %v4298 = vld [vmem:[%s1 + $0x1c8] sm:$0xff]
      %v4299 = vld [vmem:[%s1 + $0x1d0] sm:$0xff]
      %v4300 = vld [vmem:[%s1 + $0x1d8] sm:$0xff]
      %v4301 = vld [vmem:[%s1 + $0x1e0] sm:$0xff]
      %v4302 = vld [vmem:[%s1 + $0x1e8] sm:$0xff]
      %v4303 = vld [vmem:[%s1 + $0x1f0] sm:$0xff]
      %v4304 = vld [vmem:[%s1 + $0x1f8] sm:$0xff]
      %v4305 = vld [vmem:[%s1 + $0x200] sm:$0xff]
      %v4306 = vld [vmem:[%s1 + $0x208] sm:$0xff]
      %v4307 = vld [vmem:[%s1 + $0x210] sm:$0xff]
      %v4308 = vld [vmem:[%s1 + $0x218] sm:$0xff]
      %v4309 = vld [vmem:[%s1 + $0x220] sm:$0xff]
      %v4310 = vld [vmem:[%s1 + $0x228] sm:$0xff]
      %v4311 = vld [vmem:[%s1 + $0x230] sm:$0xff]
      %v4312 = vld [vmem:[%s1 + $0x238] sm:$0xff]
      %v4313 = vld [vmem:[%s1 + $0x240] sm:$0xff]
      %v4314 = vld [vmem:[%s1 + $0x248] sm:$0xff]
      %v4315 = vld [vmem:[%s1 + $0x250] sm:$0xff]
      %v4316 = vld [vmem:[%s1 + $0x258] sm:$0xff]
      %v4317 = vld [vmem:[%s1 + $0x260] sm:$0xff]
      %v4318 = vld [vmem:[%s1 + $0x268] sm:$0xff]
      %v4319 = vld [vmem:[%s1 + $0x270] sm:$0xff]
      %v4320 = vld [vmem:[%s1 + $0x278] sm:$0xff]
      %v4321 = vld [vmem:[%s1 + $0x280] sm:$0xff]
      %v4322 = vld [vmem:[%s1 + $0x288] sm:$0xff]
      %v4323 = vld [vmem:[%s1 + $0x290] sm:$0xff]
      %v4324 = vld [vmem:[%s1 + $0x298] sm:$0xff]
      %v4325 = vld [vmem:[%s1 + $0x2a0] sm:$0xff]
      %v4326 = vld [vmem:[%s1 + $0x2a8] sm:$0xff]
      %v4327 = vld [vmem:[%s1 + $0x2b0] sm:$0xff]
      %v4328 = vld [vmem:[%s1 + $0x2b8] sm:$0xff]
      %v4329 = vld [vmem:[%s1 + $0x2c0] sm:$0xff]
      %v4330 = vld [vmem:[%s1 + $0x2c8] sm:$0xff]
      %v4331 = vld [vmem:[%s1 + $0x2d0] sm:$0xff]
      %v4332 = vld [vmem:[%s1 + $0x2d8] sm:$0xff]
      %v4333 = vld [vmem:[%s1 + $0x2e0] sm:$0xff]
      %v4334 = vld [vmem:[%s1 + $0x2e8] sm:$0xff]
      %v4335 = vld [vmem:[%s1 + $0x2f0] sm:$0xff]
      %v4336 = vld [vmem:[%s1 + $0x2f8] sm:$0xff]
      %v4433 = vunpack.c.l.b16 %v4241
      %v4434 = vunpack.c.h.b16 %v4241
      %v4435 = vunpack.c.l.b16 %v4242
      %v4436 = vunpack.c.h.b16 %v4242
      %v4437 = vunpack.c.l.b16 %v4243
      %v4438 = vunpack.c.h.b16 %v4243
      %v4439 = vunpack.c.l.b16 %v4244
      %v4440 = vunpack.c.h.b16 %v4244
      %v4441 = vunpack.c.l.b16 %v4245
      %v4442 = vunpack.c.h.b16 %v4245
      %v4443 = vunpack.c.l.b16 %v4246
      %v4444 = vunpack.c.h.b16 %v4246
      %v4445 = vunpack.c.l.b16 %v4247
      %v4446 = vunpack.c.h.b16 %v4247
      %v4447 = vunpack.c.l.b16 %v4248
      %v4448 = vunpack.c.h.b16 %v4248
      %v4449 = vunpack.c.l.b16 %v4249
      %v4450 = vunpack.c.h.b16 %v4249
      %v4451 = vunpack.c.l.b16 %v4250
      %v4452 = vunpack.c.h.b16 %v4250
      %v4453 = vunpack.c.l.b16 %v4251
      %v4454 = vunpack.c.h.b16 %v4251
      %v4455 = vunpack.c.l.b16 %v4252
      %v4456 = vunpack.c.h.b16 %v4252
      %v4457 = vunpack.c.l.b16 %v4253
      %v4458 = vunpack.c.h.b16 %v4253
      %v4459 = vunpack.c.l.b16 %v4254
      %v4460 = vunpack.c.h.b16 %v4254
      %v4461 = vunpack.c.l.b16 %v4255
      %v4462 = vunpack.c.h.b16 %v4255
      %v4463 = vunpack.c.l.b16 %v4256
      %v4464 = vunpack.c.h.b16 %v4256
      %v4465 = vunpack.c.l.b16 %v4257
      %v4466 = vunpack.c.h.b16 %v4257
      %v4467 = vunpack.c.l.b16 %v4258
      %v4468 = vunpack.c.h.b16 %v4258
      %v4469 = vunpack.c.l.b16 %v4259
      %v4470 = vunpack.c.h.b16 %v4259
      %v4471 = vunpack.c.l.b16 %v4260
      %v4472 = vunpack.c.h.b16 %v4260
      %v4473 = vunpack.c.l.b16 %v4261
      %v4474 = vunpack.c.h.b16 %v4261
      %v4475 = vunpack.c.l.b16 %v4262
      %v4476 = vunpack.c.h.b16 %v4262
      %v4477 = vunpack.c.l.b16 %v4263
      %v4478 = vunpack.c.h.b16 %v4263
      %v4479 = vunpack.c.l.b16 %v4264
      %v4480 = vunpack.c.h.b16 %v4264
      %v4481 = vunpack.c.l.b16 %v4265
      %v4482 = vunpack.c.h.b16 %v4265
      %v4483 = vunpack.c.l.b16 %v4266
      %v4484 = vunpack.c.h.b16 %v4266
      %v4485 = vunpack.c.l.b16 %v4267
      %v4486 = vunpack.c.h.b16 %v4267
      %v4487 = vunpack.c.l.b16 %v4268
      %v4488 = vunpack.c.h.b16 %v4268
      %v4489 = vunpack.c.l.b16 %v4269
      %v4490 = vunpack.c.h.b16 %v4269
      %v4491 = vunpack.c.l.b16 %v4270
      %v4492 = vunpack.c.h.b16 %v4270
      %v4493 = vunpack.c.l.b16 %v4271
      %v4494 = vunpack.c.h.b16 %v4271
      %v4495 = vunpack.c.l.b16 %v4272
      %v4496 = vunpack.c.h.b16 %v4272
      %v4497 = vunpack.c.l.b16 %v4273
      %v4498 = vunpack.c.h.b16 %v4273
      %v4499 = vunpack.c.l.b16 %v4274
      %v4500 = vunpack.c.h.b16 %v4274
      %v4501 = vunpack.c.l.b16 %v4275
      %v4502 = vunpack.c.h.b16 %v4275
      %v4503 = vunpack.c.l.b16 %v4276
      %v4504 = vunpack.c.h.b16 %v4276
      %v4505 = vunpack.c.l.b16 %v4277
      %v4506 = vunpack.c.h.b16 %v4277
      %v4507 = vunpack.c.l.b16 %v4278
      %v4508 = vunpack.c.h.b16 %v4278
      %v4509 = vunpack.c.l.b16 %v4279
      %v4510 = vunpack.c.h.b16 %v4279
      %v4511 = vunpack.c.l.b16 %v4280
      %v4512 = vunpack.c.h.b16 %v4280
      %v4513 = vunpack.c.l.b16 %v4281
      %v4514 = vunpack.c.h.b16 %v4281
      %v4515 = vunpack.c.l.b16 %v4282
      %v4516 = vunpack.c.h.b16 %v4282
      %v4517 = vunpack.c.l.b16 %v4283
      %v4518 = vunpack.c.h.b16 %v4283
      %v4519 = vunpack.c.l.b16 %v4284
      %v4520 = vunpack.c.h.b16 %v4284
      %v4521 = vunpack.c.l.b16 %v4285
      %v4522 = vunpack.c.h.b16 %v4285
      %v4523 = vunpack.c.l.b16 %v4286
      %v4524 = vunpack.c.h.b16 %v4286
      %v4525 = vunpack.c.l.b16 %v4287
      %v4526 = vunpack.c.h.b16 %v4287
      %v4527 = vunpack.c.l.b16 %v4288
      %v4528 = vunpack.c.h.b16 %v4288
      %v4529 = vunpack.c.l.b16 %v4289
      %v4530 = vunpack.c.h.b16 %v4289
      %v4531 = vunpack.c.l.b16 %v4290
      %v4532 = vunpack.c.h.b16 %v4290
      %v4533 = vunpack.c.l.b16 %v4291
      %v4534 = vunpack.c.h.b16 %v4291
      %v4535 = vunpack.c.l.b16 %v4292
      %v4536 = vunpack.c.h.b16 %v4292
      %v4537 = vunpack.c.l.b16 %v4293
      %v4538 = vunpack.c.h.b16 %v4293
      %v4539 = vunpack.c.l.b16 %v4294
      %v4540 = vunpack.c.h.b16 %v4294
      %v4541 = vunpack.c.l.b16 %v4295
      %v4542 = vunpack.c.h.b16 %v4295
      %v4543 = vunpack.c.l.b16 %v4296
      %v4544 = vunpack.c.h.b16 %v4296
      %v4545 = vunpack.c.l.b16 %v4297
      %v4546 = vunpack.c.h.b16 %v4297
      %v4547 = vunpack.c.l.b16 %v4298
      %v4548 = vunpack.c.h.b16 %v4298
      %v4549 = vunpack.c.l.b16 %v4299
      %v4550 = vunpack.c.h.b16 %v4299
      %v4551 = vunpack.c.l.b16 %v4300
      %v4552 = vunpack.c.h.b16 %v4300
      %v4553 = vunpack.c.l.b16 %v4301
      %v4554 = vunpack.c.h.b16 %v4301
      %v4555 = vunpack.c.l.b16 %v4302
      %v4556 = vunpack.c.h.b16 %v4302
      %v4557 = vunpack.c.l.b16 %v4303
      %v4558 = vunpack.c.h.b16 %v4303
      %v4559 = vunpack.c.l.b16 %v4304
      %v4560 = vunpack.c.h.b16 %v4304
      %v4561 = vunpack.c.l.b16 %v4305
      %v4562 = vunpack.c.h.b16 %v4305
      %v4563 = vunpack.c.l.b16 %v4306
      %v4564 = vunpack.c.h.b16 %v4306
      %v4565 = vunpack.c.l.b16 %v4307
      %v4566 = vunpack.c.h.b16 %v4307
      %v4567 = vunpack.c.l.b16 %v4308
      %v4568 = vunpack.c.h.b16 %v4308
      %v4569 = vunpack.c.l.b16 %v4309
      %v4570 = vunpack.c.h.b16 %v4309
      %v4571 = vunpack.c.l.b16 %v4310
      %v4572 = vunpack.c.h.b16 %v4310
      %v4573 = vunpack.c.l.b16 %v4311
      %v4574 = vunpack.c.h.b16 %v4311
      %v4575 = vunpack.c.l.b16 %v4312
      %v4576 = vunpack.c.h.b16 %v4312
      %v4577 = vunpack.c.l.b16 %v4313
      %v4578 = vunpack.c.h.b16 %v4313
      %v4579 = vunpack.c.l.b16 %v4314
      %v4580 = vunpack.c.h.b16 %v4314
      %v4581 = vunpack.c.l.b16 %v4315
      %v4582 = vunpack.c.h.b16 %v4315
      %v4583 = vunpack.c.l.b16 %v4316
      %v4584 = vunpack.c.h.b16 %v4316
      %v4585 = vunpack.c.l.b16 %v4317
      %v4586 = vunpack.c.h.b16 %v4317
      %v4587 = vunpack.c.l.b16 %v4318
      %v4588 = vunpack.c.h.b16 %v4318
      %v4589 = vunpack.c.l.b16 %v4319
      %v4590 = vunpack.c.h.b16 %v4319
      %v4591 = vunpack.c.l.b16 %v4320
      %v4592 = vunpack.c.h.b16 %v4320
      %v4593 = vunpack.c.l.b16 %v4321
      %v4594 = vunpack.c.h.b16 %v4321
      %v4595 = vunpack.c.l.b16 %v4322
      %v4596 = vunpack.c.h.b16 %v4322
      %v4597 = vunpack.c.l.b16 %v4323
      %v4598 = vunpack.c.h.b16 %v4323
      %v4599 = vunpack.c.l.b16 %v4324
      %v4600 = vunpack.c.h.b16 %v4324
      %v4601 = vunpack.c.l.b16 %v4325
      %v4602 = vunpack.c.h.b16 %v4325
      %v4603 = vunpack.c.l.b16 %v4326
      %v4604 = vunpack.c.h.b16 %v4326
      %v4605 = vunpack.c.l.b16 %v4327
      %v4606 = vunpack.c.h.b16 %v4327
      %v4607 = vunpack.c.l.b16 %v4328
      %v4608 = vunpack.c.h.b16 %v4328
      %v4609 = vunpack.c.l.b16 %v4329
      %v4610 = vunpack.c.h.b16 %v4329
      %v4611 = vunpack.c.l.b16 %v4330
      %v4612 = vunpack.c.h.b16 %v4330
      %v4613 = vunpack.c.l.b16 %v4331
      %v4614 = vunpack.c.h.b16 %v4331
      %v4615 = vunpack.c.l.b16 %v4332
      %v4616 = vunpack.c.h.b16 %v4332
      %v4617 = vunpack.c.l.b16 %v4333
      %v4618 = vunpack.c.h.b16 %v4333
      %v4619 = vunpack.c.l.b16 %v4334
      %v4620 = vunpack.c.h.b16 %v4334
      %v4621 = vunpack.c.l.b16 %v4335
      %v4622 = vunpack.c.h.b16 %v4335
      %v4623 = vunpack.c.l.b16 %v4336
      %v4624 = vunpack.c.h.b16 %v4336
      %v4625 = vpack.c.b16 %v4439, %v4433
      %v4626 = vpack.c.b16 %v4440, %v4434
      %v4627 = vpack.c.b16 %v4441, %v4435
      %v4628 = vpack.c.b16 %v4442, %v4436
      %v4629 = vpack.c.b16 %v4443, %v4437
      %v4630 = vpack.c.b16 %v4444, %v4438
      %v4631 = vpack.c.b16 %v4451, %v4445
      %v4632 = vpack.c.b16 %v4452, %v4446
      %v4633 = vpack.c.b16 %v4453, %v4447
      %v4634 = vpack.c.b16 %v4454, %v4448
      %v4635 = vpack.c.b16 %v4455, %v4449
      %v4636 = vpack.c.b16 %v4456, %v4450
      %v4637 = vpack.c.b16 %v4463, %v4457
      %v4638 = vpack.c.b16 %v4464, %v4458
      %v4639 = vpack.c.b16 %v4465, %v4459
      %v4640 = vpack.c.b16 %v4466, %v4460
      %v4641 = vpack.c.b16 %v4467, %v4461
      %v4642 = vpack.c.b16 %v4468, %v4462
      %v4643 = vpack.c.b16 %v4475, %v4469
      %v4644 = vpack.c.b16 %v4476, %v4470
      %v4645 = vpack.c.b16 %v4477, %v4471
      %v4646 = vpack.c.b16 %v4478, %v4472
      %v4647 = vpack.c.b16 %v4479, %v4473
      %v4648 = vpack.c.b16 %v4480, %v4474
      %v4649 = vpack.c.b16 %v4487, %v4481
      %v4650 = vpack.c.b16 %v4488, %v4482
      %v4651 = vpack.c.b16 %v4489, %v4483
      %v4652 = vpack.c.b16 %v4490, %v4484
      %v4653 = vpack.c.b16 %v4491, %v4485
      %v4654 = vpack.c.b16 %v4492, %v4486
      %v4655 = vpack.c.b16 %v4499, %v4493
      %v4656 = vpack.c.b16 %v4500, %v4494
      %v4657 = vpack.c.b16 %v4501, %v4495
      %v4658 = vpack.c.b16 %v4502, %v4496
      %v4659 = vpack.c.b16 %v4503, %v4497
      %v4660 = vpack.c.b16 %v4504, %v4498
      %v4661 = vpack.c.b16 %v4511, %v4505
      %v4662 = vpack.c.b16 %v4512, %v4506
      %v4663 = vpack.c.b16 %v4513, %v4507
      %v4664 = vpack.c.b16 %v4514, %v4508
      %v4665 = vpack.c.b16 %v4515, %v4509
      %v4666 = vpack.c.b16 %v4516, %v4510
      %v4667 = vpack.c.b16 %v4523, %v4517
      %v4668 = vpack.c.b16 %v4524, %v4518
      %v4669 = vpack.c.b16 %v4525, %v4519
      %v4670 = vpack.c.b16 %v4526, %v4520
      %v4671 = vpack.c.b16 %v4527, %v4521
      %v4672 = vpack.c.b16 %v4528, %v4522
      %v4673 = vpack.c.b16 %v4535, %v4529
      %v4674 = vpack.c.b16 %v4536, %v4530
      %v4675 = vpack.c.b16 %v4537, %v4531
      %v4676 = vpack.c.b16 %v4538, %v4532
      %v4677 = vpack.c.b16 %v4539, %v4533
      %v4678 = vpack.c.b16 %v4540, %v4534
      %v4679 = vpack.c.b16 %v4547, %v4541
      %v4680 = vpack.c.b16 %v4548, %v4542
      %v4681 = vpack.c.b16 %v4549, %v4543
      %v4682 = vpack.c.b16 %v4550, %v4544
      %v4683 = vpack.c.b16 %v4551, %v4545
      %v4684 = vpack.c.b16 %v4552, %v4546
      %v4685 = vpack.c.b16 %v4559, %v4553
      %v4686 = vpack.c.b16 %v4560, %v4554
      %v4687 = vpack.c.b16 %v4561, %v4555
      %v4688 = vpack.c.b16 %v4562, %v4556
      %v4689 = vpack.c.b16 %v4563, %v4557
      %v4690 = vpack.c.b16 %v4564, %v4558
      %v4691 = vpack.c.b16 %v4571, %v4565
      %v4692 = vpack.c.b16 %v4572, %v4566
      %v4693 = vpack.c.b16 %v4573, %v4567
      %v4694 = vpack.c.b16 %v4574, %v4568
      %v4695 = vpack.c.b16 %v4575, %v4569
      %v4696 = vpack.c.b16 %v4576, %v4570
      %v4697 = vpack.c.b16 %v4583, %v4577
      %v4698 = vpack.c.b16 %v4584, %v4578
      %v4699 = vpack.c.b16 %v4585, %v4579
      %v4700 = vpack.c.b16 %v4586, %v4580
      %v4701 = vpack.c.b16 %v4587, %v4581
      %v4702 = vpack.c.b16 %v4588, %v4582
      %v4703 = vpack.c.b16 %v4595, %v4589
      %v4704 = vpack.c.b16 %v4596, %v4590
      %v4705 = vpack.c.b16 %v4597, %v4591
      %v4706 = vpack.c.b16 %v4598, %v4592
      %v4707 = vpack.c.b16 %v4599, %v4593
      %v4708 = vpack.c.b16 %v4600, %v4594
      %v4709 = vpack.c.b16 %v4607, %v4601
      %v4710 = vpack.c.b16 %v4608, %v4602
      %v4711 = vpack.c.b16 %v4609, %v4603
      %v4712 = vpack.c.b16 %v4610, %v4604
      %v4713 = vpack.c.b16 %v4611, %v4605
      %v4714 = vpack.c.b16 %v4612, %v4606
      %v4715 = vpack.c.b16 %v4619, %v4613
      %v4716 = vpack.c.b16 %v4620, %v4614
      %v4717 = vpack.c.b16 %v4621, %v4615
      %v4718 = vpack.c.b16 %v4622, %v4616
      %v4719 = vpack.c.b16 %v4623, %v4617
      %v4720 = vpack.c.b16 %v4624, %v4618
      %4817 = vmatprep.subr.bf16.mxu0 %v4668
      %4818 = vmatpush1.bf16.msra.mxu0 %v4667
      %4819 = vmatprep.subr.bf16.mxu0 %v4662
      %4820 = vmatpush1.bf16.msra.mxu0 %v4661
      %4821 = vmatprep.subr.bf16.mxu0 %v4656
      %4822 = vmatpush1.bf16.msra.mxu0 %v4655
      %4823 = vmatprep.subr.bf16.mxu0 %v4650
      %4824 = vmatpush1.bf16.msra.mxu0 %v4649
      %4825 = vmatprep.subr.bf16.mxu0 %v4644
      %4826 = vmatpush1.bf16.msra.mxu0 %v4643
      %4827 = vmatprep.subr.bf16.mxu0 %v4638
      %4828 = vmatpush1.bf16.msra.mxu0 %v4637
      %4829 = vmatprep.subr.bf16.mxu0 %v4632
      %4830 = vmatpush1.bf16.msra.mxu0 %v4631
      %4831 = vmatprep.subr.bf16.mxu0 %v4626
      %4832 = vmatpush1.bf16.msra.mxu0 %v4625
      %4833 = vmatprep.subr.bf16.mxu0 %v4716
      %4834 = vmatpush2.bf16.msra.mxu0 %v4715
      %4835 = vmatprep.subr.bf16.mxu0 %v4710
      %4836 = vmatpush2.bf16.msra.mxu0 %v4709
      %4837 = vmatprep.subr.bf16.mxu0 %v4704
      %4838 = vmatpush2.bf16.msra.mxu0 %v4703
      %4839 = vmatprep.subr.bf16.mxu0 %v4698
      %4840 = vmatpush2.bf16.msra.mxu0 %v4697
      %4841 = vmatprep.subr.bf16.mxu0 %v4692
      %4842 = vmatpush2.bf16.msra.mxu0 %v4691
      %4843 = vmatprep.subr.bf16.mxu0 %v4686
      %4844 = vmatpush2.bf16.msra.mxu0 %v4685
      %4845 = vmatprep.subr.bf16.mxu0 %v4680
      %4846 = vmatpush2.bf16.msra.mxu0 %v4679
      %4847 = vmatprep.subr.bf16.mxu0 %v4674
      %4848 = vmatpush2.bf16.msra.mxu0 %v4673
      %4849 = vmatprep.mubr.bf16.mxu0 %v4240
      %4850 = vmatmul.mubr.bf16.gmra.mxu0 %v4239
      %v4851 = vpop.f32.mrf.mxu0
      %v4852 = vadd.f32 0.0, %v4851
      %v4853 = vpop.f32.mrf.mxu0
      %v4854 = vadd.f32 0.0, %v4853
      %v4855 = vpop.f32.mrf.mxu0
      %v4856 = vpop.f32.mrf.mxu0
      %4857 = vdwg.mxu0
      %4858 = vmatprep.subr.bf16.mxu0 %v4670
      %4859 = vmatpush1.bf16.msra.mxu0 %v4669
      %4860 = vmatprep.subr.bf16.mxu0 %v4664
      %4861 = vmatpush1.bf16.msra.mxu0 %v4663
      %4862 = vmatprep.subr.bf16.mxu0 %v4658
      %4863 = vmatpush1.bf16.msra.mxu0 %v4657
      %4864 = vmatprep.subr.bf16.mxu0 %v4652
      %4865 = vmatpush1.bf16.msra.mxu0 %v4651
      %4866 = vmatprep.subr.bf16.mxu0 %v4646
      %4867 = vmatpush1.bf16.msra.mxu0 %v4645
      %4868 = vmatprep.subr.bf16.mxu0 %v4640
      %4869 = vmatpush1.bf16.msra.mxu0 %v4639
      %4870 = vmatprep.subr.bf16.mxu0 %v4634
      %4871 = vmatpush1.bf16.msra.mxu0 %v4633
      %4872 = vmatprep.subr.bf16.mxu0 %v4628
      %4873 = vmatpush1.bf16.msra.mxu0 %v4627
      %4874 = vmatprep.subr.bf16.mxu0 %v4718
      %4875 = vmatpush2.bf16.msra.mxu0 %v4717
      %4876 = vmatprep.subr.bf16.mxu0 %v4712
      %4877 = vmatpush2.bf16.msra.mxu0 %v4711
      %4878 = vmatprep.subr.bf16.mxu0 %v4706
      %4879 = vmatpush2.bf16.msra.mxu0 %v4705
      %4880 = vmatprep.subr.bf16.mxu0 %v4700
      %4881 = vmatpush2.bf16.msra.mxu0 %v4699
      %4882 = vmatprep.subr.bf16.mxu0 %v4694
      %4883 = vmatpush2.bf16.msra.mxu0 %v4693
      %4884 = vmatprep.subr.bf16.mxu0 %v4688
      %4885 = vmatpush2.bf16.msra.mxu0 %v4687
      %4886 = vmatprep.subr.bf16.mxu0 %v4682
      %4887 = vmatpush2.bf16.msra.mxu0 %v4681
      %4888 = vmatprep.subr.bf16.mxu0 %v4676
      %4889 = vmatpush2.bf16.msra.mxu0 %v4675
      %4890 = vmatprep.mubr.bf16.mxu0 %v4240
      %4891 = vmatmul.mubr.bf16.gmra.mxu0 %v4239
      %v4892 = vpop.f32.mrf.mxu0
      %v4893 = vadd.f32 0.0, %v4892
      %v4894 = vpop.f32.mrf.mxu0
      %v4895 = vadd.f32 0.0, %v4894
      %v4896 = vpop.f32.mrf.mxu0
      %v4897 = vpop.f32.mrf.mxu0
      %4898 = vdwg.mxu0
      %4899 = vmatprep.subr.bf16.mxu0 %v4672
      %4900 = vmatpush1.bf16.msra.mxu0 %v4671
      %4901 = vmatprep.subr.bf16.mxu0 %v4666
      %4902 = vmatpush1.bf16.msra.mxu0 %v4665
      %4903 = vmatprep.subr.bf16.mxu0 %v4660
      %4904 = vmatpush1.bf16.msra.mxu0 %v4659
      %4905 = vmatprep.subr.bf16.mxu0 %v4654
      %4906 = vmatpush1.bf16.msra.mxu0 %v4653
      %4907 = vmatprep.subr.bf16.mxu0 %v4648
      %4908 = vmatpush1.bf16.msra.mxu0 %v4647
      %4909 = vmatprep.subr.bf16.mxu0 %v4642
      %4910 = vmatpush1.bf16.msra.mxu0 %v4641
      %4911 = vmatprep.subr.bf16.mxu0 %v4636
      %4912 = vmatpush1.bf16.msra.mxu0 %v4635
      %4913 = vmatprep.subr.bf16.mxu0 %v4630
      %4914 = vmatpush1.bf16.msra.mxu0 %v4629
      %4915 = vmatprep.subr.bf16.mxu0 %v4720
      %4916 = vmatpush2.bf16.msra.mxu0 %v4719
      %4917 = vmatprep.subr.bf16.mxu0 %v4714
      %4918 = vmatpush2.bf16.msra.mxu0 %v4713
      %4919 = vmatprep.subr.bf16.mxu0 %v4708
      %4920 = vmatpush2.bf16.msra.mxu0 %v4707
      %4921 = vmatprep.subr.bf16.mxu0 %v4702
      %4922 = vmatpush2.bf16.msra.mxu0 %v4701
      %4923 = vmatprep.subr.bf16.mxu0 %v4696
      %4924 = vmatpush2.bf16.msra.mxu0 %v4695
      %4925 = vmatprep.subr.bf16.mxu0 %v4690
      %4926 = vmatpush2.bf16.msra.mxu0 %v4689
      %4927 = vmatprep.subr.bf16.mxu0 %v4684
      %4928 = vmatpush2.bf16.msra.mxu0 %v4683
      %4929 = vmatprep.subr.bf16.mxu0 %v4678
      %4930 = vmatpush2.bf16.msra.mxu0 %v4677
      %4931 = vmatprep.mubr.bf16.mxu0 %v4240
      %4932 = vmatmul.mubr.bf16.gmra.mxu0 %v4239
      %v4933 = vpop.f32.mrf.mxu0
      %v4934 = vadd.f32 0.0, %v4933
      %v4935 = vpop.f32.mrf.mxu0
      %v4936 = vadd.f32 0.0, %v4935
      %v4937 = vpop.f32.mrf.mxu0
      %v4938 = vpop.f32.mrf.mxu0
      %4939 = vdwg.mxu0
      %s4940 = scalar_lea.vmem %s192, 5
      %v4941 = vld [vmem:[%s4940] ss:$8 sm:$0xf]
      %v4942 = vld [vmem:[%s4940] ss:$8 sm:$0x30]
      %v4943 = vor.u32 %v4941, %v4942
      %v4946 = vcombine.low %v4852, %v4854
      %v4948 = vunpack.c.l.s4 1966171168
      %v4949 = vunpack.c.0.s8 %v4948
      %v4950 = vlaneseq
      %v4951 = vshrl.u32 %v4950, 7
      %v4952 = vsub.s32 %v4949, %v4951
      %v4953 = vrot.slane %v4946, %v4952
      %v4955 = vunpack.c.l.s4 1966171168
      %v4956 = vunpack.c.0.s8 %v4955
      %v4957 = vlaneseq
      %v4958 = vshrl.u32 %v4957, 7
      %v4959 = vsub.s32 %v4956, %v4958
      %v4960 = vrot.slane %v4953, %v4959
      %v4962 = vadd.f32 %v4943, %v4960
      %v4963 = vxor.u32 %v4962, 2147483648
      %v4964 = vmul.f32 %v4963, 1.442695
      %v4965 = vpow.pop %v4964
      %v4966 = vadd.f32 %v4965, 1.0
      %v4967 = vrcp.pop %v4966
      %v4968 = vmul.f32 1.0, %v4967
      %v4970 = vrot.slane %v4943, 2
      %v4974 = vcombine.low %v4893, %v4895
      %v4976 = vunpack.c.l.s4 1966171168
      %v4977 = vunpack.c.0.s8 %v4976
      %v4978 = vlaneseq
      %v4979 = vshrl.u32 %v4978, 7
      %v4980 = vsub.s32 %v4977, %v4979
      %v4981 = vrot.slane %v4974, %v4980
      %v4983 = vunpack.c.l.s4 1966171168
      %v4984 = vunpack.c.0.s8 %v4983
      %v4985 = vlaneseq
      %v4986 = vshrl.u32 %v4985, 7
      %v4987 = vsub.s32 %v4984, %v4986
      %v4988 = vrot.slane %v4981, %v4987
      %v4990 = vadd.f32 %v4970, %v4988
      %v4991 = vxor.u32 %v4990, 2147483648
      %v4992 = vmul.f32 %v4991, 1.442695
      %v4993 = vpow.pop %v4992
      %v4994 = vadd.f32 %v4993, 1.0
      %v4995 = vrcp.pop %v4994
      %v4996 = vmul.f32 1.0, %v4995
      %v4997 = vadd.f32 %v4934, %v982
      %v4998 = vadd.f32 %v4936, %v986
      %v5001 = vcombine.low %v4997, %v4998
      %v5003 = vunpack.c.l.s4 1966171168
      %v5004 = vunpack.c.0.s8 %v5003
      %v5005 = vlaneseq
      %v5006 = vshrl.u32 %v5005, 7
      %v5007 = vsub.s32 %v5004, %v5006
      %v5008 = vrot.slane %v5001, %v5007
      %v5010 = vunpack.c.l.s4 1966171168
      %v5011 = vunpack.c.0.s8 %v5010
      %v5012 = vlaneseq
      %v5013 = vshrl.u32 %v5012, 7
      %v5014 = vsub.s32 %v5011, %v5013
      %v5015 = vrot.slane %v5008, %v5014
      %v5017 = vmul.f32 %v4968, %v5015
      %v5018 = vrot.slane %v4943, 4
      %v5020 = vadd.f32 %v5018, %v5017
      %v5021 = vtanh.pop %v5020
      %v5022 = vsub.f32 1.0, %v4996
      %v5023 = vmul.f32 %v5022, %v5021
      %v5024 = vmul.f32 %v4996, %v4224
      %v5025 = vadd.f32 %v5023, %v5024
      %s5026 = scalar_lea.vmem %s197, 5
      %5027 = vst.msk [vmem:[%s5026] ss:$8 sm:$0x3] %vm1021, %v5025
      %5028 = vst.msk [vmem:[%s5026] ss:$8 sm:$0x0] %vm1021, %v5025
      %v5030 = vlaneseq
      %v5031 = vshrl.u32 %v5030, 7
      %v5032 = vsub.s32 0, %v5031
      %v5033 = vrot.slane %v5025, %v5032
      %v5034 = vlaneseq
      %v5035 = vshrl.u32 %v5034, 7
      %v5036 = vsub.s32 1, %v5035
      %v5037 = vrot.slane %v5025, %v5036
      %v5040 = vpack.c.bf16 %v5033, %v5033
      %v5041 = vpack.c.bf16 %v5037, %v5037
      %v5042 = vld [vmem:[%s1] sm:$0xff]
      %v5043 = vld [vmem:[%s1 + $0x8] sm:$0xff]
      %v5044 = vld [vmem:[%s1 + $0x10] sm:$0xff]
      %v5045 = vld [vmem:[%s1 + $0x18] sm:$0xff]
      %v5046 = vld [vmem:[%s1 + $0x20] sm:$0xff]
      %v5047 = vld [vmem:[%s1 + $0x28] sm:$0xff]
      %v5048 = vld [vmem:[%s1 + $0x30] sm:$0xff]
      %v5049 = vld [vmem:[%s1 + $0x38] sm:$0xff]
      %v5050 = vld [vmem:[%s1 + $0x40] sm:$0xff]
      %v5051 = vld [vmem:[%s1 + $0x48] sm:$0xff]
      %v5052 = vld [vmem:[%s1 + $0x50] sm:$0xff]
      %v5053 = vld [vmem:[%s1 + $0x58] sm:$0xff]
      %v5054 = vld [vmem:[%s1 + $0x60] sm:$0xff]
      %v5055 = vld [vmem:[%s1 + $0x68] sm:$0xff]
      %v5056 = vld [vmem:[%s1 + $0x70] sm:$0xff]
      %v5057 = vld [vmem:[%s1 + $0x78] sm:$0xff]
      %v5058 = vld [vmem:[%s1 + $0x80] sm:$0xff]
      %v5059 = vld [vmem:[%s1 + $0x88] sm:$0xff]
      %v5060 = vld [vmem:[%s1 + $0x90] sm:$0xff]
      %v5061 = vld [vmem:[%s1 + $0x98] sm:$0xff]
      %v5062 = vld [vmem:[%s1 + $0xa0] sm:$0xff]
      %v5063 = vld [vmem:[%s1 + $0xa8] sm:$0xff]
      %v5064 = vld [vmem:[%s1 + $0xb0] sm:$0xff]
      %v5065 = vld [vmem:[%s1 + $0xb8] sm:$0xff]
      %v5066 = vld [vmem:[%s1 + $0xc0] sm:$0xff]
      %v5067 = vld [vmem:[%s1 + $0xc8] sm:$0xff]
      %v5068 = vld [vmem:[%s1 + $0xd0] sm:$0xff]
      %v5069 = vld [vmem:[%s1 + $0xd8] sm:$0xff]
      %v5070 = vld [vmem:[%s1 + $0xe0] sm:$0xff]
      %v5071 = vld [vmem:[%s1 + $0xe8] sm:$0xff]
      %v5072 = vld [vmem:[%s1 + $0xf0] sm:$0xff]
      %v5073 = vld [vmem:[%s1 + $0xf8] sm:$0xff]
      %v5074 = vld [vmem:[%s1 + $0x100] sm:$0xff]
      %v5075 = vld [vmem:[%s1 + $0x108] sm:$0xff]
      %v5076 = vld [vmem:[%s1 + $0x110] sm:$0xff]
      %v5077 = vld [vmem:[%s1 + $0x118] sm:$0xff]
      %v5078 = vld [vmem:[%s1 + $0x120] sm:$0xff]
      %v5079 = vld [vmem:[%s1 + $0x128] sm:$0xff]
      %v5080 = vld [vmem:[%s1 + $0x130] sm:$0xff]
      %v5081 = vld [vmem:[%s1 + $0x138] sm:$0xff]
      %v5082 = vld [vmem:[%s1 + $0x140] sm:$0xff]
      %v5083 = vld [vmem:[%s1 + $0x148] sm:$0xff]
      %v5084 = vld [vmem:[%s1 + $0x150] sm:$0xff]
      %v5085 = vld [vmem:[%s1 + $0x158] sm:$0xff]
      %v5086 = vld [vmem:[%s1 + $0x160] sm:$0xff]
      %v5087 = vld [vmem:[%s1 + $0x168] sm:$0xff]
      %v5088 = vld [vmem:[%s1 + $0x170] sm:$0xff]
      %v5089 = vld [vmem:[%s1 + $0x178] sm:$0xff]
      %v5090 = vld [vmem:[%s1 + $0x180] sm:$0xff]
      %v5091 = vld [vmem:[%s1 + $0x188] sm:$0xff]
      %v5092 = vld [vmem:[%s1 + $0x190] sm:$0xff]
      %v5093 = vld [vmem:[%s1 + $0x198] sm:$0xff]
      %v5094 = vld [vmem:[%s1 + $0x1a0] sm:$0xff]
      %v5095 = vld [vmem:[%s1 + $0x1a8] sm:$0xff]
      %v5096 = vld [vmem:[%s1 + $0x1b0] sm:$0xff]
      %v5097 = vld [vmem:[%s1 + $0x1b8] sm:$0xff]
      %v5098 = vld [vmem:[%s1 + $0x1c0] sm:$0xff]
      %v5099 = vld [vmem:[%s1 + $0x1c8] sm:$0xff]
      %v5100 = vld [vmem:[%s1 + $0x1d0] sm:$0xff]
      %v5101 = vld [vmem:[%s1 + $0x1d8] sm:$0xff]
      %v5102 = vld [vmem:[%s1 + $0x1e0] sm:$0xff]
      %v5103 = vld [vmem:[%s1 + $0x1e8] sm:$0xff]
      %v5104 = vld [vmem:[%s1 + $0x1f0] sm:$0xff]
      %v5105 = vld [vmem:[%s1 + $0x1f8] sm:$0xff]
      %v5106 = vld [vmem:[%s1 + $0x200] sm:$0xff]
      %v5107 = vld [vmem:[%s1 + $0x208] sm:$0xff]
      %v5108 = vld [vmem:[%s1 + $0x210] sm:$0xff]
      %v5109 = vld [vmem:[%s1 + $0x218] sm:$0xff]
      %v5110 = vld [vmem:[%s1 + $0x220] sm:$0xff]
      %v5111 = vld [vmem:[%s1 + $0x228] sm:$0xff]
      %v5112 = vld [vmem:[%s1 + $0x230] sm:$0xff]
      %v5113 = vld [vmem:[%s1 + $0x238] sm:$0xff]
      %v5114 = vld [vmem:[%s1 + $0x240] sm:$0xff]
      %v5115 = vld [vmem:[%s1 + $0x248] sm:$0xff]
      %v5116 = vld [vmem:[%s1 + $0x250] sm:$0xff]
      %v5117 = vld [vmem:[%s1 + $0x258] sm:$0xff]
      %v5118 = vld [vmem:[%s1 + $0x260] sm:$0xff]
      %v5119 = vld [vmem:[%s1 + $0x268] sm:$0xff]
      %v5120 = vld [vmem:[%s1 + $0x270] sm:$0xff]
      %v5121 = vld [vmem:[%s1 + $0x278] sm:$0xff]
      %v5122 = vld [vmem:[%s1 + $0x280] sm:$0xff]
      %v5123 = vld [vmem:[%s1 + $0x288] sm:$0xff]
      %v5124 = vld [vmem:[%s1 + $0x290] sm:$0xff]
      %v5125 = vld [vmem:[%s1 + $0x298] sm:$0xff]
      %v5126 = vld [vmem:[%s1 + $0x2a0] sm:$0xff]
      %v5127 = vld [vmem:[%s1 + $0x2a8] sm:$0xff]
      %v5128 = vld [vmem:[%s1 + $0x2b0] sm:$0xff]
      %v5129 = vld [vmem:[%s1 + $0x2b8] sm:$0xff]
      %v5130 = vld [vmem:[%s1 + $0x2c0] sm:$0xff]
      %v5131 = vld [vmem:[%s1 + $0x2c8] sm:$0xff]
      %v5132 = vld [vmem:[%s1 + $0x2d0] sm:$0xff]
      %v5133 = vld [vmem:[%s1 + $0x2d8] sm:$0xff]
      %v5134 = vld [vmem:[%s1 + $0x2e0] sm:$0xff]
      %v5135 = vld [vmem:[%s1 + $0x2e8] sm:$0xff]
      %v5136 = vld [vmem:[%s1 + $0x2f0] sm:$0xff]
      %v5137 = vld [vmem:[%s1 + $0x2f8] sm:$0xff]
      %v5234 = vunpack.c.l.b16 %v5042
      %v5235 = vunpack.c.h.b16 %v5042
      %v5236 = vunpack.c.l.b16 %v5043
      %v5237 = vunpack.c.h.b16 %v5043
      %v5238 = vunpack.c.l.b16 %v5044
      %v5239 = vunpack.c.h.b16 %v5044
      %v5240 = vunpack.c.l.b16 %v5045
      %v5241 = vunpack.c.h.b16 %v5045
      %v5242 = vunpack.c.l.b16 %v5046
      %v5243 = vunpack.c.h.b16 %v5046
      %v5244 = vunpack.c.l.b16 %v5047
      %v5245 = vunpack.c.h.b16 %v5047
      %v5246 = vunpack.c.l.b16 %v5048
      %v5247 = vunpack.c.h.b16 %v5048
      %v5248 = vunpack.c.l.b16 %v5049
      %v5249 = vunpack.c.h.b16 %v5049
      %v5250 = vunpack.c.l.b16 %v5050
      %v5251 = vunpack.c.h.b16 %v5050
      %v5252 = vunpack.c.l.b16 %v5051
      %v5253 = vunpack.c.h.b16 %v5051
      %v5254 = vunpack.c.l.b16 %v5052
      %v5255 = vunpack.c.h.b16 %v5052
      %v5256 = vunpack.c.l.b16 %v5053
      %v5257 = vunpack.c.h.b16 %v5053
      %v5258 = vunpack.c.l.b16 %v5054
      %v5259 = vunpack.c.h.b16 %v5054
      %v5260 = vunpack.c.l.b16 %v5055
      %v5261 = vunpack.c.h.b16 %v5055
      %v5262 = vunpack.c.l.b16 %v5056
      %v5263 = vunpack.c.h.b16 %v5056
      %v5264 = vunpack.c.l.b16 %v5057
      %v5265 = vunpack.c.h.b16 %v5057
      %v5266 = vunpack.c.l.b16 %v5058
      %v5267 = vunpack.c.h.b16 %v5058
      %v5268 = vunpack.c.l.b16 %v5059
      %v5269 = vunpack.c.h.b16 %v5059
      %v5270 = vunpack.c.l.b16 %v5060
      %v5271 = vunpack.c.h.b16 %v5060
      %v5272 = vunpack.c.l.b16 %v5061
      %v5273 = vunpack.c.h.b16 %v5061
      %v5274 = vunpack.c.l.b16 %v5062
      %v5275 = vunpack.c.h.b16 %v5062
      %v5276 = vunpack.c.l.b16 %v5063
      %v5277 = vunpack.c.h.b16 %v5063
      %v5278 = vunpack.c.l.b16 %v5064
      %v5279 = vunpack.c.h.b16 %v5064
      %v5280 = vunpack.c.l.b16 %v5065
      %v5281 = vunpack.c.h.b16 %v5065
      %v5282 = vunpack.c.l.b16 %v5066
      %v5283 = vunpack.c.h.b16 %v5066
      %v5284 = vunpack.c.l.b16 %v5067
      %v5285 = vunpack.c.h.b16 %v5067
      %v5286 = vunpack.c.l.b16 %v5068
      %v5287 = vunpack.c.h.b16 %v5068
      %v5288 = vunpack.c.l.b16 %v5069
      %v5289 = vunpack.c.h.b16 %v5069
      %v5290 = vunpack.c.l.b16 %v5070
      %v5291 = vunpack.c.h.b16 %v5070
      %v5292 = vunpack.c.l.b16 %v5071
      %v5293 = vunpack.c.h.b16 %v5071
      %v5294 = vunpack.c.l.b16 %v5072
      %v5295 = vunpack.c.h.b16 %v5072
      %v5296 = vunpack.c.l.b16 %v5073
      %v5297 = vunpack.c.h.b16 %v5073
      %v5298 = vunpack.c.l.b16 %v5074
      %v5299 = vunpack.c.h.b16 %v5074
      %v5300 = vunpack.c.l.b16 %v5075
      %v5301 = vunpack.c.h.b16 %v5075
      %v5302 = vunpack.c.l.b16 %v5076
      %v5303 = vunpack.c.h.b16 %v5076
      %v5304 = vunpack.c.l.b16 %v5077
      %v5305 = vunpack.c.h.b16 %v5077
      %v5306 = vunpack.c.l.b16 %v5078
      %v5307 = vunpack.c.h.b16 %v5078
      %v5308 = vunpack.c.l.b16 %v5079
      %v5309 = vunpack.c.h.b16 %v5079
      %v5310 = vunpack.c.l.b16 %v5080
      %v5311 = vunpack.c.h.b16 %v5080
      %v5312 = vunpack.c.l.b16 %v5081
      %v5313 = vunpack.c.h.b16 %v5081
      %v5314 = vunpack.c.l.b16 %v5082
      %v5315 = vunpack.c.h.b16 %v5082
      %v5316 = vunpack.c.l.b16 %v5083
      %v5317 = vunpack.c.h.b16 %v5083
      %v5318 = vunpack.c.l.b16 %v5084
      %v5319 = vunpack.c.h.b16 %v5084
      %v5320 = vunpack.c.l.b16 %v5085
      %v5321 = vunpack.c.h.b16 %v5085
      %v5322 = vunpack.c.l.b16 %v5086
      %v5323 = vunpack.c.h.b16 %v5086
      %v5324 = vunpack.c.l.b16 %v5087
      %v5325 = vunpack.c.h.b16 %v5087
      %v5326 = vunpack.c.l.b16 %v5088
      %v5327 = vunpack.c.h.b16 %v5088
      %v5328 = vunpack.c.l.b16 %v5089
      %v5329 = vunpack.c.h.b16 %v5089
      %v5330 = vunpack.c.l.b16 %v5090
      %v5331 = vunpack.c.h.b16 %v5090
      %v5332 = vunpack.c.l.b16 %v5091
      %v5333 = vunpack.c.h.b16 %v5091
      %v5334 = vunpack.c.l.b16 %v5092
      %v5335 = vunpack.c.h.b16 %v5092
      %v5336 = vunpack.c.l.b16 %v5093
      %v5337 = vunpack.c.h.b16 %v5093
      %v5338 = vunpack.c.l.b16 %v5094
      %v5339 = vunpack.c.h.b16 %v5094
      %v5340 = vunpack.c.l.b16 %v5095
      %v5341 = vunpack.c.h.b16 %v5095
      %v5342 = vunpack.c.l.b16 %v5096
      %v5343 = vunpack.c.h.b16 %v5096
      %v5344 = vunpack.c.l.b16 %v5097
      %v5345 = vunpack.c.h.b16 %v5097
      %v5346 = vunpack.c.l.b16 %v5098
      %v5347 = vunpack.c.h.b16 %v5098
      %v5348 = vunpack.c.l.b16 %v5099
      %v5349 = vunpack.c.h.b16 %v5099
      %v5350 = vunpack.c.l.b16 %v5100
      %v5351 = vunpack.c.h.b16 %v5100
      %v5352 = vunpack.c.l.b16 %v5101
      %v5353 = vunpack.c.h.b16 %v5101
      %v5354 = vunpack.c.l.b16 %v5102
      %v5355 = vunpack.c.h.b16 %v5102
      %v5356 = vunpack.c.l.b16 %v5103
      %v5357 = vunpack.c.h.b16 %v5103
      %v5358 = vunpack.c.l.b16 %v5104
      %v5359 = vunpack.c.h.b16 %v5104
      %v5360 = vunpack.c.l.b16 %v5105
      %v5361 = vunpack.c.h.b16 %v5105
      %v5362 = vunpack.c.l.b16 %v5106
      %v5363 = vunpack.c.h.b16 %v5106
      %v5364 = vunpack.c.l.b16 %v5107
      %v5365 = vunpack.c.h.b16 %v5107
      %v5366 = vunpack.c.l.b16 %v5108
      %v5367 = vunpack.c.h.b16 %v5108
      %v5368 = vunpack.c.l.b16 %v5109
      %v5369 = vunpack.c.h.b16 %v5109
      %v5370 = vunpack.c.l.b16 %v5110
      %v5371 = vunpack.c.h.b16 %v5110
      %v5372 = vunpack.c.l.b16 %v5111
      %v5373 = vunpack.c.h.b16 %v5111
      %v5374 = vunpack.c.l.b16 %v5112
      %v5375 = vunpack.c.h.b16 %v5112
      %v5376 = vunpack.c.l.b16 %v5113
      %v5377 = vunpack.c.h.b16 %v5113
      %v5378 = vunpack.c.l.b16 %v5114
      %v5379 = vunpack.c.h.b16 %v5114
      %v5380 = vunpack.c.l.b16 %v5115
      %v5381 = vunpack.c.h.b16 %v5115
      %v5382 = vunpack.c.l.b16 %v5116
      %v5383 = vunpack.c.h.b16 %v5116
      %v5384 = vunpack.c.l.b16 %v5117
      %v5385 = vunpack.c.h.b16 %v5117
      %v5386 = vunpack.c.l.b16 %v5118
      %v5387 = vunpack.c.h.b16 %v5118
      %v5388 = vunpack.c.l.b16 %v5119
      %v5389 = vunpack.c.h.b16 %v5119
      %v5390 = vunpack.c.l.b16 %v5120
      %v5391 = vunpack.c.h.b16 %v5120
      %v5392 = vunpack.c.l.b16 %v5121
      %v5393 = vunpack.c.h.b16 %v5121
      %v5394 = vunpack.c.l.b16 %v5122
      %v5395 = vunpack.c.h.b16 %v5122
      %v5396 = vunpack.c.l.b16 %v5123
      %v5397 = vunpack.c.h.b16 %v5123
      %v5398 = vunpack.c.l.b16 %v5124
      %v5399 = vunpack.c.h.b16 %v5124
      %v5400 = vunpack.c.l.b16 %v5125
      %v5401 = vunpack.c.h.b16 %v5125
      %v5402 = vunpack.c.l.b16 %v5126
      %v5403 = vunpack.c.h.b16 %v5126
      %v5404 = vunpack.c.l.b16 %v5127
      %v5405 = vunpack.c.h.b16 %v5127
      %v5406 = vunpack.c.l.b16 %v5128
      %v5407 = vunpack.c.h.b16 %v5128
      %v5408 = vunpack.c.l.b16 %v5129
      %v5409 = vunpack.c.h.b16 %v5129
      %v5410 = vunpack.c.l.b16 %v5130
      %v5411 = vunpack.c.h.b16 %v5130
      %v5412 = vunpack.c.l.b16 %v5131
      %v5413 = vunpack.c.h.b16 %v5131
      %v5414 = vunpack.c.l.b16 %v5132
      %v5415 = vunpack.c.h.b16 %v5132
      %v5416 = vunpack.c.l.b16 %v5133
      %v5417 = vunpack.c.h.b16 %v5133
      %v5418 = vunpack.c.l.b16 %v5134
      %v5419 = vunpack.c.h.b16 %v5134
      %v5420 = vunpack.c.l.b16 %v5135
      %v5421 = vunpack.c.h.b16 %v5135
      %v5422 = vunpack.c.l.b16 %v5136
      %v5423 = vunpack.c.h.b16 %v5136
      %v5424 = vunpack.c.l.b16 %v5137
      %v5425 = vunpack.c.h.b16 %v5137
      %v5426 = vpack.c.b16 %v5240, %v5234
      %v5427 = vpack.c.b16 %v5241, %v5235
      %v5428 = vpack.c.b16 %v5242, %v5236
      %v5429 = vpack.c.b16 %v5243, %v5237
      %v5430 = vpack.c.b16 %v5244, %v5238
      %v5431 = vpack.c.b16 %v5245, %v5239
      %v5432 = vpack.c.b16 %v5252, %v5246
      %v5433 = vpack.c.b16 %v5253, %v5247
      %v5434 = vpack.c.b16 %v5254, %v5248
      %v5435 = vpack.c.b16 %v5255, %v5249
      %v5436 = vpack.c.b16 %v5256, %v5250
      %v5437 = vpack.c.b16 %v5257, %v5251
      %v5438 = vpack.c.b16 %v5264, %v5258
      %v5439 = vpack.c.b16 %v5265, %v5259
      %v5440 = vpack.c.b16 %v5266, %v5260
      %v5441 = vpack.c.b16 %v5267, %v5261
      %v5442 = vpack.c.b16 %v5268, %v5262
      %v5443 = vpack.c.b16 %v5269, %v5263
      %v5444 = vpack.c.b16 %v5276, %v5270
      %v5445 = vpack.c.b16 %v5277, %v5271
      %v5446 = vpack.c.b16 %v5278, %v5272
      %v5447 = vpack.c.b16 %v5279, %v5273
      %v5448 = vpack.c.b16 %v5280, %v5274
      %v5449 = vpack.c.b16 %v5281, %v5275
      %v5450 = vpack.c.b16 %v5288, %v5282
      %v5451 = vpack.c.b16 %v5289, %v5283
      %v5452 = vpack.c.b16 %v5290, %v5284
      %v5453 = vpack.c.b16 %v5291, %v5285
      %v5454 = vpack.c.b16 %v5292, %v5286
      %v5455 = vpack.c.b16 %v5293, %v5287
      %v5456 = vpack.c.b16 %v5300, %v5294
      %v5457 = vpack.c.b16 %v5301, %v5295
      %v5458 = vpack.c.b16 %v5302, %v5296
      %v5459 = vpack.c.b16 %v5303, %v5297
      %v5460 = vpack.c.b16 %v5304, %v5298
      %v5461 = vpack.c.b16 %v5305, %v5299
      %v5462 = vpack.c.b16 %v5312, %v5306
      %v5463 = vpack.c.b16 %v5313, %v5307
      %v5464 = vpack.c.b16 %v5314, %v5308
      %v5465 = vpack.c.b16 %v5315, %v5309
      %v5466 = vpack.c.b16 %v5316, %v5310
      %v5467 = vpack.c.b16 %v5317, %v5311
      %v5468 = vpack.c.b16 %v5324, %v5318
      %v5469 = vpack.c.b16 %v5325, %v5319
      %v5470 = vpack.c.b16 %v5326, %v5320
      %v5471 = vpack.c.b16 %v5327, %v5321
      %v5472 = vpack.c.b16 %v5328, %v5322
      %v5473 = vpack.c.b16 %v5329, %v5323
      %v5474 = vpack.c.b16 %v5336, %v5330
      %v5475 = vpack.c.b16 %v5337, %v5331
      %v5476 = vpack.c.b16 %v5338, %v5332
      %v5477 = vpack.c.b16 %v5339, %v5333
      %v5478 = vpack.c.b16 %v5340, %v5334
      %v5479 = vpack.c.b16 %v5341, %v5335
      %v5480 = vpack.c.b16 %v5348, %v5342
      %v5481 = vpack.c.b16 %v5349, %v5343
      %v5482 = vpack.c.b16 %v5350, %v5344
      %v5483 = vpack.c.b16 %v5351, %v5345
      %v5484 = vpack.c.b16 %v5352, %v5346
      %v5485 = vpack.c.b16 %v5353, %v5347
      %v5486 = vpack.c.b16 %v5360, %v5354
      %v5487 = vpack.c.b16 %v5361, %v5355
      %v5488 = vpack.c.b16 %v5362, %v5356
      %v5489 = vpack.c.b16 %v5363, %v5357
      %v5490 = vpack.c.b16 %v5364, %v5358
      %v5491 = vpack.c.b16 %v5365, %v5359
      %v5492 = vpack.c.b16 %v5372, %v5366
      %v5493 = vpack.c.b16 %v5373, %v5367
      %v5494 = vpack.c.b16 %v5374, %v5368
      %v5495 = vpack.c.b16 %v5375, %v5369
      %v5496 = vpack.c.b16 %v5376, %v5370
      %v5497 = vpack.c.b16 %v5377, %v5371
      %v5498 = vpack.c.b16 %v5384, %v5378
      %v5499 = vpack.c.b16 %v5385, %v5379
      %v5500 = vpack.c.b16 %v5386, %v5380
      %v5501 = vpack.c.b16 %v5387, %v5381
      %v5502 = vpack.c.b16 %v5388, %v5382
      %v5503 = vpack.c.b16 %v5389, %v5383
      %v5504 = vpack.c.b16 %v5396, %v5390
      %v5505 = vpack.c.b16 %v5397, %v5391
      %v5506 = vpack.c.b16 %v5398, %v5392
      %v5507 = vpack.c.b16 %v5399, %v5393
      %v5508 = vpack.c.b16 %v5400, %v5394
      %v5509 = vpack.c.b16 %v5401, %v5395
      %v5510 = vpack.c.b16 %v5408, %v5402
      %v5511 = vpack.c.b16 %v5409, %v5403
      %v5512 = vpack.c.b16 %v5410, %v5404
      %v5513 = vpack.c.b16 %v5411, %v5405
      %v5514 = vpack.c.b16 %v5412, %v5406
      %v5515 = vpack.c.b16 %v5413, %v5407
      %v5516 = vpack.c.b16 %v5420, %v5414
      %v5517 = vpack.c.b16 %v5421, %v5415
      %v5518 = vpack.c.b16 %v5422, %v5416
      %v5519 = vpack.c.b16 %v5423, %v5417
      %v5520 = vpack.c.b16 %v5424, %v5418
      %v5521 = vpack.c.b16 %v5425, %v5419
      %5618 = vmatprep.subr.bf16.mxu0 %v5469
      %5619 = vmatpush1.bf16.msra.mxu0 %v5468
      %5620 = vmatprep.subr.bf16.mxu0 %v5463
      %5621 = vmatpush1.bf16.msra.mxu0 %v5462
      %5622 = vmatprep.subr.bf16.mxu0 %v5457
      %5623 = vmatpush1.bf16.msra.mxu0 %v5456
      %5624 = vmatprep.subr.bf16.mxu0 %v5451
      %5625 = vmatpush1.bf16.msra.mxu0 %v5450
      %5626 = vmatprep.subr.bf16.mxu0 %v5445
      %5627 = vmatpush1.bf16.msra.mxu0 %v5444
      %5628 = vmatprep.subr.bf16.mxu0 %v5439
      %5629 = vmatpush1.bf16.msra.mxu0 %v5438
      %5630 = vmatprep.subr.bf16.mxu0 %v5433
      %5631 = vmatpush1.bf16.msra.mxu0 %v5432
      %5632 = vmatprep.subr.bf16.mxu0 %v5427
      %5633 = vmatpush1.bf16.msra.mxu0 %v5426
      %5634 = vmatprep.subr.bf16.mxu0 %v5517
      %5635 = vmatpush2.bf16.msra.mxu0 %v5516
      %5636 = vmatprep.subr.bf16.mxu0 %v5511
      %5637 = vmatpush2.bf16.msra.mxu0 %v5510
      %5638 = vmatprep.subr.bf16.mxu0 %v5505
      %5639 = vmatpush2.bf16.msra.mxu0 %v5504
      %5640 = vmatprep.subr.bf16.mxu0 %v5499
      %5641 = vmatpush2.bf16.msra.mxu0 %v5498
      %5642 = vmatprep.subr.bf16.mxu0 %v5493
      %5643 = vmatpush2.bf16.msra.mxu0 %v5492
      %5644 = vmatprep.subr.bf16.mxu0 %v5487
      %5645 = vmatpush2.bf16.msra.mxu0 %v5486
      %5646 = vmatprep.subr.bf16.mxu0 %v5481
      %5647 = vmatpush2.bf16.msra.mxu0 %v5480
      %5648 = vmatprep.subr.bf16.mxu0 %v5475
      %5649 = vmatpush2.bf16.msra.mxu0 %v5474
      %5650 = vmatprep.mubr.bf16.mxu0 %v5041
      %5651 = vmatmul.mubr.bf16.gmra.mxu0 %v5040
      %v5652 = vpop.f32.mrf.mxu0
      %v5653 = vadd.f32 0.0, %v5652
      %v5654 = vpop.f32.mrf.mxu0
      %v5655 = vadd.f32 0.0, %v5654
      %v5656 = vpop.f32.mrf.mxu0
      %v5657 = vpop.f32.mrf.mxu0
      %5658 = vdwg.mxu0
      %5659 = vmatprep.subr.bf16.mxu0 %v5471
      %5660 = vmatpush1.bf16.msra.mxu0 %v5470
      %5661 = vmatprep.subr.bf16.mxu0 %v5465
      %5662 = vmatpush1.bf16.msra.mxu0 %v5464
      %5663 = vmatprep.subr.bf16.mxu0 %v5459
      %5664 = vmatpush1.bf16.msra.mxu0 %v5458
      %5665 = vmatprep.subr.bf16.mxu0 %v5453
      %5666 = vmatpush1.bf16.msra.mxu0 %v5452
      %5667 = vmatprep.subr.bf16.mxu0 %v5447
      %5668 = vmatpush1.bf16.msra.mxu0 %v5446
      %5669 = vmatprep.subr.bf16.mxu0 %v5441
      %5670 = vmatpush1.bf16.msra.mxu0 %v5440
      %5671 = vmatprep.subr.bf16.mxu0 %v5435
      %5672 = vmatpush1.bf16.msra.mxu0 %v5434
      %5673 = vmatprep.subr.bf16.mxu0 %v5429
      %5674 = vmatpush1.bf16.msra.mxu0 %v5428
      %5675 = vmatprep.subr.bf16.mxu0 %v5519
      %5676 = vmatpush2.bf16.msra.mxu0 %v5518
      %5677 = vmatprep.subr.bf16.mxu0 %v5513
      %5678 = vmatpush2.bf16.msra.mxu0 %v5512
      %5679 = vmatprep.subr.bf16.mxu0 %v5507
      %5680 = vmatpush2.bf16.msra.mxu0 %v5506
      %5681 = vmatprep.subr.bf16.mxu0 %v5501
      %5682 = vmatpush2.bf16.msra.mxu0 %v5500
      %5683 = vmatprep.subr.bf16.mxu0 %v5495
      %5684 = vmatpush2.bf16.msra.mxu0 %v5494
      %5685 = vmatprep.subr.bf16.mxu0 %v5489
      %5686 = vmatpush2.bf16.msra.mxu0 %v5488
      %5687 = vmatprep.subr.bf16.mxu0 %v5483
      %5688 = vmatpush2.bf16.msra.mxu0 %v5482
      %5689 = vmatprep.subr.bf16.mxu0 %v5477
      %5690 = vmatpush2.bf16.msra.mxu0 %v5476
      %5691 = vmatprep.mubr.bf16.mxu0 %v5041
      %5692 = vmatmul.mubr.bf16.gmra.mxu0 %v5040
      %v5693 = vpop.f32.mrf.mxu0
      %v5694 = vadd.f32 0.0, %v5693
      %v5695 = vpop.f32.mrf.mxu0
      %v5696 = vadd.f32 0.0, %v5695
      %v5697 = vpop.f32.mrf.mxu0
      %v5698 = vpop.f32.mrf.mxu0
      %5699 = vdwg.mxu0
      %5700 = vmatprep.subr.bf16.mxu0 %v5473
      %5701 = vmatpush1.bf16.msra.mxu0 %v5472
      %5702 = vmatprep.subr.bf16.mxu0 %v5467
      %5703 = vmatpush1.bf16.msra.mxu0 %v5466
      %5704 = vmatprep.subr.bf16.mxu0 %v5461
      %5705 = vmatpush1.bf16.msra.mxu0 %v5460
      %5706 = vmatprep.subr.bf16.mxu0 %v5455
      %5707 = vmatpush1.bf16.msra.mxu0 %v5454
      %5708 = vmatprep.subr.bf16.mxu0 %v5449
      %5709 = vmatpush1.bf16.msra.mxu0 %v5448
      %5710 = vmatprep.subr.bf16.mxu0 %v5443
      %5711 = vmatpush1.bf16.msra.mxu0 %v5442
      %5712 = vmatprep.subr.bf16.mxu0 %v5437
      %5713 = vmatpush1.bf16.msra.mxu0 %v5436
      %5714 = vmatprep.subr.bf16.mxu0 %v5431
      %5715 = vmatpush1.bf16.msra.mxu0 %v5430
      %5716 = vmatprep.subr.bf16.mxu0 %v5521
      %5717 = vmatpush2.bf16.msra.mxu0 %v5520
      %5718 = vmatprep.subr.bf16.mxu0 %v5515
      %5719 = vmatpush2.bf16.msra.mxu0 %v5514
      %5720 = vmatprep.subr.bf16.mxu0 %v5509
      %5721 = vmatpush2.bf16.msra.mxu0 %v5508
      %5722 = vmatprep.subr.bf16.mxu0 %v5503
      %5723 = vmatpush2.bf16.msra.mxu0 %v5502
      %5724 = vmatprep.subr.bf16.mxu0 %v5497
      %5725 = vmatpush2.bf16.msra.mxu0 %v5496
      %5726 = vmatprep.subr.bf16.mxu0 %v5491
      %5727 = vmatpush2.bf16.msra.mxu0 %v5490
      %5728 = vmatprep.subr.bf16.mxu0 %v5485
      %5729 = vmatpush2.bf16.msra.mxu0 %v5484
      %5730 = vmatprep.subr.bf16.mxu0 %v5479
      %5731 = vmatpush2.bf16.msra.mxu0 %v5478
      %5732 = vmatprep.mubr.bf16.mxu0 %v5041
      %5733 = vmatmul.mubr.bf16.gmra.mxu0 %v5040
      %v5734 = vpop.f32.mrf.mxu0
      %v5735 = vadd.f32 0.0, %v5734
      %v5736 = vpop.f32.mrf.mxu0
      %v5737 = vadd.f32 0.0, %v5736
      %v5738 = vpop.f32.mrf.mxu0
      %v5739 = vpop.f32.mrf.mxu0
      %5740 = vdwg.mxu0
      %s5741 = scalar_lea.vmem %s192, 6
      %v5742 = vld [vmem:[%s5741] ss:$8 sm:$0xf]
      %v5743 = vld [vmem:[%s5741] ss:$8 sm:$0x30]
      %v5744 = vor.u32 %v5742, %v5743
      %v5747 = vcombine.low %v5653, %v5655
      %v5749 = vunpack.c.l.s4 1966171168
      %v5750 = vunpack.c.0.s8 %v5749
      %v5751 = vlaneseq
      %v5752 = vshrl.u32 %v5751, 7
      %v5753 = vsub.s32 %v5750, %v5752
      %v5754 = vrot.slane %v5747, %v5753
      %v5756 = vunpack.c.l.s4 1966171168
      %v5757 = vunpack.c.0.s8 %v5756
      %v5758 = vlaneseq
      %v5759 = vshrl.u32 %v5758, 7
      %v5760 = vsub.s32 %v5757, %v5759
      %v5761 = vrot.slane %v5754, %v5760
      %v5763 = vadd.f32 %v5744, %v5761
      %v5764 = vxor.u32 %v5763, 2147483648
      %v5765 = vmul.f32 %v5764, 1.442695
      %v5766 = vpow.pop %v5765
      %v5767 = vadd.f32 %v5766, 1.0
      %v5768 = vrcp.pop %v5767
      %v5769 = vmul.f32 1.0, %v5768
      %v5771 = vrot.slane %v5744, 2
      %v5775 = vcombine.low %v5694, %v5696
      %v5777 = vunpack.c.l.s4 1966171168
      %v5778 = vunpack.c.0.s8 %v5777
      %v5779 = vlaneseq
      %v5780 = vshrl.u32 %v5779, 7
      %v5781 = vsub.s32 %v5778, %v5780
      %v5782 = vrot.slane %v5775, %v5781
      %v5784 = vunpack.c.l.s4 1966171168
      %v5785 = vunpack.c.0.s8 %v5784
      %v5786 = vlaneseq
      %v5787 = vshrl.u32 %v5786, 7
      %v5788 = vsub.s32 %v5785, %v5787
      %v5789 = vrot.slane %v5782, %v5788
      %v5791 = vadd.f32 %v5771, %v5789
      %v5792 = vxor.u32 %v5791, 2147483648
      %v5793 = vmul.f32 %v5792, 1.442695
      %v5794 = vpow.pop %v5793
      %v5795 = vadd.f32 %v5794, 1.0
      %v5796 = vrcp.pop %v5795
      %v5797 = vmul.f32 1.0, %v5796
      %v5798 = vadd.f32 %v5735, %v982
      %v5799 = vadd.f32 %v5737, %v986
      %v5802 = vcombine.low %v5798, %v5799
      %v5804 = vunpack.c.l.s4 1966171168
      %v5805 = vunpack.c.0.s8 %v5804
      %v5806 = vlaneseq
      %v5807 = vshrl.u32 %v5806, 7
      %v5808 = vsub.s32 %v5805, %v5807
      %v5809 = vrot.slane %v5802, %v5808
      %v5811 = vunpack.c.l.s4 1966171168
      %v5812 = vunpack.c.0.s8 %v5811
      %v5813 = vlaneseq
      %v5814 = vshrl.u32 %v5813, 7
      %v5815 = vsub.s32 %v5812, %v5814
      %v5816 = vrot.slane %v5809, %v5815
      %v5818 = vmul.f32 %v5769, %v5816
      %v5819 = vrot.slane %v5744, 4
      %v5821 = vadd.f32 %v5819, %v5818
      %v5822 = vtanh.pop %v5821
      %v5823 = vsub.f32 1.0, %v5797
      %v5824 = vmul.f32 %v5823, %v5822
      %v5825 = vmul.f32 %v5797, %v5025
      %v5826 = vadd.f32 %v5824, %v5825
      %s5827 = scalar_lea.vmem %s197, 6
      %5828 = vst.msk [vmem:[%s5827] ss:$8 sm:$0x3] %vm1021, %v5826
      %5829 = vst.msk [vmem:[%s5827] ss:$8 sm:$0x0] %vm1021, %v5826
      %v5831 = vlaneseq
      %v5832 = vshrl.u32 %v5831, 7
      %v5833 = vsub.s32 0, %v5832
      %v5834 = vrot.slane %v5826, %v5833
      %v5835 = vlaneseq
      %v5836 = vshrl.u32 %v5835, 7
      %v5837 = vsub.s32 1, %v5836
      %v5838 = vrot.slane %v5826, %v5837
      %v5841 = vpack.c.bf16 %v5834, %v5834
      %v5842 = vpack.c.bf16 %v5838, %v5838
      %v5843 = vld [vmem:[%s1] sm:$0xff]
      %v5844 = vld [vmem:[%s1 + $0x8] sm:$0xff]
      %v5845 = vld [vmem:[%s1 + $0x10] sm:$0xff]
      %v5846 = vld [vmem:[%s1 + $0x18] sm:$0xff]
      %v5847 = vld [vmem:[%s1 + $0x20] sm:$0xff]
      %v5848 = vld [vmem:[%s1 + $0x28] sm:$0xff]
      %v5849 = vld [vmem:[%s1 + $0x30] sm:$0xff]
      %v5850 = vld [vmem:[%s1 + $0x38] sm:$0xff]
      %v5851 = vld [vmem:[%s1 + $0x40] sm:$0xff]
      %v5852 = vld [vmem:[%s1 + $0x48] sm:$0xff]
      %v5853 = vld [vmem:[%s1 + $0x50] sm:$0xff]
      %v5854 = vld [vmem:[%s1 + $0x58] sm:$0xff]
      %v5855 = vld [vmem:[%s1 + $0x60] sm:$0xff]
      %v5856 = vld [vmem:[%s1 + $0x68] sm:$0xff]
      %v5857 = vld [vmem:[%s1 + $0x70] sm:$0xff]
      %v5858 = vld [vmem:[%s1 + $0x78] sm:$0xff]
      %v5859 = vld [vmem:[%s1 + $0x80] sm:$0xff]
      %v5860 = vld [vmem:[%s1 + $0x88] sm:$0xff]
      %v5861 = vld [vmem:[%s1 + $0x90] sm:$0xff]
      %v5862 = vld [vmem:[%s1 + $0x98] sm:$0xff]
      %v5863 = vld [vmem:[%s1 + $0xa0] sm:$0xff]
      %v5864 = vld [vmem:[%s1 + $0xa8] sm:$0xff]
      %v5865 = vld [vmem:[%s1 + $0xb0] sm:$0xff]
      %v5866 = vld [vmem:[%s1 + $0xb8] sm:$0xff]
      %v5867 = vld [vmem:[%s1 + $0xc0] sm:$0xff]
      %v5868 = vld [vmem:[%s1 + $0xc8] sm:$0xff]
      %v5869 = vld [vmem:[%s1 + $0xd0] sm:$0xff]
      %v5870 = vld [vmem:[%s1 + $0xd8] sm:$0xff]
      %v5871 = vld [vmem:[%s1 + $0xe0] sm:$0xff]
      %v5872 = vld [vmem:[%s1 + $0xe8] sm:$0xff]
      %v5873 = vld [vmem:[%s1 + $0xf0] sm:$0xff]
      %v5874 = vld [vmem:[%s1 + $0xf8] sm:$0xff]
      %v5875 = vld [vmem:[%s1 + $0x100] sm:$0xff]
      %v5876 = vld [vmem:[%s1 + $0x108] sm:$0xff]
      %v5877 = vld [vmem:[%s1 + $0x110] sm:$0xff]
      %v5878 = vld [vmem:[%s1 + $0x118] sm:$0xff]
      %v5879 = vld [vmem:[%s1 + $0x120] sm:$0xff]
      %v5880 = vld [vmem:[%s1 + $0x128] sm:$0xff]
      %v5881 = vld [vmem:[%s1 + $0x130] sm:$0xff]
      %v5882 = vld [vmem:[%s1 + $0x138] sm:$0xff]
      %v5883 = vld [vmem:[%s1 + $0x140] sm:$0xff]
      %v5884 = vld [vmem:[%s1 + $0x148] sm:$0xff]
      %v5885 = vld [vmem:[%s1 + $0x150] sm:$0xff]
      %v5886 = vld [vmem:[%s1 + $0x158] sm:$0xff]
      %v5887 = vld [vmem:[%s1 + $0x160] sm:$0xff]
      %v5888 = vld [vmem:[%s1 + $0x168] sm:$0xff]
      %v5889 = vld [vmem:[%s1 + $0x170] sm:$0xff]
      %v5890 = vld [vmem:[%s1 + $0x178] sm:$0xff]
      %v5891 = vld [vmem:[%s1 + $0x180] sm:$0xff]
      %v5892 = vld [vmem:[%s1 + $0x188] sm:$0xff]
      %v5893 = vld [vmem:[%s1 + $0x190] sm:$0xff]
      %v5894 = vld [vmem:[%s1 + $0x198] sm:$0xff]
      %v5895 = vld [vmem:[%s1 + $0x1a0] sm:$0xff]
      %v5896 = vld [vmem:[%s1 + $0x1a8] sm:$0xff]
      %v5897 = vld [vmem:[%s1 + $0x1b0] sm:$0xff]
      %v5898 = vld [vmem:[%s1 + $0x1b8] sm:$0xff]
      %v5899 = vld [vmem:[%s1 + $0x1c0] sm:$0xff]
      %v5900 = vld [vmem:[%s1 + $0x1c8] sm:$0xff]
      %v5901 = vld [vmem:[%s1 + $0x1d0] sm:$0xff]
      %v5902 = vld [vmem:[%s1 + $0x1d8] sm:$0xff]
      %v5903 = vld [vmem:[%s1 + $0x1e0] sm:$0xff]
      %v5904 = vld [vmem:[%s1 + $0x1e8] sm:$0xff]
      %v5905 = vld [vmem:[%s1 + $0x1f0] sm:$0xff]
      %v5906 = vld [vmem:[%s1 + $0x1f8] sm:$0xff]
      %v5907 = vld [vmem:[%s1 + $0x200] sm:$0xff]
      %v5908 = vld [vmem:[%s1 + $0x208] sm:$0xff]
      %v5909 = vld [vmem:[%s1 + $0x210] sm:$0xff]
      %v5910 = vld [vmem:[%s1 + $0x218] sm:$0xff]
      %v5911 = vld [vmem:[%s1 + $0x220] sm:$0xff]
      %v5912 = vld [vmem:[%s1 + $0x228] sm:$0xff]
      %v5913 = vld [vmem:[%s1 + $0x230] sm:$0xff]
      %v5914 = vld [vmem:[%s1 + $0x238] sm:$0xff]
      %v5915 = vld [vmem:[%s1 + $0x240] sm:$0xff]
      %v5916 = vld [vmem:[%s1 + $0x248] sm:$0xff]
      %v5917 = vld [vmem:[%s1 + $0x250] sm:$0xff]
      %v5918 = vld [vmem:[%s1 + $0x258] sm:$0xff]
      %v5919 = vld [vmem:[%s1 + $0x260] sm:$0xff]
      %v5920 = vld [vmem:[%s1 + $0x268] sm:$0xff]
      %v5921 = vld [vmem:[%s1 + $0x270] sm:$0xff]
      %v5922 = vld [vmem:[%s1 + $0x278] sm:$0xff]
      %v5923 = vld [vmem:[%s1 + $0x280] sm:$0xff]
      %v5924 = vld [vmem:[%s1 + $0x288] sm:$0xff]
      %v5925 = vld [vmem:[%s1 + $0x290] sm:$0xff]
      %v5926 = vld [vmem:[%s1 + $0x298] sm:$0xff]
      %v5927 = vld [vmem:[%s1 + $0x2a0] sm:$0xff]
      %v5928 = vld [vmem:[%s1 + $0x2a8] sm:$0xff]
      %v5929 = vld [vmem:[%s1 + $0x2b0] sm:$0xff]
      %v5930 = vld [vmem:[%s1 + $0x2b8] sm:$0xff]
      %v5931 = vld [vmem:[%s1 + $0x2c0] sm:$0xff]
      %v5932 = vld [vmem:[%s1 + $0x2c8] sm:$0xff]
      %v5933 = vld [vmem:[%s1 + $0x2d0] sm:$0xff]
      %v5934 = vld [vmem:[%s1 + $0x2d8] sm:$0xff]
      %v5935 = vld [vmem:[%s1 + $0x2e0] sm:$0xff]
      %v5936 = vld [vmem:[%s1 + $0x2e8] sm:$0xff]
      %v5937 = vld [vmem:[%s1 + $0x2f0] sm:$0xff]
      %v5938 = vld [vmem:[%s1 + $0x2f8] sm:$0xff]
      %v6035 = vunpack.c.l.b16 %v5843
      %v6036 = vunpack.c.h.b16 %v5843
      %v6037 = vunpack.c.l.b16 %v5844
      %v6038 = vunpack.c.h.b16 %v5844
      %v6039 = vunpack.c.l.b16 %v5845
      %v6040 = vunpack.c.h.b16 %v5845
      %v6041 = vunpack.c.l.b16 %v5846
      %v6042 = vunpack.c.h.b16 %v5846
      %v6043 = vunpack.c.l.b16 %v5847
      %v6044 = vunpack.c.h.b16 %v5847
      %v6045 = vunpack.c.l.b16 %v5848
      %v6046 = vunpack.c.h.b16 %v5848
      %v6047 = vunpack.c.l.b16 %v5849
      %v6048 = vunpack.c.h.b16 %v5849
      %v6049 = vunpack.c.l.b16 %v5850
      %v6050 = vunpack.c.h.b16 %v5850
      %v6051 = vunpack.c.l.b16 %v5851
      %v6052 = vunpack.c.h.b16 %v5851
      %v6053 = vunpack.c.l.b16 %v5852
      %v6054 = vunpack.c.h.b16 %v5852
      %v6055 = vunpack.c.l.b16 %v5853
      %v6056 = vunpack.c.h.b16 %v5853
      %v6057 = vunpack.c.l.b16 %v5854
      %v6058 = vunpack.c.h.b16 %v5854
      %v6059 = vunpack.c.l.b16 %v5855
      %v6060 = vunpack.c.h.b16 %v5855
      %v6061 = vunpack.c.l.b16 %v5856
      %v6062 = vunpack.c.h.b16 %v5856
      %v6063 = vunpack.c.l.b16 %v5857
      %v6064 = vunpack.c.h.b16 %v5857
      %v6065 = vunpack.c.l.b16 %v5858
      %v6066 = vunpack.c.h.b16 %v5858
      %v6067 = vunpack.c.l.b16 %v5859
      %v6068 = vunpack.c.h.b16 %v5859
      %v6069 = vunpack.c.l.b16 %v5860
      %v6070 = vunpack.c.h.b16 %v5860
      %v6071 = vunpack.c.l.b16 %v5861
      %v6072 = vunpack.c.h.b16 %v5861
      %v6073 = vunpack.c.l.b16 %v5862
      %v6074 = vunpack.c.h.b16 %v5862
      %v6075 = vunpack.c.l.b16 %v5863
      %v6076 = vunpack.c.h.b16 %v5863
      %v6077 = vunpack.c.l.b16 %v5864
      %v6078 = vunpack.c.h.b16 %v5864
      %v6079 = vunpack.c.l.b16 %v5865
      %v6080 = vunpack.c.h.b16 %v5865
      %v6081 = vunpack.c.l.b16 %v5866
      %v6082 = vunpack.c.h.b16 %v5866
      %v6083 = vunpack.c.l.b16 %v5867
      %v6084 = vunpack.c.h.b16 %v5867
      %v6085 = vunpack.c.l.b16 %v5868
      %v6086 = vunpack.c.h.b16 %v5868
      %v6087 = vunpack.c.l.b16 %v5869
      %v6088 = vunpack.c.h.b16 %v5869
      %v6089 = vunpack.c.l.b16 %v5870
      %v6090 = vunpack.c.h.b16 %v5870
      %v6091 = vunpack.c.l.b16 %v5871
      %v6092 = vunpack.c.h.b16 %v5871
      %v6093 = vunpack.c.l.b16 %v5872
      %v6094 = vunpack.c.h.b16 %v5872
      %v6095 = vunpack.c.l.b16 %v5873
      %v6096 = vunpack.c.h.b16 %v5873
      %v6097 = vunpack.c.l.b16 %v5874
      %v6098 = vunpack.c.h.b16 %v5874
      %v6099 = vunpack.c.l.b16 %v5875
      %v6100 = vunpack.c.h.b16 %v5875
      %v6101 = vunpack.c.l.b16 %v5876
      %v6102 = vunpack.c.h.b16 %v5876
      %v6103 = vunpack.c.l.b16 %v5877
      %v6104 = vunpack.c.h.b16 %v5877
      %v6105 = vunpack.c.l.b16 %v5878
      %v6106 = vunpack.c.h.b16 %v5878
      %v6107 = vunpack.c.l.b16 %v5879
      %v6108 = vunpack.c.h.b16 %v5879
      %v6109 = vunpack.c.l.b16 %v5880
      %v6110 = vunpack.c.h.b16 %v5880
      %v6111 = vunpack.c.l.b16 %v5881
      %v6112 = vunpack.c.h.b16 %v5881
      %v6113 = vunpack.c.l.b16 %v5882
      %v6114 = vunpack.c.h.b16 %v5882
      %v6115 = vunpack.c.l.b16 %v5883
      %v6116 = vunpack.c.h.b16 %v5883
      %v6117 = vunpack.c.l.b16 %v5884
      %v6118 = vunpack.c.h.b16 %v5884
      %v6119 = vunpack.c.l.b16 %v5885
      %v6120 = vunpack.c.h.b16 %v5885
      %v6121 = vunpack.c.l.b16 %v5886
      %v6122 = vunpack.c.h.b16 %v5886
      %v6123 = vunpack.c.l.b16 %v5887
      %v6124 = vunpack.c.h.b16 %v5887
      %v6125 = vunpack.c.l.b16 %v5888
      %v6126 = vunpack.c.h.b16 %v5888
      %v6127 = vunpack.c.l.b16 %v5889
      %v6128 = vunpack.c.h.b16 %v5889
      %v6129 = vunpack.c.l.b16 %v5890
      %v6130 = vunpack.c.h.b16 %v5890
      %v6131 = vunpack.c.l.b16 %v5891
      %v6132 = vunpack.c.h.b16 %v5891
      %v6133 = vunpack.c.l.b16 %v5892
      %v6134 = vunpack.c.h.b16 %v5892
      %v6135 = vunpack.c.l.b16 %v5893
      %v6136 = vunpack.c.h.b16 %v5893
      %v6137 = vunpack.c.l.b16 %v5894
      %v6138 = vunpack.c.h.b16 %v5894
      %v6139 = vunpack.c.l.b16 %v5895
      %v6140 = vunpack.c.h.b16 %v5895
      %v6141 = vunpack.c.l.b16 %v5896
      %v6142 = vunpack.c.h.b16 %v5896
      %v6143 = vunpack.c.l.b16 %v5897
      %v6144 = vunpack.c.h.b16 %v5897
      %v6145 = vunpack.c.l.b16 %v5898
      %v6146 = vunpack.c.h.b16 %v5898
      %v6147 = vunpack.c.l.b16 %v5899
      %v6148 = vunpack.c.h.b16 %v5899
      %v6149 = vunpack.c.l.b16 %v5900
      %v6150 = vunpack.c.h.b16 %v5900
      %v6151 = vunpack.c.l.b16 %v5901
      %v6152 = vunpack.c.h.b16 %v5901
      %v6153 = vunpack.c.l.b16 %v5902
      %v6154 = vunpack.c.h.b16 %v5902
      %v6155 = vunpack.c.l.b16 %v5903
      %v6156 = vunpack.c.h.b16 %v5903
      %v6157 = vunpack.c.l.b16 %v5904
      %v6158 = vunpack.c.h.b16 %v5904
      %v6159 = vunpack.c.l.b16 %v5905
      %v6160 = vunpack.c.h.b16 %v5905
      %v6161 = vunpack.c.l.b16 %v5906
      %v6162 = vunpack.c.h.b16 %v5906
      %v6163 = vunpack.c.l.b16 %v5907
      %v6164 = vunpack.c.h.b16 %v5907
      %v6165 = vunpack.c.l.b16 %v5908
      %v6166 = vunpack.c.h.b16 %v5908
      %v6167 = vunpack.c.l.b16 %v5909
      %v6168 = vunpack.c.h.b16 %v5909
      %v6169 = vunpack.c.l.b16 %v5910
      %v6170 = vunpack.c.h.b16 %v5910
      %v6171 = vunpack.c.l.b16 %v5911
      %v6172 = vunpack.c.h.b16 %v5911
      %v6173 = vunpack.c.l.b16 %v5912
      %v6174 = vunpack.c.h.b16 %v5912
      %v6175 = vunpack.c.l.b16 %v5913
      %v6176 = vunpack.c.h.b16 %v5913
      %v6177 = vunpack.c.l.b16 %v5914
      %v6178 = vunpack.c.h.b16 %v5914
      %v6179 = vunpack.c.l.b16 %v5915
      %v6180 = vunpack.c.h.b16 %v5915
      %v6181 = vunpack.c.l.b16 %v5916
      %v6182 = vunpack.c.h.b16 %v5916
      %v6183 = vunpack.c.l.b16 %v5917
      %v6184 = vunpack.c.h.b16 %v5917
      %v6185 = vunpack.c.l.b16 %v5918
      %v6186 = vunpack.c.h.b16 %v5918
      %v6187 = vunpack.c.l.b16 %v5919
      %v6188 = vunpack.c.h.b16 %v5919
      %v6189 = vunpack.c.l.b16 %v5920
      %v6190 = vunpack.c.h.b16 %v5920
      %v6191 = vunpack.c.l.b16 %v5921
      %v6192 = vunpack.c.h.b16 %v5921
      %v6193 = vunpack.c.l.b16 %v5922
      %v6194 = vunpack.c.h.b16 %v5922
      %v6195 = vunpack.c.l.b16 %v5923
      %v6196 = vunpack.c.h.b16 %v5923
      %v6197 = vunpack.c.l.b16 %v5924
      %v6198 = vunpack.c.h.b16 %v5924
      %v6199 = vunpack.c.l.b16 %v5925
      %v6200 = vunpack.c.h.b16 %v5925
      %v6201 = vunpack.c.l.b16 %v5926
      %v6202 = vunpack.c.h.b16 %v5926
      %v6203 = vunpack.c.l.b16 %v5927
      %v6204 = vunpack.c.h.b16 %v5927
      %v6205 = vunpack.c.l.b16 %v5928
      %v6206 = vunpack.c.h.b16 %v5928
      %v6207 = vunpack.c.l.b16 %v5929
      %v6208 = vunpack.c.h.b16 %v5929
      %v6209 = vunpack.c.l.b16 %v5930
      %v6210 = vunpack.c.h.b16 %v5930
      %v6211 = vunpack.c.l.b16 %v5931
      %v6212 = vunpack.c.h.b16 %v5931
      %v6213 = vunpack.c.l.b16 %v5932
      %v6214 = vunpack.c.h.b16 %v5932
      %v6215 = vunpack.c.l.b16 %v5933
      %v6216 = vunpack.c.h.b16 %v5933
      %v6217 = vunpack.c.l.b16 %v5934
      %v6218 = vunpack.c.h.b16 %v5934
      %v6219 = vunpack.c.l.b16 %v5935
      %v6220 = vunpack.c.h.b16 %v5935
      %v6221 = vunpack.c.l.b16 %v5936
      %v6222 = vunpack.c.h.b16 %v5936
      %v6223 = vunpack.c.l.b16 %v5937
      %v6224 = vunpack.c.h.b16 %v5937
      %v6225 = vunpack.c.l.b16 %v5938
      %v6226 = vunpack.c.h.b16 %v5938
      %v6227 = vpack.c.b16 %v6041, %v6035
      %v6228 = vpack.c.b16 %v6042, %v6036
      %v6229 = vpack.c.b16 %v6043, %v6037
      %v6230 = vpack.c.b16 %v6044, %v6038
      %v6231 = vpack.c.b16 %v6045, %v6039
      %v6232 = vpack.c.b16 %v6046, %v6040
      %v6233 = vpack.c.b16 %v6053, %v6047
      %v6234 = vpack.c.b16 %v6054, %v6048
      %v6235 = vpack.c.b16 %v6055, %v6049
      %v6236 = vpack.c.b16 %v6056, %v6050
      %v6237 = vpack.c.b16 %v6057, %v6051
      %v6238 = vpack.c.b16 %v6058, %v6052
      %v6239 = vpack.c.b16 %v6065, %v6059
      %v6240 = vpack.c.b16 %v6066, %v6060
      %v6241 = vpack.c.b16 %v6067, %v6061
      %v6242 = vpack.c.b16 %v6068, %v6062
      %v6243 = vpack.c.b16 %v6069, %v6063
      %v6244 = vpack.c.b16 %v6070, %v6064
      %v6245 = vpack.c.b16 %v6077, %v6071
      %v6246 = vpack.c.b16 %v6078, %v6072
      %v6247 = vpack.c.b16 %v6079, %v6073
      %v6248 = vpack.c.b16 %v6080, %v6074
      %v6249 = vpack.c.b16 %v6081, %v6075
      %v6250 = vpack.c.b16 %v6082, %v6076
      %v6251 = vpack.c.b16 %v6089, %v6083
      %v6252 = vpack.c.b16 %v6090, %v6084
      %v6253 = vpack.c.b16 %v6091, %v6085
      %v6254 = vpack.c.b16 %v6092, %v6086
      %v6255 = vpack.c.b16 %v6093, %v6087
      %v6256 = vpack.c.b16 %v6094, %v6088
      %v6257 = vpack.c.b16 %v6101, %v6095
      %v6258 = vpack.c.b16 %v6102, %v6096
      %v6259 = vpack.c.b16 %v6103, %v6097
      %v6260 = vpack.c.b16 %v6104, %v6098
      %v6261 = vpack.c.b16 %v6105, %v6099
      %v6262 = vpack.c.b16 %v6106, %v6100
      %v6263 = vpack.c.b16 %v6113, %v6107
      %v6264 = vpack.c.b16 %v6114, %v6108
      %v6265 = vpack.c.b16 %v6115, %v6109
      %v6266 = vpack.c.b16 %v6116, %v6110
      %v6267 = vpack.c.b16 %v6117, %v6111
      %v6268 = vpack.c.b16 %v6118, %v6112
      %v6269 = vpack.c.b16 %v6125, %v6119
      %v6270 = vpack.c.b16 %v6126, %v6120
      %v6271 = vpack.c.b16 %v6127, %v6121
      %v6272 = vpack.c.b16 %v6128, %v6122
      %v6273 = vpack.c.b16 %v6129, %v6123
      %v6274 = vpack.c.b16 %v6130, %v6124
      %v6275 = vpack.c.b16 %v6137, %v6131
      %v6276 = vpack.c.b16 %v6138, %v6132
      %v6277 = vpack.c.b16 %v6139, %v6133
      %v6278 = vpack.c.b16 %v6140, %v6134
      %v6279 = vpack.c.b16 %v6141, %v6135
      %v6280 = vpack.c.b16 %v6142, %v6136
      %v6281 = vpack.c.b16 %v6149, %v6143
      %v6282 = vpack.c.b16 %v6150, %v6144
      %v6283 = vpack.c.b16 %v6151, %v6145
      %v6284 = vpack.c.b16 %v6152, %v6146
      %v6285 = vpack.c.b16 %v6153, %v6147
      %v6286 = vpack.c.b16 %v6154, %v6148
      %v6287 = vpack.c.b16 %v6161, %v6155
      %v6288 = vpack.c.b16 %v6162, %v6156
      %v6289 = vpack.c.b16 %v6163, %v6157
      %v6290 = vpack.c.b16 %v6164, %v6158
      %v6291 = vpack.c.b16 %v6165, %v6159
      %v6292 = vpack.c.b16 %v6166, %v6160
      %v6293 = vpack.c.b16 %v6173, %v6167
      %v6294 = vpack.c.b16 %v6174, %v6168
      %v6295 = vpack.c.b16 %v6175, %v6169
      %v6296 = vpack.c.b16 %v6176, %v6170
      %v6297 = vpack.c.b16 %v6177, %v6171
      %v6298 = vpack.c.b16 %v6178, %v6172
      %v6299 = vpack.c.b16 %v6185, %v6179
      %v6300 = vpack.c.b16 %v6186, %v6180
      %v6301 = vpack.c.b16 %v6187, %v6181
      %v6302 = vpack.c.b16 %v6188, %v6182
      %v6303 = vpack.c.b16 %v6189, %v6183
      %v6304 = vpack.c.b16 %v6190, %v6184
      %v6305 = vpack.c.b16 %v6197, %v6191
      %v6306 = vpack.c.b16 %v6198, %v6192
      %v6307 = vpack.c.b16 %v6199, %v6193
      %v6308 = vpack.c.b16 %v6200, %v6194
      %v6309 = vpack.c.b16 %v6201, %v6195
      %v6310 = vpack.c.b16 %v6202, %v6196
      %v6311 = vpack.c.b16 %v6209, %v6203
      %v6312 = vpack.c.b16 %v6210, %v6204
      %v6313 = vpack.c.b16 %v6211, %v6205
      %v6314 = vpack.c.b16 %v6212, %v6206
      %v6315 = vpack.c.b16 %v6213, %v6207
      %v6316 = vpack.c.b16 %v6214, %v6208
      %v6317 = vpack.c.b16 %v6221, %v6215
      %v6318 = vpack.c.b16 %v6222, %v6216
      %v6319 = vpack.c.b16 %v6223, %v6217
      %v6320 = vpack.c.b16 %v6224, %v6218
      %v6321 = vpack.c.b16 %v6225, %v6219
      %v6322 = vpack.c.b16 %v6226, %v6220
      %6419 = vmatprep.subr.bf16.mxu0 %v6270
      %6420 = vmatpush1.bf16.msra.mxu0 %v6269
      %6421 = vmatprep.subr.bf16.mxu0 %v6264
      %6422 = vmatpush1.bf16.msra.mxu0 %v6263
      %6423 = vmatprep.subr.bf16.mxu0 %v6258
      %6424 = vmatpush1.bf16.msra.mxu0 %v6257
      %6425 = vmatprep.subr.bf16.mxu0 %v6252
      %6426 = vmatpush1.bf16.msra.mxu0 %v6251
      %6427 = vmatprep.subr.bf16.mxu0 %v6246
      %6428 = vmatpush1.bf16.msra.mxu0 %v6245
      %6429 = vmatprep.subr.bf16.mxu0 %v6240
      %6430 = vmatpush1.bf16.msra.mxu0 %v6239
      %6431 = vmatprep.subr.bf16.mxu0 %v6234
      %6432 = vmatpush1.bf16.msra.mxu0 %v6233
      %6433 = vmatprep.subr.bf16.mxu0 %v6228
      %6434 = vmatpush1.bf16.msra.mxu0 %v6227
      %6435 = vmatprep.subr.bf16.mxu0 %v6318
      %6436 = vmatpush2.bf16.msra.mxu0 %v6317
      %6437 = vmatprep.subr.bf16.mxu0 %v6312
      %6438 = vmatpush2.bf16.msra.mxu0 %v6311
      %6439 = vmatprep.subr.bf16.mxu0 %v6306
      %6440 = vmatpush2.bf16.msra.mxu0 %v6305
      %6441 = vmatprep.subr.bf16.mxu0 %v6300
      %6442 = vmatpush2.bf16.msra.mxu0 %v6299
      %6443 = vmatprep.subr.bf16.mxu0 %v6294
      %6444 = vmatpush2.bf16.msra.mxu0 %v6293
      %6445 = vmatprep.subr.bf16.mxu0 %v6288
      %6446 = vmatpush2.bf16.msra.mxu0 %v6287
      %6447 = vmatprep.subr.bf16.mxu0 %v6282
      %6448 = vmatpush2.bf16.msra.mxu0 %v6281
      %6449 = vmatprep.subr.bf16.mxu0 %v6276
      %6450 = vmatpush2.bf16.msra.mxu0 %v6275
      %6451 = vmatprep.mubr.bf16.mxu0 %v5842
      %6452 = vmatmul.mubr.bf16.gmra.mxu0 %v5841
      %v6453 = vpop.f32.mrf.mxu0
      %v6454 = vadd.f32 0.0, %v6453
      %v6455 = vpop.f32.mrf.mxu0
      %v6456 = vadd.f32 0.0, %v6455
      %v6457 = vpop.f32.mrf.mxu0
      %v6458 = vpop.f32.mrf.mxu0
      %6459 = vdwg.mxu0
      %6460 = vmatprep.subr.bf16.mxu0 %v6272
      %6461 = vmatpush1.bf16.msra.mxu0 %v6271
      %6462 = vmatprep.subr.bf16.mxu0 %v6266
      %6463 = vmatpush1.bf16.msra.mxu0 %v6265
      %6464 = vmatprep.subr.bf16.mxu0 %v6260
      %6465 = vmatpush1.bf16.msra.mxu0 %v6259
      %6466 = vmatprep.subr.bf16.mxu0 %v6254
      %6467 = vmatpush1.bf16.msra.mxu0 %v6253
      %6468 = vmatprep.subr.bf16.mxu0 %v6248
      %6469 = vmatpush1.bf16.msra.mxu0 %v6247
      %6470 = vmatprep.subr.bf16.mxu0 %v6242
      %6471 = vmatpush1.bf16.msra.mxu0 %v6241
      %6472 = vmatprep.subr.bf16.mxu0 %v6236
      %6473 = vmatpush1.bf16.msra.mxu0 %v6235
      %6474 = vmatprep.subr.bf16.mxu0 %v6230
      %6475 = vmatpush1.bf16.msra.mxu0 %v6229
      %6476 = vmatprep.subr.bf16.mxu0 %v6320
      %6477 = vmatpush2.bf16.msra.mxu0 %v6319
      %6478 = vmatprep.subr.bf16.mxu0 %v6314
      %6479 = vmatpush2.bf16.msra.mxu0 %v6313
      %6480 = vmatprep.subr.bf16.mxu0 %v6308
      %6481 = vmatpush2.bf16.msra.mxu0 %v6307
      %6482 = vmatprep.subr.bf16.mxu0 %v6302
      %6483 = vmatpush2.bf16.msra.mxu0 %v6301
      %6484 = vmatprep.subr.bf16.mxu0 %v6296
      %6485 = vmatpush2.bf16.msra.mxu0 %v6295
      %6486 = vmatprep.subr.bf16.mxu0 %v6290
      %6487 = vmatpush2.bf16.msra.mxu0 %v6289
      %6488 = vmatprep.subr.bf16.mxu0 %v6284
      %6489 = vmatpush2.bf16.msra.mxu0 %v6283
      %6490 = vmatprep.subr.bf16.mxu0 %v6278
      %6491 = vmatpush2.bf16.msra.mxu0 %v6277
      %6492 = vmatprep.mubr.bf16.mxu0 %v5842
      %6493 = vmatmul.mubr.bf16.gmra.mxu0 %v5841
      %v6494 = vpop.f32.mrf.mxu0
      %v6495 = vadd.f32 0.0, %v6494
      %v6496 = vpop.f32.mrf.mxu0
      %v6497 = vadd.f32 0.0, %v6496
      %v6498 = vpop.f32.mrf.mxu0
      %v6499 = vpop.f32.mrf.mxu0
      %6500 = vdwg.mxu0
      %6501 = vmatprep.subr.bf16.mxu0 %v6274
      %6502 = vmatpush1.bf16.msra.mxu0 %v6273
      %6503 = vmatprep.subr.bf16.mxu0 %v6268
      %6504 = vmatpush1.bf16.msra.mxu0 %v6267
      %6505 = vmatprep.subr.bf16.mxu0 %v6262
      %6506 = vmatpush1.bf16.msra.mxu0 %v6261
      %6507 = vmatprep.subr.bf16.mxu0 %v6256
      %6508 = vmatpush1.bf16.msra.mxu0 %v6255
      %6509 = vmatprep.subr.bf16.mxu0 %v6250
      %6510 = vmatpush1.bf16.msra.mxu0 %v6249
      %6511 = vmatprep.subr.bf16.mxu0 %v6244
      %6512 = vmatpush1.bf16.msra.mxu0 %v6243
      %6513 = vmatprep.subr.bf16.mxu0 %v6238
      %6514 = vmatpush1.bf16.msra.mxu0 %v6237
      %6515 = vmatprep.subr.bf16.mxu0 %v6232
      %6516 = vmatpush1.bf16.msra.mxu0 %v6231
      %6517 = vmatprep.subr.bf16.mxu0 %v6322
      %6518 = vmatpush2.bf16.msra.mxu0 %v6321
      %6519 = vmatprep.subr.bf16.mxu0 %v6316
      %6520 = vmatpush2.bf16.msra.mxu0 %v6315
      %6521 = vmatprep.subr.bf16.mxu0 %v6310
      %6522 = vmatpush2.bf16.msra.mxu0 %v6309
      %6523 = vmatprep.subr.bf16.mxu0 %v6304
      %6524 = vmatpush2.bf16.msra.mxu0 %v6303
      %6525 = vmatprep.subr.bf16.mxu0 %v6298
      %6526 = vmatpush2.bf16.msra.mxu0 %v6297
      %6527 = vmatprep.subr.bf16.mxu0 %v6292
      %6528 = vmatpush2.bf16.msra.mxu0 %v6291
      %6529 = vmatprep.subr.bf16.mxu0 %v6286
      %6530 = vmatpush2.bf16.msra.mxu0 %v6285
      %6531 = vmatprep.subr.bf16.mxu0 %v6280
      %6532 = vmatpush2.bf16.msra.mxu0 %v6279
      %6533 = vmatprep.mubr.bf16.mxu0 %v5842
      %6534 = vmatmul.mubr.bf16.gmra.mxu0 %v5841
      %v6535 = vpop.f32.mrf.mxu0
      %v6536 = vadd.f32 0.0, %v6535
      %v6537 = vpop.f32.mrf.mxu0
      %v6538 = vadd.f32 0.0, %v6537
      %v6539 = vpop.f32.mrf.mxu0
      %v6540 = vpop.f32.mrf.mxu0
      %6541 = vdwg.mxu0
      %s6542 = scalar_lea.vmem %s192, 7
      %v6543 = vld [vmem:[%s6542] ss:$8 sm:$0xf]
      %v6544 = vld [vmem:[%s6542] ss:$8 sm:$0x30]
      %v6545 = vor.u32 %v6543, %v6544
      %v6548 = vcombine.low %v6454, %v6456
      %v6550 = vunpack.c.l.s4 1966171168
      %v6551 = vunpack.c.0.s8 %v6550
      %v6552 = vlaneseq
      %v6553 = vshrl.u32 %v6552, 7
      %v6554 = vsub.s32 %v6551, %v6553
      %v6555 = vrot.slane %v6548, %v6554
      %v6557 = vunpack.c.l.s4 1966171168
      %v6558 = vunpack.c.0.s8 %v6557
      %v6559 = vlaneseq
      %v6560 = vshrl.u32 %v6559, 7
      %v6561 = vsub.s32 %v6558, %v6560
      %v6562 = vrot.slane %v6555, %v6561
      %v6564 = vadd.f32 %v6545, %v6562
      %v6565 = vxor.u32 %v6564, 2147483648
      %v6566 = vmul.f32 %v6565, 1.442695
      %v6567 = vpow.pop %v6566
      %v6568 = vadd.f32 %v6567, 1.0
      %v6569 = vrcp.pop %v6568
      %v6570 = vmul.f32 1.0, %v6569
      %v6572 = vrot.slane %v6545, 2
      %v6576 = vcombine.low %v6495, %v6497
      %v6578 = vunpack.c.l.s4 1966171168
      %v6579 = vunpack.c.0.s8 %v6578
      %v6580 = vlaneseq
      %v6581 = vshrl.u32 %v6580, 7
      %v6582 = vsub.s32 %v6579, %v6581
      %v6583 = vrot.slane %v6576, %v6582
      %v6585 = vunpack.c.l.s4 1966171168
      %v6586 = vunpack.c.0.s8 %v6585
      %v6587 = vlaneseq
      %v6588 = vshrl.u32 %v6587, 7
      %v6589 = vsub.s32 %v6586, %v6588
      %v6590 = vrot.slane %v6583, %v6589
      %v6592 = vadd.f32 %v6572, %v6590
      %v6593 = vxor.u32 %v6592, 2147483648
      %v6594 = vmul.f32 %v6593, 1.442695
      %v6595 = vpow.pop %v6594
      %v6596 = vadd.f32 %v6595, 1.0
      %v6597 = vrcp.pop %v6596
      %v6598 = vmul.f32 1.0, %v6597
      %v6599 = vadd.f32 %v6536, %v982
      %v6600 = vadd.f32 %v6538, %v986
      %v6603 = vcombine.low %v6599, %v6600
      %v6605 = vunpack.c.l.s4 1966171168
      %v6606 = vunpack.c.0.s8 %v6605
      %v6607 = vlaneseq
      %v6608 = vshrl.u32 %v6607, 7
      %v6609 = vsub.s32 %v6606, %v6608
      %v6610 = vrot.slane %v6603, %v6609
      %v6612 = vunpack.c.l.s4 1966171168
      %v6613 = vunpack.c.0.s8 %v6612
      %v6614 = vlaneseq
      %v6615 = vshrl.u32 %v6614, 7
      %v6616 = vsub.s32 %v6613, %v6615
      %v6617 = vrot.slane %v6610, %v6616
      %v6619 = vmul.f32 %v6570, %v6617
      %v6620 = vrot.slane %v6545, 4
      %v6622 = vadd.f32 %v6620, %v6619
      %v6623 = vtanh.pop %v6622
      %v6624 = vsub.f32 1.0, %v6598
      %v6625 = vmul.f32 %v6624, %v6623
      %v6626 = vmul.f32 %v6598, %v5826
      %v6627 = vadd.f32 %v6625, %v6626
      %s6628 = scalar_lea.vmem %s197, 7
      %6629 = vst.msk [vmem:[%s6628] ss:$8 sm:$0x3] %vm1021, %v6627
      %6630 = vst.msk [vmem:[%s6628] ss:$8 sm:$0x0] %vm1021, %v6627
      %6631 = vst.msk [vmem:[#allocation2] sm:$0x3] %vm1021, %v6627
      %p6632 = scmp.lt.s32.totalorder %s15, 3
      %s6633 = scalar_select %p6632, %s15, 3
      %s6634 = smul.addr %s6633, 2
      %s6635 = smul.addr %s6634, 8
      %s6636 = scalar_lea.vmem %s4, %s6635
      // Predicated region
      $region41: #{encoder_rnn_forward.1} parent=35 // pred_check
        %p6637 = pneg %p122
      $region42: #{encoder_rnn_forward.1} parent=35 // pred_check_branch
        %6639 = sbr.rel (%p6637) target = $region44
      $region43: #{encoder_rnn_forward.1} parent=35 // pred_region
        _
      $region44: #{encoder_rnn_forward.1} parent=35 // pred_fallthru
        _
    $region36: #{encoder_rnn_forward.1} parent=5 // pred_fallthru
      _
    %p6640 = scmp.le.s32.totalorder 2, %s10
    // Predicated region
    $region45: #{encoder_rnn_forward.1} parent=5 // pred_check
      %p6641 = pneg %p6640
    $region46: #{encoder_rnn_forward.1} parent=5 // pred_check_branch
      %6643 = sbr.rel (%p6641) target = $region48
    $region47: #{encoder_rnn_forward.1} parent=5 // pred_region
      %s6644 = ssub.s32 %s10, 2
      // Predicated region
      $region49: #{encoder_rnn_forward.1} parent=47 // pred_check
        %p6645 = pneg %p128
      $region50: #{encoder_rnn_forward.1} parent=47 // pred_check_branch
        %6647 = sbr.rel (%p6645) target = $region52
      $region51: #{encoder_rnn_forward.1} parent=47 // pred_region
        %p6648 = scmp.lt.s32.totalorder %s16, 3
        %s6649 = scalar_select %p6648, %s16, 3
        %s6650 = smul.addr %s6649, 2
        %s6651 = smul.addr %s6650, 8
        %s6652 = scalar_lea.vmem %s4, %s6651
      $region52: #{encoder_rnn_forward.1} parent=47 // pred_fallthru
        _
    $region48: #{encoder_rnn_forward.1} parent=5 // pred_fallthru
      _
  $region6: #{encoder_rnn_forward.1} parent=0 // loop_footer
    %s14 = sadd.s32 1, %s10
  $region7: #{encoder_rnn_forward.1} parent=0 // loop_footer_branch
    %9 = sbr.rel target = $region3
  $region8: #{encoder_rnn_forward.1} parent=0 // loop_exit
    _

</llo_original>
